<compile_context>
chip_gen: v7x
topology: tpu7x:2x2x1
jax: 0.10.0
libtpu: 0.0.40
codegen_flags: <defaults>
</compile_context>

<pallas_src>
import functools
import math

import jax
import jax.numpy as jnp
import numpy as np
from jax.experimental import pallas as pl
from jax.experimental.pallas import tpu as pltpu

_BN_EPS = 1e-5


# ----------------------------- small shared helpers ---------------------------

def _gelu_exact(x):
    # exact (erf-based) GELU == PyTorch nn.GELU() default
    return 0.5 * x * (1.0 + jax.lax.erf(x * 0.7071067811865476))


def _tap_offsets(W):
    """(weight index, flat offset, dy, dx) for the 8 non-center taps of a padded 3x3
    depthwise conv, in a fixed order shared by the mask slab and the in-kernel rolls."""
    taps = []
    for dy in (-1, 0, 1):
        for dx in (-1, 0, 1):
            if dy == 0 and dx == 0:
                continue
            taps.append(((dy + 1) * 3 + (dx + 1), dy * W + dx, dy, dx))
    return taps


def _slab_a_layout(Cr, Ct):
    """Column layout of the (Cs, .) parameter slab (trace-time constants)."""
    Cs = Cr + Ct
    hid0 = 4 * Cs
    segs = (
        ("ce0_cvec", 12), ("ce0_w2", hid0),
        ("ce1_cvec", 12), ("ce1_w1b", Cs + 1), ("ce1_w2", Cs),
        ("wq", Cs), ("wk", Cs), ("wp", Cs), ("wf", Cs), ("avec", 6),
        ("mlp_w2b", 4 * Cs + 1), ("ls", 2), ("mrow", 2),
    )
    layout, off = {}, 0
    for name, size in segs:
        layout[name] = (off, size)
        off += size
    return layout, off


# ----------------------------- in-kernel blocks --------------------------------

def _conv_encoder_block(x, cvec, w1b, w2, tap_shifts, tap_m):
    """dwconv3x3 (BN folded) -> 1x1 -> GELU -> 1x1 -> layer_scale + residual.

    x: (Cs, N) stacked-modality, batch-packed tile.
    cvec: (Cs, 12) = [9 folded dw taps | dw/BN shift | b2 | layer_scale].
    w1b: (hid, Cs+1) block-diagonal [w1 | b1];  w2: (Cs, hid) block-diagonal.
    tap_m: (8, N) boundary masks (zero padding realized in-kernel)."""
    Cs = x.shape[0]
    acc = x * cvec[:, 4:5]                                    # center tap
    for i, (k, shift) in enumerate(tap_shifts):
        acc = acc + (pltpu.roll(x, shift=shift, axis=1)
                     * tap_m[i:i + 1]) * cvec[:, k:k + 1]
    y = acc + cvec[:, 9:10]                                   # dw bias + BN shift
    h = jnp.dot(w1b[:, :Cs], y, preferred_element_type=jnp.float32) + w1b[:, Cs:Cs + 1]
    h = _gelu_exact(h)
    z = jnp.dot(w2, h, preferred_element_type=jnp.float32) + cvec[:, 10:11]
    return x + cvec[:, 11:12] * z


def _cross_attn_block(x, wq, wk, wp, wf, avec, mrow_r, mrow_t, img_m, Bsub):
    """Both Cross_modal_attentions at once on the stacked (Cs, N) tile.

    wq/wp/wf block-diagonal, wk anti-diagonal (RGB keys from T rows and vice versa).
    avec (Cs, 6) = [bq | bk | w_g | bproj | bfinal | per-row scale].
    mrow_* (Cs, 1): per-modality row masks.  img_m (Bsub, N): per-image lane masks."""
    bq, bk, wg = avec[:, 0:1], avec[:, 1:2], avec[:, 2:3]
    bp, bf, scale = avec[:, 3:4], avec[:, 4:5], avec[:, 5:6]

    q = jnp.dot(wq, x, preferred_element_type=jnp.float32) + bq        # (Cs, N)
    k = jnp.dot(wk, x, preferred_element_type=jnp.float32) + bk        # (Cs, N)

    def l2_channels(v):
        # F.normalize(dim=-1): L2 over each modality's own channel segment (sublanes)
        v2 = v * v
        s_r = jnp.sum(v2 * mrow_r, axis=0, keepdims=True)              # (1, N)
        s_t = jnp.sum(v2 * mrow_t, axis=0, keepdims=True)
        inv = (mrow_r * jax.lax.rsqrt(jnp.maximum(s_r, 1e-24))
               + mrow_t * jax.lax.rsqrt(jnp.maximum(s_t, 1e-24)))
        return v * inv

    q = l2_channels(q)
    k = l2_channels(k)

    # query @ w_g: per-modality channel reduce (VPU multiply + sublane sum)
    wgq = wg * q
    qw_r = jnp.sum(wgq * mrow_r, axis=0, keepdims=True)                # (1, N)
    qw_t = jnp.sum(wgq * mrow_t, axis=0, keepdims=True)
    A = (mrow_r * qw_r + mrow_t * qw_t) * scale                        # (Cs, N)

    # F.normalize(A, dim=1): L2 over the sequence axis, per packed image
    A2 = A * A
    inv_seq = 0.0
    for b in range(Bsub):
        m = img_m[b:b + 1]                                             # (1, N)
        s = jnp.sum(A2 * m, axis=1, keepdims=True)                     # (Cs, 1)
        inv_seq = inv_seq + m * jax.lax.rsqrt(jnp.maximum(s, 1e-24))
    A = A * inv_seq

    # G = sum_n A*q per image, then broadcast back over that image's lanes
    aq = A * q
    G = 0.0
    for b in range(Bsub):
        m = img_m[b:b + 1]
        G = G + m * jnp.sum(aq * m, axis=1, keepdims=True)

    out = jnp.dot(wp, G * k, preferred_element_type=jnp.float32) + bp + q
    return jnp.dot(wf, out, preferred_element_type=jnp.float32) + bf


def _mlp_block(x, w1b, w2b):
    """BN (folded) -> 1x1 (C->4C) -> GELU -> 1x1 (4C->C), block-diagonal fused."""
    Cs = x.shape[0]
    hid = w1b.shape[0]
    h = jnp.dot(w1b[:, :Cs], x, preferred_element_type=jnp.float32) + w1b[:, Cs:Cs + 1]
    h = _gelu_exact(h)
    return jnp.dot(w2b[:, :hid], h, preferred_element_type=jnp.float32) + w2b[:, hid:hid + 1]


# ----------------------------- fused Pallas kernel -----------------------------

def _short_attention_kernel(x_ref, slab_a_ref, slab_b_ref, masks_ref, out_ref,
                            *, Cr, Ct, H, W, Bsub):
    Cs = Cr + Ct
    N = Bsub * H * W
    layout, _ = _slab_a_layout(Cr, Ct)

    sa = slab_a_ref[...]                  # (Cs, .) parameter slab
    sb = slab_b_ref[...]                  # (4Cs, .) parameter slab
    masks = masks_ref[...]                # (8 + Bsub, N)
    tap_m = masks[0:8]                    # dwconv boundary masks
    img_m = masks[8:8 + Bsub]             # per-image lane masks

    def seg(name):
        off, size = layout[name]
        return sa[:, off:off + size]

    tap_shifts = [(k, (-off) % N) for (k, off, _dy, _dx) in _tap_offsets(W)]

    ce0_w1b = sb[:, 0:Cs + 1]
    mlp_w1b = sb[:, Cs + 1:2 * (Cs + 1)]
    mrow = seg("mrow")
    mrow_r, mrow_t = mrow[:, 0:1], mrow[:, 1:2]
    ls = seg("ls")

    x = x_ref[...]                        # (Cs, N): stacked [rgb | t] channels

    # two (fused) ConvEncoders; intermediates never leave VMEM / vregs
    x = _conv_encoder_block(x, seg("ce0_cvec"), ce0_w1b, seg("ce0_w2"),
                            tap_shifts, tap_m)
    x = _conv_encoder_block(x, seg("ce1_cvec"), seg("ce1_w1b"), seg("ce1_w2"),
                            tap_shifts, tap_m)

    # both cross-modal attentions at once (block/anti-diagonal weights)
    attn = _cross_attn_block(x, seg("wq"), seg("wk"), seg("wp"), seg("wf"),
                             seg("avec"), mrow_r, mrow_t, img_m, Bsub)
    x = x + ls[:, 0:1] * attn

    # both MLPs at once
    x = x + ls[:, 1:2] * _mlp_block(x, mlp_w1b, seg("mlp_w2b"))

    out_ref[...] = x


# ----------------------------- pallas_call wrapper -----------------------------

def short_attention_forward(kparams, rgb_nchw, t_nchw, *, block_batch):
    """Inputs/outputs NCHW (PyTorch layout).  Per grid step the kernel works on a
    stacked, batch-packed (Cr+Ct, block_batch*H*W) lane-dense tile."""
    slab_a, slab_b, masks = kparams
    B, Cr, H, W = rgb_nchw.shape
    Ct = t_nchw.shape[1]
    HW = H * W
    Bsub = block_batch
    assert B % Bsub == 0
    G = B // Bsub
    N = Bsub * HW
    Cs = Cr + Ct

    def pack(a, C):                        # (B, C, HW) -> (G, C, Bsub*HW)
        a = a.reshape(G, Bsub, C, HW).astype(jnp.float32)
        return jnp.transpose(a, (0, 2, 1, 3)).reshape(G, C, N)

    x = jnp.concatenate([pack(rgb_nchw.reshape(B, Cr, HW), Cr),
                         pack(t_nchw.reshape(B, Ct, HW), Ct)], axis=1)   # (G, Cs, N)

    kernel = functools.partial(_short_attention_kernel,
                               Cr=Cr, Ct=Ct, H=H, W=W, Bsub=Bsub)

    def full_spec(a):
        return pl.BlockSpec(a.shape, lambda g, _nd=a.ndim: (0,) * _nd)

    # NOTE: current VMEM footprint is <2 MiB so the default scoped limit is fine on
    # v5e/v6e/v7x; at real SegFormer stage sizes re-derive tiling (spatial grid axis)
    # against v7x's 64 MiB VMEM and set vmem_limit_bytes accordingly.
    out = pl.pallas_call(
        kernel,
        out_shape=jax.ShapeDtypeStruct((G, Cs, N), jnp.float32),
        grid=(G,),
        in_specs=[pl.BlockSpec((None, Cs, N), lambda g: (g, 0, 0)),
                  full_spec(slab_a), full_spec(slab_b), full_spec(masks)],
        out_specs=pl.BlockSpec((None, Cs, N), lambda g: (g, 0, 0)),
        compiler_params=pltpu.CompilerParams(dimension_semantics=("parallel",)),
    )(x, slab_a, slab_b, masks)

    def unpack(y, C):                      # (G, C, Bsub*HW) -> (B, C, H, W)
        y = y.reshape(G, C, Bsub, HW)
        return jnp.transpose(y, (0, 2, 1, 3)).reshape(B, C, H, W)

    return unpack(out[:, :Cr, :], Cr), unpack(out[:, Cr:, :], Ct)


# ----------------------------- parameter construction --------------------------
# Raw parameters mirror the PyTorch module structure (weights stored (out, in)).

def _bn_params(key, dim):
    k0, k1, k2, k3 = jax.random.split(key, 4)
    return dict(
        gamma=(1.0 + 0.1 * jax.random.normal(k0, (dim,))).astype(jnp.float32),
        beta=(0.1 * jax.random.normal(k1, (dim,))).astype(jnp.float32),
        mean=(0.1 * jax.random.normal(k2, (dim,))).astype(jnp.float32),
        var=jax.random.uniform(k3, (dim,), minval=0.5, maxval=1.5).astype(jnp.float32),
    )


def _linear_init(key, out_dim, in_dim):
    kw, kb = jax.random.split(key)
    bound = 1.0 / math.sqrt(in_dim)
    w = jax.random.uniform(kw, (out_dim, in_dim), minval=-bound, maxval=bound)
    b = jax.random.uniform(kb, (out_dim,), minval=-bound, maxval=bound)
    return w.astype(jnp.float32), b.astype(jnp.float32)


def conv_encoder_params(key, dim, hidden):
    kdw, kdb, k1w, k1b, k2w, k2b, kbn = jax.random.split(key, 7)
    p = dict(
        dw_w=(0.1 * jax.random.normal(kdw, (dim, 3, 3))).astype(jnp.float32),
        dw_b=(0.1 * jax.random.normal(kdb, (dim,))).astype(jnp.float32),
        w1=(0.1 * jax.random.normal(k1w, (hidden, dim))).astype(jnp.float32),
        b1=(0.1 * jax.random.normal(k1b, (hidden,))).astype(jnp.float32),
        w2=(0.1 * jax.random.normal(k2w, (dim, hidden))).astype(jnp.float32),
        b2=(0.1 * jax.random.normal(k2b, (dim,))).astype(jnp.float32),
        ls=jnp.ones((dim,), jnp.float32),   # ConvEncoder layer_scale init = ones
    )
    p.update(_bn_params(kbn, dim))
    return p


def cross_attn_params(key, ca, cb):
    ks = jax.random.split(key, 5)
    wq, bq = _linear_init(ks[0], ca, ca)
    wk, bk = _linear_init(ks[1], ca, cb)
    wp, bp = _linear_init(ks[2], ca, ca)
    wf, bf = _linear_init(ks[3], ca, ca)
    wg = jax.random.normal(ks[4], (ca, 1)).astype(jnp.float32)
    return dict(wq=wq, bq=bq, wk=wk, bk=bk, wg=wg, wp=wp, bp=bp, wf=wf, bf=bf)


def mlp_params(key, dim):
    k1w, k1b, k2w, k2b, kbn = jax.random.split(key, 5)
    h = dim * 4
    p = dict(
        w1=(0.1 * jax.random.normal(k1w, (h, dim))).astype(jnp.float32),
        b1=(0.1 * jax.random.normal(k1b, (h,))).astype(jnp.float32),
        w2=(0.1 * jax.random.normal(k2w, (dim, h))).astype(jnp.float32),
        b2=(0.1 * jax.random.normal(k2b, (dim,))).astype(jnp.float32),
    )
    p.update(_bn_params(kbn, dim))
    return p


def short_attention_params(key, c_rgb, c_t, layer_scale_init_value=1e-5):
    ks = jax.random.split(key, 8)
    return dict(
        rgb_conv0=conv_encoder_params(ks[0], c_rgb, c_rgb * 4),
        t_conv0=conv_encoder_params(ks[1], c_t, c_t * 4),
        rgb_conv1=conv_encoder_params(ks[2], c_rgb, c_rgb),
        t_conv1=conv_encoder_params(ks[3], c_t, c_t),
        rgb_xattn=cross_attn_params(ks[4], c_rgb, c_t),
        t_xattn=cross_attn_params(ks[5], c_t, c_rgb),
        rgb_mlp=mlp_params(ks[6], c_rgb),
        t_mlp=mlp_params(ks[7], c_t),
        rgb_ls1=jnp.full((c_rgb,), layer_scale_init_value, jnp.float32),
        rgb_ls2=jnp.full((c_rgb,), layer_scale_init_value, jnp.float32),
        t_ls1=jnp.full((c_t,), layer_scale_init_value, jnp.float32),
        t_ls2=jnp.full((c_t,), layer_scale_init_value, jnp.float32),
    )


# --------------------- raw params -> fused kernel slabs ------------------------

def _bn_scale_shift(p):
    s = p["gamma"] / jnp.sqrt(p["var"] + _BN_EPS)
    return s, p["beta"] - p["mean"] * s


def _block_diag(a, b):
    ra, ca = a.shape
    rb, cb = b.shape
    return jnp.concatenate(
        [jnp.concatenate([a, jnp.zeros((ra, cb), a.dtype)], axis=1),
         jnp.concatenate([jnp.zeros((rb, ca), b.dtype), b], axis=1)], axis=0)


def _anti_diag(wk_r, wk_t):
    # RGB attention key from T channels, T attention key from RGB channels
    Cr, Ct = wk_r.shape
    return jnp.concatenate(
        [jnp.concatenate([jnp.zeros((Cr, Cr), wk_r.dtype), wk_r], axis=1),
         jnp.concatenate([wk_t, jnp.zeros((Ct, Ct), wk_t.dtype)], axis=1)], axis=0)


def _ce_cvec(p):
    s, b = _bn_scale_shift(p)
    dim = p["dw_w"].shape[0]
    dw = p["dw_w"].reshape(dim, 9) * s[:, None]               # BN scale folded into taps
    shift = (p["dw_b"] * s + b)[:, None]                      # dw bias + BN shift
    return jnp.concatenate([dw, shift, p["b2"][:, None], p["ls"][:, None]], axis=1)


def _prep_conv_encoder_fused(pr, pt):
    cvec = jnp.concatenate([_ce_cvec(pr), _ce_cvec(pt)], axis=0)            # (Cs, 12)
    w1 = _block_diag(pr["w1"], pt["w1"])                                    # (hid, Cs)
    b1 = jnp.concatenate([pr["b1"], pt["b1"]])[:, None]
    w1b = jnp.concatenate([w1, b1], axis=1)                                 # (hid, Cs+1)
    w2 = _block_diag(pr["w2"], pt["w2"])                                    # (Cs, hid)
    return cvec, w1b, w2


def _prep_attn_fused(pr, pt, Cr, Ct):
    col = lambda a, b: jnp.concatenate([a, b])[:, None]
    wq = _block_diag(pr["wq"], pt["wq"])
    wk = _anti_diag(pr["wk"], pt["wk"])
    wp = _block_diag(pr["wp"], pt["wp"])
    wf = _block_diag(pr["wf"], pt["wf"])
    scale = jnp.concatenate([jnp.full((Cr,), Cr ** -0.5, jnp.float32),
                             jnp.full((Ct,), Ct ** -0.5, jnp.float32)])[:, None]
    avec = jnp.concatenate([col(pr["bq"], pt["bq"]), col(pr["bk"], pt["bk"]),
                            jnp.concatenate([pr["wg"], pt["wg"]], axis=0),
                            col(pr["bp"], pt["bp"]), col(pr["bf"], pt["bf"]),
                            scale], axis=1)                                 # (Cs, 6)
    return wq, wk, wp, wf, avec


def _prep_mlp_fused(pr, pt):
    def fold(p):
        s, b = _bn_scale_shift(p)
        return p["w1"] * s[None, :], p["w1"] @ b + p["b1"]
    w1r, b1r = fold(pr)
    w1t, b1t = fold(pt)
    w1b = jnp.concatenate([_block_diag(w1r, w1t),
                           jnp.concatenate([b1r, b1t])[:, None]], axis=1)   # (4Cs, Cs+1)
    w2b = jnp.concatenate([_block_diag(pr["w2"], pt["w2"]),
                           jnp.concatenate([pr["b2"], pt["b2"]])[:, None]], axis=1)
    return w1b, w2b


def _build_mask_slab(H, W, Bsub):
    """Rows 0..7: dwconv boundary masks (tiled over packed images); rows 8..: per-image
    lane masks for the attention's sequence-axis reductions."""
    HW = H * W
    idx = np.arange(HW)
    hh, ww = idx // W, idx % W
    rows = []
    for _k, _off, dy, dx in _tap_offsets(W):
        valid = ((hh + dy >= 0) & (hh + dy < H) & (ww + dx >= 0) & (ww + dx < W))
        rows.append(np.tile(valid.astype(np.float32), Bsub))
    for b in range(Bsub):
        m = np.zeros((Bsub * HW,), np.float32)
        m[b * HW:(b + 1) * HW] = 1.0
        rows.append(m)
    return jnp.asarray(np.stack(rows, axis=0))                # (8 + Bsub, Bsub*HW)


def prep_kernel_params(params, H, W, block_batch):
    """Fold BN, fuse RGB/T branches block-diagonally, pack into 3 lane-dense slabs."""
    Cr = params["rgb_ls1"].shape[0]
    Ct = params["t_ls1"].shape[0]
    Cs = Cr + Ct

    ce0_cvec, ce0_w1b, ce0_w2 = _prep_conv_encoder_fused(params["rgb_conv0"],
                                                         params["t_conv0"])
    ce1_cvec, ce1_w1b, ce1_w2 = _prep_conv_encoder_fused(params["rgb_conv1"],
                                                         params["t_conv1"])
    wq, wk, wp, wf, avec = _prep_attn_fused(params["rgb_xattn"], params["t_xattn"],
                                            Cr, Ct)
    mlp_w1b, mlp_w2b = _prep_mlp_fused(params["rgb_mlp"], params["t_mlp"])
    ls = jnp.concatenate(
        [jnp.stack([params["rgb_ls1"], params["rgb_ls2"]], axis=1),
         jnp.stack([params["t_ls1"], params["t_ls2"]], axis=1)], axis=0)     # (Cs, 2)
    mrow = jnp.concatenate(
        [jnp.concatenate([jnp.ones((Cr, 1), jnp.float32),
                          jnp.zeros((Cr, 1), jnp.float32)], axis=1),
         jnp.concatenate([jnp.zeros((Ct, 1), jnp.float32),
                          jnp.ones((Ct, 1), jnp.float32)], axis=1)], axis=0)  # (Cs, 2)

    pieces = {"ce0_cvec": ce0_cvec, "ce0_w2": ce0_w2,
              "ce1_cvec": ce1_cvec, "ce1_w1b": ce1_w1b, "ce1_w2": ce1_w2,
              "wq": wq, "wk": wk, "wp": wp, "wf": wf, "avec": avec,
              "mlp_w2b": mlp_w2b, "ls": ls, "mrow": mrow}
    layout, la_cols = _slab_a_layout(Cr, Ct)
    for n, (_off, size) in layout.items():
        assert pieces[n].shape == (Cs, size), (n, pieces[n].shape, size)
    slab_a = jnp.concatenate([pieces[n].astype(jnp.float32) for n in layout], axis=1)
    assert slab_a.shape == (Cs, la_cols)

    slab_b = jnp.concatenate([ce0_w1b, mlp_w1b], axis=1).astype(jnp.float32)  # (4Cs, 2Cs+2)
    masks = _build_mask_slab(H, W, block_batch)
    return slab_a, slab_b, masks


# ----------------------------- pure-JAX reference ------------------------------
# Mirrors the PyTorch forward op-by-op on the raw (unfolded, unfused) parameters.

def _batchnorm_ref(x, p):
    return (x - p["mean"]) / jnp.sqrt(p["var"] + _BN_EPS) * p["gamma"] + p["beta"]


def _conv_encoder_ref(x, p):                      # x: (B, H, W, C)
    B, H, W, C = x.shape
    xpad = jnp.pad(x, ((0, 0), (1, 1), (1, 1), (0, 0)))
    acc = jnp.zeros_like(x)
    for ky in range(3):
        for kx in range(3):
            acc = acc + xpad[:, ky:ky + H, kx:kx + W, :] * p["dw_w"][:, ky, kx]
    y = _batchnorm_ref(acc + p["dw_b"], p)
    h = _gelu_exact(y @ p["w1"].T + p["b1"])
    z = h @ p["w2"].T + p["b2"]
    return x + p["ls"] * z


def _cross_attention_ref(a, b, p, scale):         # a: (B, N, Ca), b: (B, N, Cb)
    q = a @ p["wq"].T + p["bq"]
    k = b @ p["wk"].T + p["bk"]
    q = q / jnp.maximum(jnp.linalg.norm(q, axis=-1, keepdims=True), 1e-12)
    k = k / jnp.maximum(jnp.linalg.norm(k, axis=-1, keepdims=True), 1e-12)
    A = (q @ p["wg"]) * scale
    A = A / jnp.maximum(jnp.linalg.norm(A, axis=1, keepdims=True), 1e-12)
    G = jnp.sum(A * q, axis=1, keepdims=True)
    out = (G * k) @ p["wp"].T + p["bp"] + q
    return out @ p["wf"].T + p["bf"]


def _mlp_ref(x, p):                               # x: (B, H, W, C)
    y = _batchnorm_ref(x, p)
    h = _gelu_exact(y @ p["w1"].T + p["b1"])
    return h @ p["w2"].T + p["b2"]


def short_attention_forward_ref(params, rgb_nchw, t_nchw):
    rgb = jnp.transpose(rgb_nchw, (0, 2, 3, 1)).astype(jnp.float32)
    t = jnp.transpose(t_nchw, (0, 2, 3, 1)).astype(jnp.float32)
    B, H, W, Cr = rgb.shape
    Ct = t.shape[-1]
    rgb_x = _conv_encoder_ref(_conv_encoder_ref(rgb, params["rgb_conv0"]),
                              params["rgb_conv1"])
    t_x = _conv_encoder_ref(_conv_encoder_ref(t, params["t_conv0"]),
                            params["t_conv1"])
    rgb_copy = rgb_x
    rgb_x = rgb_x + params["rgb_ls1"] * _cross_attention_ref(
        rgb_x.reshape(B, H * W, Cr), t_x.reshape(B, H * W, Ct),
        params["rgb_xattn"], Cr ** -0.5).reshape(B, H, W, Cr)
    t_x = t_x + params["t_ls1"] * _cross_attention_ref(
        t_x.reshape(B, H * W, Ct), rgb_copy.reshape(B, H * W, Cr),
        params["t_xattn"], Ct ** -0.5).reshape(B, H, W, Ct)
    rgb_x = rgb_x + params["rgb_ls2"] * _mlp_ref(rgb_x, params["rgb_mlp"])
    t_x = t_x + params["t_ls2"] * _mlp_ref(t_x, params["t_mlp"])
    return jnp.transpose(rgb_x, (0, 3, 1, 2)), jnp.transpose(t_x, (0, 3, 1, 2))


# ----------------------------- main -------------------------------------------

if __name__ == "__main__":
    B, H, W = 4, 16, 16
    C_RGB, C_T = 8, 4

    key = jax.random.PRNGKey(0)
    k_p, k_rgb, k_t = jax.random.split(key, 3)

    # layer_scale_init_value=1.0 (module default is 1e-5) so the attention and MLP
    # branches contribute at O(1) and the numerical check really exercises them.
    params = short_attention_params(k_p, C_RGB, C_T, layer_scale_init_value=1.0)

    # Pack Bsub images per grid step; keep >= 2 parallel grid steps (v7x: 2 TCs).
    Bsub = B // 2 if (B % 2 == 0 and B >= 2) else B
    kparams = prep_kernel_params(params, H, W, Bsub)

    rgb = jax.random.normal(k_rgb, (B, C_RGB, H, W), dtype=jnp.float32)
    t = jax.random.normal(k_t, (B, C_T, H, W), dtype=jnp.float32)

    fwd = jax.jit(functools.partial(short_attention_forward, block_batch=Bsub))
    rgb_out, t_out = fwd(kparams, rgb, t)
    jax.block_until_ready((rgb_out, t_out))

    with jax.default_matmul_precision("float32"):
        rgb_ref, t_ref = short_attention_forward_ref(params, rgb, t)

    np.testing.assert_allclose(np.asarray(rgb_out), np.asarray(rgb_ref),
                               rtol=2e-3, atol=2e-3)
    np.testing.assert_allclose(np.asarray(t_out), np.asarray(t_ref),
                               rtol=2e-3, atol=2e-3)

    print("KERNEL_OK")
</pallas_src>

<mosaic_0001>
module attributes {stable_mosaic.version = 11 : i64} {
  func.func @_short_attention_kernel(%arg0: i32, %arg1: memref<1x12x512xf32, #tpu.memory_space<vmem>>, %arg2: memref<12x204xf32, #tpu.memory_space<vmem>>, %arg3: memref<48x26xf32, #tpu.memory_space<vmem>>, %arg4: memref<10x512xf32, #tpu.memory_space<vmem>>, %arg5: memref<1x12x512xf32, #tpu.memory_space<vmem>>) attributes {dimension_semantics = [#tpu.dimension_semantics<parallel>], iteration_bounds = array<i64: 2>, scalar_prefetch = 0 : i64, scratch_operands = 0 : i64, tpu.core_type = #tpu.core_type<tc>, window_params = [{transform_indices = @transform_0, window_bounds = array<i64: 1, 12, 512>}, {pipeline_mode = #tpu.pipeline_mode<synchronous>, transform_indices = @transform_1, window_bounds = array<i64: 12, 204>}, {pipeline_mode = #tpu.pipeline_mode<synchronous>, transform_indices = @transform_2, window_bounds = array<i64: 48, 26>}, {pipeline_mode = #tpu.pipeline_mode<synchronous>, transform_indices = @transform_3, window_bounds = array<i64: 10, 512>}, {transform_indices = @transform_4, window_bounds = array<i64: 1, 12, 512>}]} {
    %c0 = arith.constant 0 : index
    %c0_0 = arith.constant 0 : index
    %0 = vector.load %arg2[%c0, %c0_0] : memref<12x204xf32, #tpu.memory_space<vmem>>, vector<12x204xf32>
    %c0_1 = arith.constant 0 : index
    %c0_2 = arith.constant 0 : index
    %1 = vector.load %arg3[%c0_1, %c0_2] : memref<48x26xf32, #tpu.memory_space<vmem>>, vector<48x26xf32>
    %c0_3 = arith.constant 0 : index
    %c0_4 = arith.constant 0 : index
    %2 = vector.load %arg4[%c0_3, %c0_4] : memref<10x512xf32, #tpu.memory_space<vmem>>, vector<10x512xf32>
    %3 = vector.extract_strided_slice %2 {offsets = [0, 0], sizes = [8, 512], strides = [1, 1]} : vector<10x512xf32> to vector<8x512xf32>
    %4 = vector.extract_strided_slice %2 {offsets = [8, 0], sizes = [2, 512], strides = [1, 1]} : vector<10x512xf32> to vector<2x512xf32>
    %5 = vector.extract_strided_slice %1 {offsets = [0, 0], sizes = [48, 13], strides = [1, 1]} : vector<48x26xf32> to vector<48x13xf32>
    %6 = vector.extract_strided_slice %1 {offsets = [0, 13], sizes = [48, 13], strides = [1, 1]} : vector<48x26xf32> to vector<48x13xf32>
    %7 = vector.extract_strided_slice %0 {offsets = [0, 202], sizes = [12, 2], strides = [1, 1]} : vector<12x204xf32> to vector<12x2xf32>
    %8 = vector.extract_strided_slice %7 {offsets = [0, 0], sizes = [12, 1], strides = [1, 1]} : vector<12x2xf32> to vector<12x1xf32>
    %9 = vector.extract_strided_slice %7 {offsets = [0, 1], sizes = [12, 1], strides = [1, 1]} : vector<12x2xf32> to vector<12x1xf32>
    %10 = vector.extract_strided_slice %0 {offsets = [0, 200], sizes = [12, 2], strides = [1, 1]} : vector<12x204xf32> to vector<12x2xf32>
    %c0_5 = arith.constant 0 : index
    %c0_6 = arith.constant 0 : index
    %c0_7 = arith.constant 0 : index
    %11 = vector.load %arg1[%c0_5, %c0_6, %c0_7] : memref<1x12x512xf32, #tpu.memory_space<vmem>>, vector<1x12x512xf32>
    %12 = vector.shape_cast %11 : vector<1x12x512xf32> to vector<12x512xf32>
    %13 = vector.extract_strided_slice %0 {offsets = [0, 0], sizes = [12, 12], strides = [1, 1]} : vector<12x204xf32> to vector<12x12xf32>
    %14 = vector.extract_strided_slice %0 {offsets = [0, 12], sizes = [12, 48], strides = [1, 1]} : vector<12x204xf32> to vector<12x48xf32>
    %15 = vector.extract_strided_slice %13 {offsets = [0, 4], sizes = [12, 1], strides = [1, 1]} : vector<12x12xf32> to vector<12x1xf32>
    %16 = vector.broadcast %15 : vector<12x1xf32> to vector<12x512xf32>
    %17 = arith.mulf %12, %16 : vector<12x512xf32>
    %c17_i32 = arith.constant 17 : i32
    %18 = tpu.dynamic_rotate %12 by %c17_i32 dim 1 : vector<12x512xf32>, i32 -> vector<12x512xf32>
    %19 = vector.extract_strided_slice %3 {offsets = [0, 0], sizes = [1, 512], strides = [1, 1]} : vector<8x512xf32> to vector<1x512xf32>
    %20 = vector.broadcast %19 : vector<1x512xf32> to vector<12x512xf32>
    %21 = arith.mulf %18, %20 : vector<12x512xf32>
    %22 = vector.extract_strided_slice %13 {offsets = [0, 0], sizes = [12, 1], strides = [1, 1]} : vector<12x12xf32> to vector<12x1xf32>
    %23 = vector.broadcast %22 : vector<12x1xf32> to vector<12x512xf32>
    %24 = arith.mulf %21, %23 : vector<12x512xf32>
    %25 = arith.addf %17, %24 : vector<12x512xf32>
    %c16_i32 = arith.constant 16 : i32
    %26 = tpu.dynamic_rotate %12 by %c16_i32 dim 1 : vector<12x512xf32>, i32 -> vector<12x512xf32>
    %27 = vector.extract_strided_slice %3 {offsets = [1, 0], sizes = [1, 512], strides = [1, 1]} : vector<8x512xf32> to vector<1x512xf32>
    %28 = vector.broadcast %27 : vector<1x512xf32> to vector<12x512xf32>
    %29 = arith.mulf %26, %28 : vector<12x512xf32>
    %30 = vector.extract_strided_slice %13 {offsets = [0, 1], sizes = [12, 1], strides = [1, 1]} : vector<12x12xf32> to vector<12x1xf32>
    %31 = vector.broadcast %30 : vector<12x1xf32> to vector<12x512xf32>
    %32 = arith.mulf %29, %31 : vector<12x512xf32>
    %33 = arith.addf %25, %32 : vector<12x512xf32>
    %c15_i32 = arith.constant 15 : i32
    %34 = tpu.dynamic_rotate %12 by %c15_i32 dim 1 : vector<12x512xf32>, i32 -> vector<12x512xf32>
    %35 = vector.extract_strided_slice %3 {offsets = [2, 0], sizes = [1, 512], strides = [1, 1]} : vector<8x512xf32> to vector<1x512xf32>
    %36 = vector.broadcast %35 : vector<1x512xf32> to vector<12x512xf32>
    %37 = arith.mulf %34, %36 : vector<12x512xf32>
    %38 = vector.extract_strided_slice %13 {offsets = [0, 2], sizes = [12, 1], strides = [1, 1]} : vector<12x12xf32> to vector<12x1xf32>
    %39 = vector.broadcast %38 : vector<12x1xf32> to vector<12x512xf32>
    %40 = arith.mulf %37, %39 : vector<12x512xf32>
    %41 = arith.addf %33, %40 : vector<12x512xf32>
    %c1_i32 = arith.constant 1 : i32
    %42 = tpu.dynamic_rotate %12 by %c1_i32 dim 1 : vector<12x512xf32>, i32 -> vector<12x512xf32>
    %43 = vector.extract_strided_slice %3 {offsets = [3, 0], sizes = [1, 512], strides = [1, 1]} : vector<8x512xf32> to vector<1x512xf32>
    %44 = vector.broadcast %43 : vector<1x512xf32> to vector<12x512xf32>
    %45 = arith.mulf %42, %44 : vector<12x512xf32>
    %46 = vector.extract_strided_slice %13 {offsets = [0, 3], sizes = [12, 1], strides = [1, 1]} : vector<12x12xf32> to vector<12x1xf32>
    %47 = vector.broadcast %46 : vector<12x1xf32> to vector<12x512xf32>
    %48 = arith.mulf %45, %47 : vector<12x512xf32>
    %49 = arith.addf %41, %48 : vector<12x512xf32>
    %c511_i32 = arith.constant 511 : i32
    %50 = tpu.dynamic_rotate %12 by %c511_i32 dim 1 : vector<12x512xf32>, i32 -> vector<12x512xf32>
    %51 = vector.extract_strided_slice %3 {offsets = [4, 0], sizes = [1, 512], strides = [1, 1]} : vector<8x512xf32> to vector<1x512xf32>
    %52 = vector.broadcast %51 : vector<1x512xf32> to vector<12x512xf32>
    %53 = arith.mulf %50, %52 : vector<12x512xf32>
    %54 = vector.extract_strided_slice %13 {offsets = [0, 5], sizes = [12, 1], strides = [1, 1]} : vector<12x12xf32> to vector<12x1xf32>
    %55 = vector.broadcast %54 : vector<12x1xf32> to vector<12x512xf32>
    %56 = arith.mulf %53, %55 : vector<12x512xf32>
    %57 = arith.addf %49, %56 : vector<12x512xf32>
    %c497_i32 = arith.constant 497 : i32
    %58 = tpu.dynamic_rotate %12 by %c497_i32 dim 1 : vector<12x512xf32>, i32 -> vector<12x512xf32>
    %59 = vector.extract_strided_slice %3 {offsets = [5, 0], sizes = [1, 512], strides = [1, 1]} : vector<8x512xf32> to vector<1x512xf32>
    %60 = vector.broadcast %59 : vector<1x512xf32> to vector<12x512xf32>
    %61 = arith.mulf %58, %60 : vector<12x512xf32>
    %62 = vector.extract_strided_slice %13 {offsets = [0, 6], sizes = [12, 1], strides = [1, 1]} : vector<12x12xf32> to vector<12x1xf32>
    %63 = vector.broadcast %62 : vector<12x1xf32> to vector<12x512xf32>
    %64 = arith.mulf %61, %63 : vector<12x512xf32>
    %65 = arith.addf %57, %64 : vector<12x512xf32>
    %c496_i32 = arith.constant 496 : i32
    %66 = tpu.dynamic_rotate %12 by %c496_i32 dim 1 : vector<12x512xf32>, i32 -> vector<12x512xf32>
    %67 = vector.extract_strided_slice %3 {offsets = [6, 0], sizes = [1, 512], strides = [1, 1]} : vector<8x512xf32> to vector<1x512xf32>
    %68 = vector.broadcast %67 : vector<1x512xf32> to vector<12x512xf32>
    %69 = arith.mulf %66, %68 : vector<12x512xf32>
    %70 = vector.extract_strided_slice %13 {offsets = [0, 7], sizes = [12, 1], strides = [1, 1]} : vector<12x12xf32> to vector<12x1xf32>
    %71 = vector.broadcast %70 : vector<12x1xf32> to vector<12x512xf32>
    %72 = arith.mulf %69, %71 : vector<12x512xf32>
    %73 = arith.addf %65, %72 : vector<12x512xf32>
    %c495_i32 = arith.constant 495 : i32
    %74 = tpu.dynamic_rotate %12 by %c495_i32 dim 1 : vector<12x512xf32>, i32 -> vector<12x512xf32>
    %75 = vector.extract_strided_slice %3 {offsets = [7, 0], sizes = [1, 512], strides = [1, 1]} : vector<8x512xf32> to vector<1x512xf32>
    %76 = vector.broadcast %75 : vector<1x512xf32> to vector<12x512xf32>
    %77 = arith.mulf %74, %76 : vector<12x512xf32>
    %78 = vector.extract_strided_slice %13 {offsets = [0, 8], sizes = [12, 1], strides = [1, 1]} : vector<12x12xf32> to vector<12x1xf32>
    %79 = vector.broadcast %78 : vector<12x1xf32> to vector<12x512xf32>
    %80 = arith.mulf %77, %79 : vector<12x512xf32>
    %81 = arith.addf %73, %80 : vector<12x512xf32>
    %82 = vector.extract_strided_slice %13 {offsets = [0, 9], sizes = [12, 1], strides = [1, 1]} : vector<12x12xf32> to vector<12x1xf32>
    %83 = vector.broadcast %82 : vector<12x1xf32> to vector<12x512xf32>
    %84 = arith.addf %81, %83 : vector<12x512xf32>
    %85 = vector.extract_strided_slice %5 {offsets = [0, 0], sizes = [48, 12], strides = [1, 1]} : vector<48x13xf32> to vector<48x12xf32>
    %cst = arith.constant dense<0.000000e+00> : vector<48x512xf32>
    %86 = tpu.matmul %85, %84, %cst {dimension_numbers = #tpu.dot_dimension_numbers<[1], [0], [0], [1], [0, 0, 1, 1], [], []>} : vector<48x12xf32>, vector<12x512xf32>, vector<48x512xf32> -> vector<48x512xf32>
    %87 = vector.extract_strided_slice %5 {offsets = [0, 12], sizes = [48, 1], strides = [1, 1]} : vector<48x13xf32> to vector<48x1xf32>
    %88 = vector.broadcast %87 : vector<48x1xf32> to vector<48x512xf32>
    %89 = arith.addf %86, %88 : vector<48x512xf32>
    %cst_8 = arith.constant 5.000000e-01 : f32
    %90 = vector.broadcast %cst_8 : f32 to vector<48x512xf32>
    %91 = arith.mulf %90, %89 : vector<48x512xf32>
    %cst_9 = arith.constant 0.707106769 : f32
    %92 = vector.broadcast %cst_9 : f32 to vector<48x512xf32>
    %93 = arith.mulf %89, %92 : vector<48x512xf32>
    %94 = math.erf %93 : vector<48x512xf32>
    %cst_10 = arith.constant 1.000000e+00 : f32
    %95 = vector.broadcast %cst_10 : f32 to vector<48x512xf32>
    %96 = arith.addf %95, %94 : vector<48x512xf32>
    %97 = arith.mulf %91, %96 : vector<48x512xf32>
    %cst_11 = arith.constant dense<0.000000e+00> : vector<12x512xf32>
    %98 = tpu.matmul %14, %97, %cst_11 {dimension_numbers = #tpu.dot_dimension_numbers<[1], [0], [0], [1], [0, 0, 1, 1], [], []>} : vector<12x48xf32>, vector<48x512xf32>, vector<12x512xf32> -> vector<12x512xf32>
    %99 = vector.extract_strided_slice %13 {offsets = [0, 10], sizes = [12, 1], strides = [1, 1]} : vector<12x12xf32> to vector<12x1xf32>
    %100 = vector.broadcast %99 : vector<12x1xf32> to vector<12x512xf32>
    %101 = arith.addf %98, %100 : vector<12x512xf32>
    %102 = vector.extract_strided_slice %13 {offsets = [0, 11], sizes = [12, 1], strides = [1, 1]} : vector<12x12xf32> to vector<12x1xf32>
    %103 = vector.broadcast %102 : vector<12x1xf32> to vector<12x512xf32>
    %104 = arith.mulf %103, %101 : vector<12x512xf32>
    %105 = arith.addf %12, %104 : vector<12x512xf32>
    %106 = vector.extract_strided_slice %0 {offsets = [0, 60], sizes = [12, 12], strides = [1, 1]} : vector<12x204xf32> to vector<12x12xf32>
    %107 = vector.extract_strided_slice %0 {offsets = [0, 72], sizes = [12, 13], strides = [1, 1]} : vector<12x204xf32> to vector<12x13xf32>
    %108 = vector.extract_strided_slice %0 {offsets = [0, 85], sizes = [12, 12], strides = [1, 1]} : vector<12x204xf32> to vector<12x12xf32>
    %109 = vector.extract_strided_slice %106 {offsets = [0, 4], sizes = [12, 1], strides = [1, 1]} : vector<12x12xf32> to vector<12x1xf32>
    %110 = vector.broadcast %109 : vector<12x1xf32> to vector<12x512xf32>
    %111 = arith.mulf %105, %110 : vector<12x512xf32>
    %c17_i32_12 = arith.constant 17 : i32
    %112 = tpu.dynamic_rotate %105 by %c17_i32_12 dim 1 : vector<12x512xf32>, i32 -> vector<12x512xf32>
    %113 = vector.extract_strided_slice %3 {offsets = [0, 0], sizes = [1, 512], strides = [1, 1]} : vector<8x512xf32> to vector<1x512xf32>
    %114 = vector.broadcast %113 : vector<1x512xf32> to vector<12x512xf32>
    %115 = arith.mulf %112, %114 : vector<12x512xf32>
    %116 = vector.extract_strided_slice %106 {offsets = [0, 0], sizes = [12, 1], strides = [1, 1]} : vector<12x12xf32> to vector<12x1xf32>
    %117 = vector.broadcast %116 : vector<12x1xf32> to vector<12x512xf32>
    %118 = arith.mulf %115, %117 : vector<12x512xf32>
    %119 = arith.addf %111, %118 : vector<12x512xf32>
    %c16_i32_13 = arith.constant 16 : i32
    %120 = tpu.dynamic_rotate %105 by %c16_i32_13 dim 1 : vector<12x512xf32>, i32 -> vector<12x512xf32>
    %121 = vector.extract_strided_slice %3 {offsets = [1, 0], sizes = [1, 512], strides = [1, 1]} : vector<8x512xf32> to vector<1x512xf32>
    %122 = vector.broadcast %121 : vector<1x512xf32> to vector<12x512xf32>
    %123 = arith.mulf %120, %122 : vector<12x512xf32>
    %124 = vector.extract_strided_slice %106 {offsets = [0, 1], sizes = [12, 1], strides = [1, 1]} : vector<12x12xf32> to vector<12x1xf32>
    %125 = vector.broadcast %124 : vector<12x1xf32> to vector<12x512xf32>
    %126 = arith.mulf %123, %125 : vector<12x512xf32>
    %127 = arith.addf %119, %126 : vector<12x512xf32>
    %c15_i32_14 = arith.constant 15 : i32
    %128 = tpu.dynamic_rotate %105 by %c15_i32_14 dim 1 : vector<12x512xf32>, i32 -> vector<12x512xf32>
    %129 = vector.extract_strided_slice %3 {offsets = [2, 0], sizes = [1, 512], strides = [1, 1]} : vector<8x512xf32> to vector<1x512xf32>
    %130 = vector.broadcast %129 : vector<1x512xf32> to vector<12x512xf32>
    %131 = arith.mulf %128, %130 : vector<12x512xf32>
    %132 = vector.extract_strided_slice %106 {offsets = [0, 2], sizes = [12, 1], strides = [1, 1]} : vector<12x12xf32> to vector<12x1xf32>
    %133 = vector.broadcast %132 : vector<12x1xf32> to vector<12x512xf32>
    %134 = arith.mulf %131, %133 : vector<12x512xf32>
    %135 = arith.addf %127, %134 : vector<12x512xf32>
    %c1_i32_15 = arith.constant 1 : i32
    %136 = tpu.dynamic_rotate %105 by %c1_i32_15 dim 1 : vector<12x512xf32>, i32 -> vector<12x512xf32>
    %137 = vector.extract_strided_slice %3 {offsets = [3, 0], sizes = [1, 512], strides = [1, 1]} : vector<8x512xf32> to vector<1x512xf32>
    %138 = vector.broadcast %137 : vector<1x512xf32> to vector<12x512xf32>
    %139 = arith.mulf %136, %138 : vector<12x512xf32>
    %140 = vector.extract_strided_slice %106 {offsets = [0, 3], sizes = [12, 1], strides = [1, 1]} : vector<12x12xf32> to vector<12x1xf32>
    %141 = vector.broadcast %140 : vector<12x1xf32> to vector<12x512xf32>
    %142 = arith.mulf %139, %141 : vector<12x512xf32>
    %143 = arith.addf %135, %142 : vector<12x512xf32>
    %c511_i32_16 = arith.constant 511 : i32
    %144 = tpu.dynamic_rotate %105 by %c511_i32_16 dim 1 : vector<12x512xf32>, i32 -> vector<12x512xf32>
    %145 = vector.extract_strided_slice %3 {offsets = [4, 0], sizes = [1, 512], strides = [1, 1]} : vector<8x512xf32> to vector<1x512xf32>
    %146 = vector.broadcast %145 : vector<1x512xf32> to vector<12x512xf32>
    %147 = arith.mulf %144, %146 : vector<12x512xf32>
    %148 = vector.extract_strided_slice %106 {offsets = [0, 5], sizes = [12, 1], strides = [1, 1]} : vector<12x12xf32> to vector<12x1xf32>
    %149 = vector.broadcast %148 : vector<12x1xf32> to vector<12x512xf32>
    %150 = arith.mulf %147, %149 : vector<12x512xf32>
    %151 = arith.addf %143, %150 : vector<12x512xf32>
    %c497_i32_17 = arith.constant 497 : i32
    %152 = tpu.dynamic_rotate %105 by %c497_i32_17 dim 1 : vector<12x512xf32>, i32 -> vector<12x512xf32>
    %153 = vector.extract_strided_slice %3 {offsets = [5, 0], sizes = [1, 512], strides = [1, 1]} : vector<8x512xf32> to vector<1x512xf32>
    %154 = vector.broadcast %153 : vector<1x512xf32> to vector<12x512xf32>
    %155 = arith.mulf %152, %154 : vector<12x512xf32>
    %156 = vector.extract_strided_slice %106 {offsets = [0, 6], sizes = [12, 1], strides = [1, 1]} : vector<12x12xf32> to vector<12x1xf32>
    %157 = vector.broadcast %156 : vector<12x1xf32> to vector<12x512xf32>
    %158 = arith.mulf %155, %157 : vector<12x512xf32>
    %159 = arith.addf %151, %158 : vector<12x512xf32>
    %c496_i32_18 = arith.constant 496 : i32
    %160 = tpu.dynamic_rotate %105 by %c496_i32_18 dim 1 : vector<12x512xf32>, i32 -> vector<12x512xf32>
    %161 = vector.extract_strided_slice %3 {offsets = [6, 0], sizes = [1, 512], strides = [1, 1]} : vector<8x512xf32> to vector<1x512xf32>
    %162 = vector.broadcast %161 : vector<1x512xf32> to vector<12x512xf32>
    %163 = arith.mulf %160, %162 : vector<12x512xf32>
    %164 = vector.extract_strided_slice %106 {offsets = [0, 7], sizes = [12, 1], strides = [1, 1]} : vector<12x12xf32> to vector<12x1xf32>
    %165 = vector.broadcast %164 : vector<12x1xf32> to vector<12x512xf32>
    %166 = arith.mulf %163, %165 : vector<12x512xf32>
    %167 = arith.addf %159, %166 : vector<12x512xf32>
    %c495_i32_19 = arith.constant 495 : i32
    %168 = tpu.dynamic_rotate %105 by %c495_i32_19 dim 1 : vector<12x512xf32>, i32 -> vector<12x512xf32>
    %169 = vector.extract_strided_slice %3 {offsets = [7, 0], sizes = [1, 512], strides = [1, 1]} : vector<8x512xf32> to vector<1x512xf32>
    %170 = vector.broadcast %169 : vector<1x512xf32> to vector<12x512xf32>
    %171 = arith.mulf %168, %170 : vector<12x512xf32>
    %172 = vector.extract_strided_slice %106 {offsets = [0, 8], sizes = [12, 1], strides = [1, 1]} : vector<12x12xf32> to vector<12x1xf32>
    %173 = vector.broadcast %172 : vector<12x1xf32> to vector<12x512xf32>
    %174 = arith.mulf %171, %173 : vector<12x512xf32>
    %175 = arith.addf %167, %174 : vector<12x512xf32>
    %176 = vector.extract_strided_slice %106 {offsets = [0, 9], sizes = [12, 1], strides = [1, 1]} : vector<12x12xf32> to vector<12x1xf32>
    %177 = vector.broadcast %176 : vector<12x1xf32> to vector<12x512xf32>
    %178 = arith.addf %175, %177 : vector<12x512xf32>
    %179 = vector.extract_strided_slice %107 {offsets = [0, 0], sizes = [12, 12], strides = [1, 1]} : vector<12x13xf32> to vector<12x12xf32>
    %cst_20 = arith.constant dense<0.000000e+00> : vector<12x512xf32>
    %180 = tpu.matmul %179, %178, %cst_20 {dimension_numbers = #tpu.dot_dimension_numbers<[1], [0], [0], [1], [0, 0, 1, 1], [], []>} : vector<12x12xf32>, vector<12x512xf32>, vector<12x512xf32> -> vector<12x512xf32>
    %181 = vector.extract_strided_slice %107 {offsets = [0, 12], sizes = [12, 1], strides = [1, 1]} : vector<12x13xf32> to vector<12x1xf32>
    %182 = vector.broadcast %181 : vector<12x1xf32> to vector<12x512xf32>
    %183 = arith.addf %180, %182 : vector<12x512xf32>
    %cst_21 = arith.constant 5.000000e-01 : f32
    %184 = vector.broadcast %cst_21 : f32 to vector<12x512xf32>
    %185 = arith.mulf %184, %183 : vector<12x512xf32>
    %cst_22 = arith.constant 0.707106769 : f32
    %186 = vector.broadcast %cst_22 : f32 to vector<12x512xf32>
    %187 = arith.mulf %183, %186 : vector<12x512xf32>
    %188 = math.erf %187 : vector<12x512xf32>
    %cst_23 = arith.constant 1.000000e+00 : f32
    %189 = vector.broadcast %cst_23 : f32 to vector<12x512xf32>
    %190 = arith.addf %189, %188 : vector<12x512xf32>
    %191 = arith.mulf %185, %190 : vector<12x512xf32>
    %cst_24 = arith.constant dense<0.000000e+00> : vector<12x512xf32>
    %192 = tpu.matmul %108, %191, %cst_24 {dimension_numbers = #tpu.dot_dimension_numbers<[1], [0], [0], [1], [0, 0, 1, 1], [], []>} : vector<12x12xf32>, vector<12x512xf32>, vector<12x512xf32> -> vector<12x512xf32>
    %193 = vector.extract_strided_slice %106 {offsets = [0, 10], sizes = [12, 1], strides = [1, 1]} : vector<12x12xf32> to vector<12x1xf32>
    %194 = vector.broadcast %193 : vector<12x1xf32> to vector<12x512xf32>
    %195 = arith.addf %192, %194 : vector<12x512xf32>
    %196 = vector.extract_strided_slice %106 {offsets = [0, 11], sizes = [12, 1], strides = [1, 1]} : vector<12x12xf32> to vector<12x1xf32>
    %197 = vector.broadcast %196 : vector<12x1xf32> to vector<12x512xf32>
    %198 = arith.mulf %197, %195 : vector<12x512xf32>
    %199 = arith.addf %105, %198 : vector<12x512xf32>
    %200 = vector.extract_strided_slice %0 {offsets = [0, 97], sizes = [12, 12], strides = [1, 1]} : vector<12x204xf32> to vector<12x12xf32>
    %201 = vector.extract_strided_slice %0 {offsets = [0, 109], sizes = [12, 12], strides = [1, 1]} : vector<12x204xf32> to vector<12x12xf32>
    %202 = vector.extract_strided_slice %0 {offsets = [0, 121], sizes = [12, 12], strides = [1, 1]} : vector<12x204xf32> to vector<12x12xf32>
    %203 = vector.extract_strided_slice %0 {offsets = [0, 133], sizes = [12, 12], strides = [1, 1]} : vector<12x204xf32> to vector<12x12xf32>
    %204 = vector.extract_strided_slice %0 {offsets = [0, 145], sizes = [12, 6], strides = [1, 1]} : vector<12x204xf32> to vector<12x6xf32>
    %205 = vector.extract_strided_slice %204 {offsets = [0, 0], sizes = [12, 1], strides = [1, 1]} : vector<12x6xf32> to vector<12x1xf32>
    %206 = vector.extract_strided_slice %204 {offsets = [0, 1], sizes = [12, 1], strides = [1, 1]} : vector<12x6xf32> to vector<12x1xf32>
    %207 = vector.extract_strided_slice %204 {offsets = [0, 2], sizes = [12, 1], strides = [1, 1]} : vector<12x6xf32> to vector<12x1xf32>
    %208 = vector.extract_strided_slice %204 {offsets = [0, 3], sizes = [12, 1], strides = [1, 1]} : vector<12x6xf32> to vector<12x1xf32>
    %209 = vector.extract_strided_slice %204 {offsets = [0, 4], sizes = [12, 1], strides = [1, 1]} : vector<12x6xf32> to vector<12x1xf32>
    %210 = vector.extract_strided_slice %204 {offsets = [0, 5], sizes = [12, 1], strides = [1, 1]} : vector<12x6xf32> to vector<12x1xf32>
    %cst_25 = arith.constant dense<0.000000e+00> : vector<12x512xf32>
    %211 = tpu.matmul %200, %199, %cst_25 {dimension_numbers = #tpu.dot_dimension_numbers<[1], [0], [0], [1], [0, 0, 1, 1], [], []>} : vector<12x12xf32>, vector<12x512xf32>, vector<12x512xf32> -> vector<12x512xf32>
    %212 = vector.broadcast %205 : vector<12x1xf32> to vector<12x512xf32>
    %213 = arith.addf %211, %212 : vector<12x512xf32>
    %cst_26 = arith.constant dense<0.000000e+00> : vector<12x512xf32>
    %214 = tpu.matmul %201, %199, %cst_26 {dimension_numbers = #tpu.dot_dimension_numbers<[1], [0], [0], [1], [0, 0, 1, 1], [], []>} : vector<12x12xf32>, vector<12x512xf32>, vector<12x512xf32> -> vector<12x512xf32>
    %215 = vector.broadcast %206 : vector<12x1xf32> to vector<12x512xf32>
    %216 = arith.addf %214, %215 : vector<12x512xf32>
    %217 = arith.mulf %213, %213 : vector<12x512xf32>
    %218 = vector.broadcast %8 : vector<12x1xf32> to vector<12x512xf32>
    %219 = arith.mulf %217, %218 : vector<12x512xf32>
    %cst_27 = arith.constant dense<0.000000e+00> : vector<512xf32>
    %220 = vector.multi_reduction <add>, %219, %cst_27 [0] : vector<12x512xf32> to vector<512xf32>
    %221 = vector.shape_cast %220 : vector<512xf32> to vector<1x512xf32>
    %222 = vector.broadcast %9 : vector<12x1xf32> to vector<12x512xf32>
    %223 = arith.mulf %217, %222 : vector<12x512xf32>
    %cst_28 = arith.constant dense<0.000000e+00> : vector<512xf32>
    %224 = vector.multi_reduction <add>, %223, %cst_28 [0] : vector<12x512xf32> to vector<512xf32>
    %225 = vector.shape_cast %224 : vector<512xf32> to vector<1x512xf32>
    %cst_29 = arith.constant 1.000000e-24 : f32
    %226 = vector.broadcast %cst_29 : f32 to vector<1x512xf32>
    %227 = arith.maximumf %221, %226 : vector<1x512xf32>
    %228 = math.rsqrt %227 : vector<1x512xf32>
    %229 = vector.broadcast %8 : vector<12x1xf32> to vector<12x512xf32>
    %230 = vector.broadcast %228 : vector<1x512xf32> to vector<12x512xf32>
    %231 = arith.mulf %229, %230 : vector<12x512xf32>
    %cst_30 = arith.constant 1.000000e-24 : f32
    %232 = vector.broadcast %cst_30 : f32 to vector<1x512xf32>
    %233 = arith.maximumf %225, %232 : vector<1x512xf32>
    %234 = math.rsqrt %233 : vector<1x512xf32>
    %235 = vector.broadcast %9 : vector<12x1xf32> to vector<12x512xf32>
    %236 = vector.broadcast %234 : vector<1x512xf32> to vector<12x512xf32>
    %237 = arith.mulf %235, %236 : vector<12x512xf32>
    %238 = arith.addf %231, %237 : vector<12x512xf32>
    %239 = arith.mulf %213, %238 : vector<12x512xf32>
    %240 = arith.mulf %216, %216 : vector<12x512xf32>
    %241 = vector.broadcast %8 : vector<12x1xf32> to vector<12x512xf32>
    %242 = arith.mulf %240, %241 : vector<12x512xf32>
    %cst_31 = arith.constant dense<0.000000e+00> : vector<512xf32>
    %243 = vector.multi_reduction <add>, %242, %cst_31 [0] : vector<12x512xf32> to vector<512xf32>
    %244 = vector.shape_cast %243 : vector<512xf32> to vector<1x512xf32>
    %245 = vector.broadcast %9 : vector<12x1xf32> to vector<12x512xf32>
    %246 = arith.mulf %240, %245 : vector<12x512xf32>
    %cst_32 = arith.constant dense<0.000000e+00> : vector<512xf32>
    %247 = vector.multi_reduction <add>, %246, %cst_32 [0] : vector<12x512xf32> to vector<512xf32>
    %248 = vector.shape_cast %247 : vector<512xf32> to vector<1x512xf32>
    %cst_33 = arith.constant 1.000000e-24 : f32
    %249 = vector.broadcast %cst_33 : f32 to vector<1x512xf32>
    %250 = arith.maximumf %244, %249 : vector<1x512xf32>
    %251 = math.rsqrt %250 : vector<1x512xf32>
    %252 = vector.broadcast %8 : vector<12x1xf32> to vector<12x512xf32>
    %253 = vector.broadcast %251 : vector<1x512xf32> to vector<12x512xf32>
    %254 = arith.mulf %252, %253 : vector<12x512xf32>
    %cst_34 = arith.constant 1.000000e-24 : f32
    %255 = vector.broadcast %cst_34 : f32 to vector<1x512xf32>
    %256 = arith.maximumf %248, %255 : vector<1x512xf32>
    %257 = math.rsqrt %256 : vector<1x512xf32>
    %258 = vector.broadcast %9 : vector<12x1xf32> to vector<12x512xf32>
    %259 = vector.broadcast %257 : vector<1x512xf32> to vector<12x512xf32>
    %260 = arith.mulf %258, %259 : vector<12x512xf32>
    %261 = arith.addf %254, %260 : vector<12x512xf32>
    %262 = arith.mulf %216, %261 : vector<12x512xf32>
    %263 = vector.broadcast %207 : vector<12x1xf32> to vector<12x512xf32>
    %264 = arith.mulf %263, %239 : vector<12x512xf32>
    %265 = vector.broadcast %8 : vector<12x1xf32> to vector<12x512xf32>
    %266 = arith.mulf %264, %265 : vector<12x512xf32>
    %cst_35 = arith.constant dense<0.000000e+00> : vector<512xf32>
    %267 = vector.multi_reduction <add>, %266, %cst_35 [0] : vector<12x512xf32> to vector<512xf32>
    %268 = vector.shape_cast %267 : vector<512xf32> to vector<1x512xf32>
    %269 = vector.broadcast %9 : vector<12x1xf32> to vector<12x512xf32>
    %270 = arith.mulf %264, %269 : vector<12x512xf32>
    %cst_36 = arith.constant dense<0.000000e+00> : vector<512xf32>
    %271 = vector.multi_reduction <add>, %270, %cst_36 [0] : vector<12x512xf32> to vector<512xf32>
    %272 = vector.shape_cast %271 : vector<512xf32> to vector<1x512xf32>
    %273 = vector.broadcast %8 : vector<12x1xf32> to vector<12x512xf32>
    %274 = vector.broadcast %268 : vector<1x512xf32> to vector<12x512xf32>
    %275 = arith.mulf %273, %274 : vector<12x512xf32>
    %276 = vector.broadcast %9 : vector<12x1xf32> to vector<12x512xf32>
    %277 = vector.broadcast %272 : vector<1x512xf32> to vector<12x512xf32>
    %278 = arith.mulf %276, %277 : vector<12x512xf32>
    %279 = arith.addf %275, %278 : vector<12x512xf32>
    %280 = vector.broadcast %210 : vector<12x1xf32> to vector<12x512xf32>
    %281 = arith.mulf %279, %280 : vector<12x512xf32>
    %282 = arith.mulf %281, %281 : vector<12x512xf32>
    %283 = vector.extract_strided_slice %4 {offsets = [0, 0], sizes = [1, 512], strides = [1, 1]} : vector<2x512xf32> to vector<1x512xf32>
    %284 = vector.broadcast %283 : vector<1x512xf32> to vector<12x512xf32>
    %285 = arith.mulf %282, %284 : vector<12x512xf32>
    %cst_37 = arith.constant dense<0.000000e+00> : vector<12xf32>
    %286 = vector.multi_reduction <add>, %285, %cst_37 [1] : vector<12x512xf32> to vector<12xf32>
    %287 = vector.shape_cast %286 : vector<12xf32> to vector<12x1xf32>
    %cst_38 = arith.constant 1.000000e-24 : f32
    %288 = vector.broadcast %cst_38 : f32 to vector<12x1xf32>
    %289 = arith.maximumf %287, %288 : vector<12x1xf32>
    %290 = math.rsqrt %289 : vector<12x1xf32>
    %291 = vector.broadcast %283 : vector<1x512xf32> to vector<12x512xf32>
    %292 = vector.broadcast %290 : vector<12x1xf32> to vector<12x512xf32>
    %293 = arith.mulf %291, %292 : vector<12x512xf32>
    %cst_39 = arith.constant 0.000000e+00 : f32
    %294 = vector.broadcast %cst_39 : f32 to vector<12x512xf32>
    %295 = arith.addf %294, %293 : vector<12x512xf32>
    %296 = vector.extract_strided_slice %4 {offsets = [1, 0], sizes = [1, 512], strides = [1, 1]} : vector<2x512xf32> to vector<1x512xf32>
    %297 = vector.broadcast %296 : vector<1x512xf32> to vector<12x512xf32>
    %298 = arith.mulf %282, %297 : vector<12x512xf32>
    %cst_40 = arith.constant dense<0.000000e+00> : vector<12xf32>
    %299 = vector.multi_reduction <add>, %298, %cst_40 [1] : vector<12x512xf32> to vector<12xf32>
    %300 = vector.shape_cast %299 : vector<12xf32> to vector<12x1xf32>
    %cst_41 = arith.constant 1.000000e-24 : f32
    %301 = vector.broadcast %cst_41 : f32 to vector<12x1xf32>
    %302 = arith.maximumf %300, %301 : vector<12x1xf32>
    %303 = math.rsqrt %302 : vector<12x1xf32>
    %304 = vector.broadcast %296 : vector<1x512xf32> to vector<12x512xf32>
    %305 = vector.broadcast %303 : vector<12x1xf32> to vector<12x512xf32>
    %306 = arith.mulf %304, %305 : vector<12x512xf32>
    %307 = arith.addf %295, %306 : vector<12x512xf32>
    %308 = arith.mulf %281, %307 : vector<12x512xf32>
    %309 = arith.mulf %308, %239 : vector<12x512xf32>
    %310 = vector.extract_strided_slice %4 {offsets = [0, 0], sizes = [1, 512], strides = [1, 1]} : vector<2x512xf32> to vector<1x512xf32>
    %311 = vector.broadcast %310 : vector<1x512xf32> to vector<12x512xf32>
    %312 = arith.mulf %309, %311 : vector<12x512xf32>
    %cst_42 = arith.constant dense<0.000000e+00> : vector<12xf32>
    %313 = vector.multi_reduction <add>, %312, %cst_42 [1] : vector<12x512xf32> to vector<12xf32>
    %314 = vector.shape_cast %313 : vector<12xf32> to vector<12x1xf32>
    %315 = vector.broadcast %310 : vector<1x512xf32> to vector<12x512xf32>
    %316 = vector.broadcast %314 : vector<12x1xf32> to vector<12x512xf32>
    %317 = arith.mulf %315, %316 : vector<12x512xf32>
    %cst_43 = arith.constant 0.000000e+00 : f32
    %318 = vector.broadcast %cst_43 : f32 to vector<12x512xf32>
    %319 = arith.addf %318, %317 : vector<12x512xf32>
    %320 = vector.extract_strided_slice %4 {offsets = [1, 0], sizes = [1, 512], strides = [1, 1]} : vector<2x512xf32> to vector<1x512xf32>
    %321 = vector.broadcast %320 : vector<1x512xf32> to vector<12x512xf32>
    %322 = arith.mulf %309, %321 : vector<12x512xf32>
    %cst_44 = arith.constant dense<0.000000e+00> : vector<12xf32>
    %323 = vector.multi_reduction <add>, %322, %cst_44 [1] : vector<12x512xf32> to vector<12xf32>
    %324 = vector.shape_cast %323 : vector<12xf32> to vector<12x1xf32>
    %325 = vector.broadcast %320 : vector<1x512xf32> to vector<12x512xf32>
    %326 = vector.broadcast %324 : vector<12x1xf32> to vector<12x512xf32>
    %327 = arith.mulf %325, %326 : vector<12x512xf32>
    %328 = arith.addf %319, %327 : vector<12x512xf32>
    %329 = arith.mulf %328, %262 : vector<12x512xf32>
    %cst_45 = arith.constant dense<0.000000e+00> : vector<12x512xf32>
    %330 = tpu.matmul %202, %329, %cst_45 {dimension_numbers = #tpu.dot_dimension_numbers<[1], [0], [0], [1], [0, 0, 1, 1], [], []>} : vector<12x12xf32>, vector<12x512xf32>, vector<12x512xf32> -> vector<12x512xf32>
    %331 = vector.broadcast %208 : vector<12x1xf32> to vector<12x512xf32>
    %332 = arith.addf %330, %331 : vector<12x512xf32>
    %333 = arith.addf %332, %239 : vector<12x512xf32>
    %cst_46 = arith.constant dense<0.000000e+00> : vector<12x512xf32>
    %334 = tpu.matmul %203, %333, %cst_46 {dimension_numbers = #tpu.dot_dimension_numbers<[1], [0], [0], [1], [0, 0, 1, 1], [], []>} : vector<12x12xf32>, vector<12x512xf32>, vector<12x512xf32> -> vector<12x512xf32>
    %335 = vector.broadcast %209 : vector<12x1xf32> to vector<12x512xf32>
    %336 = arith.addf %334, %335 : vector<12x512xf32>
    %337 = vector.extract_strided_slice %10 {offsets = [0, 0], sizes = [12, 1], strides = [1, 1]} : vector<12x2xf32> to vector<12x1xf32>
    %338 = vector.broadcast %337 : vector<12x1xf32> to vector<12x512xf32>
    %339 = arith.mulf %338, %336 : vector<12x512xf32>
    %340 = arith.addf %199, %339 : vector<12x512xf32>
    %341 = vector.extract_strided_slice %10 {offsets = [0, 1], sizes = [12, 1], strides = [1, 1]} : vector<12x2xf32> to vector<12x1xf32>
    %342 = vector.extract_strided_slice %0 {offsets = [0, 151], sizes = [12, 49], strides = [1, 1]} : vector<12x204xf32> to vector<12x49xf32>
    %343 = vector.extract_strided_slice %6 {offsets = [0, 0], sizes = [48, 12], strides = [1, 1]} : vector<48x13xf32> to vector<48x12xf32>
    %cst_47 = arith.constant dense<0.000000e+00> : vector<48x512xf32>
    %344 = tpu.matmul %343, %340, %cst_47 {dimension_numbers = #tpu.dot_dimension_numbers<[1], [0], [0], [1], [0, 0, 1, 1], [], []>} : vector<48x12xf32>, vector<12x512xf32>, vector<48x512xf32> -> vector<48x512xf32>
    %345 = vector.extract_strided_slice %6 {offsets = [0, 12], sizes = [48, 1], strides = [1, 1]} : vector<48x13xf32> to vector<48x1xf32>
    %346 = vector.broadcast %345 : vector<48x1xf32> to vector<48x512xf32>
    %347 = arith.addf %344, %346 : vector<48x512xf32>
    %cst_48 = arith.constant 5.000000e-01 : f32
    %348 = vector.broadcast %cst_48 : f32 to vector<48x512xf32>
    %349 = arith.mulf %348, %347 : vector<48x512xf32>
    %cst_49 = arith.constant 0.707106769 : f32
    %350 = vector.broadcast %cst_49 : f32 to vector<48x512xf32>
    %351 = arith.mulf %347, %350 : vector<48x512xf32>
    %352 = math.erf %351 : vector<48x512xf32>
    %cst_50 = arith.constant 1.000000e+00 : f32
    %353 = vector.broadcast %cst_50 : f32 to vector<48x512xf32>
    %354 = arith.addf %353, %352 : vector<48x512xf32>
    %355 = arith.mulf %349, %354 : vector<48x512xf32>
    %356 = vector.extract_strided_slice %342 {offsets = [0, 0], sizes = [12, 48], strides = [1, 1]} : vector<12x49xf32> to vector<12x48xf32>
    %cst_51 = arith.constant dense<0.000000e+00> : vector<12x512xf32>
    %357 = tpu.matmul %356, %355, %cst_51 {dimension_numbers = #tpu.dot_dimension_numbers<[1], [0], [0], [1], [0, 0, 1, 1], [], []>} : vector<12x48xf32>, vector<48x512xf32>, vector<12x512xf32> -> vector<12x512xf32>
    %358 = vector.extract_strided_slice %342 {offsets = [0, 48], sizes = [12, 1], strides = [1, 1]} : vector<12x49xf32> to vector<12x1xf32>
    %359 = vector.broadcast %358 : vector<12x1xf32> to vector<12x512xf32>
    %360 = arith.addf %357, %359 : vector<12x512xf32>
    %361 = vector.broadcast %341 : vector<12x1xf32> to vector<12x512xf32>
    %362 = arith.mulf %361, %360 : vector<12x512xf32>
    %363 = arith.addf %340, %362 : vector<12x512xf32>
    %c0_52 = arith.constant 0 : index
    %c0_53 = arith.constant 0 : index
    %c0_54 = arith.constant 0 : index
    %364 = vector.load %arg5[%c0_52, %c0_53, %c0_54] : memref<1x12x512xf32, #tpu.memory_space<vmem>>, vector<1x12x512xf32>
    %365 = vector.shape_cast %364 : vector<1x12x512xf32> to vector<12x512xf32>
    %366 = vector.shape_cast %363 : vector<12x512xf32> to vector<1x12x512xf32>
    tpu.vector_store %arg5[%c0_52, %c0_53, %c0_54], %366 {strides = array<i32>} : memref<1x12x512xf32, #tpu.memory_space<vmem>>, vector<1x12x512xf32>,
    return
  }
  func.func @transform_0(%arg0: i32) -> (i32, i32, i32) {
    %c0_i32 = arith.constant 0 : i32
    %c0_i32_0 = arith.constant 0 : i32
    %c0_i32_1 = arith.constant 0 : i32
    return %arg0, %c0_i32, %c0_i32_0 : i32, i32, i32
  }
  func.func @transform_1(%arg0: i32) -> (i32, i32) {
    %c0_i32 = arith.constant 0 : i32
    %c0_i32_0 = arith.constant 0 : i32
    %c0_i32_1 = arith.constant 0 : i32
    return %c0_i32, %c0_i32_0 : i32, i32
  }
  func.func @transform_2(%arg0: i32) -> (i32, i32) {
    %c0_i32 = arith.constant 0 : i32
    %c0_i32_0 = arith.constant 0 : i32
    %c0_i32_1 = arith.constant 0 : i32
    return %c0_i32, %c0_i32_0 : i32, i32
  }
  func.func @transform_3(%arg0: i32) -> (i32, i32) {
    %c0_i32 = arith.constant 0 : i32
    %c0_i32_0 = arith.constant 0 : i32
    %c0_i32_1 = arith.constant 0 : i32
    return %c0_i32, %c0_i32_0 : i32, i32
  }
  func.func @transform_4(%arg0: i32) -> (i32, i32, i32) {
    %c0_i32 = arith.constant 0 : i32
    %c0_i32_0 = arith.constant 0 : i32
    %c0_i32_1 = arith.constant 0 : i32
    return %arg0, %c0_i32, %c0_i32_0 : i32, i32, i32
  }
}

</mosaic_0001>

<llo_original>
// kernel: short_attention_forward.1
$region0: #{short_attention_forward.1}
  #allocation0 [shape = 'u32[]', space=smem, size = 0x4, offset = 0x4, fixed_abs, tag = 'smem constant byte address 0x4 - core index']
  #allocation1 [shape = 'u32[144,128]{1,0:T(1,128)}', space=vmem, size = 0x12000, scoped, tag = 'internal scratch']
  %s0 = inlined_call_operand.vmem [shape: f32[2,12,512], index: 0, kind: input, shape index: {}]
  %s1 = inlined_call_operand.vmem [shape: f32[12,204], index: 1, kind: input, shape index: {}]
  %s2 = inlined_call_operand.vmem [shape: f32[48,26], index: 2, kind: input, shape index: {}]
  %s3 = inlined_call_operand.vmem [shape: f32[10,512], index: 3, kind: input, shape index: {}]
  %s4 = inlined_call_operand.vmem [shape: f32[2,12,512], index: 4, kind: output, shape index: {}]
  %s5 = sld [smem:[#allocation0]]
  $region49: #{short_attention_forward.1} parent=0
    _
  %s7 = ssub.s32 1, %s5
  %s8 = scalar_select 0, %s7, %s5
  loop: start=0, step=1, limit=4
  $region2: #{short_attention_forward.1} parent=0 // loop_pre_header
    _
  $region3: #{short_attention_forward.1} parent=0 // loop_header
    %s10 = sphi 0, %s14
    %p11 = scmp.ge.s32.totalorder %s10, 4
    %s20 = sphi 0, %s22
    %s23 = sphi 0, %s20
    %s24 = sphi 0, %s23
    %s40 = sphi 0, %s24
    %s44 = sphi 0, %s44
    %s46 = sphi 0, %s44
    %s47 = sphi 0, %s46
    %s61 = sphi 0, %s47
    %s65 = sphi 0, %s65
    %s67 = sphi 0, %s65
    %s68 = sphi 0, %s67
    %s82 = sphi 0, %s68
    %s86 = sphi 0, %s86
    %s88 = sphi 0, %s86
    %s89 = sphi 0, %s88
    %s103 = sphi 0, %s89
    %s109 = sphi 0, %s111
    %s112 = sphi 0, %s109
    %s113 = sphi 0, %s112
    %s129 = sphi 0, %s113
  $region4: #{short_attention_forward.1} parent=0 // loop_header_branch
    %13 = sbr.rel (%p11) target = $region8
  $region5: #{short_attention_forward.1} parent=0 // loop_body
    %s15 = ssub.s32 %s10, 1
    %s16 = ssub.s32 %s10, 2
    %s17 = sadd.s32 %s10, 1
    %s18 = ssub.s32 %s10, %s17
    %p19 = scmp.eq.s32.totalorder %s18, 0
    %s21 = sadd.s32 %s20, 1
    %s22 = scalar_select %p19, %s20, %s21
    %p25 = pneg %p19
    %p26 = scmp.eq.s32.totalorder %s10, 1
    %p27 = por %p25, %p26
    %p28 = scmp.ne.s32.totalorder %s20, %s23
    %p29 = scmp.eq.s32.totalorder %s10, 0
    %p30 = por %p28, %p29
    %p31 = scmp.ne.s32.totalorder %s20, %s23
    %p32 = scmp.eq.s32.totalorder %s15, 1
    %p33 = por %p31, %p32
    %p34 = scmp.ne.s32.totalorder %s23, %s24
    %p35 = scmp.eq.s32.totalorder %s15, 0
    %p36 = por %p34, %p35
    %p37 = scmp.ne.s32.totalorder %s23, %s24
    %p38 = scmp.eq.s32.totalorder %s16, 1
    %p39 = por %p37, %p38
    %p41 = scmp.ne.s32.totalorder %s24, %s40
    %p42 = scmp.eq.s32.totalorder %s16, 0
    %p43 = por %p41, %p42
    %s45 = sadd.s32 %s44, 1
    %p48 = scmp.eq.s32.totalorder %s10, 1
    %p49 = scmp.ne.s32.totalorder %s44, %s46
    %p50 = scmp.eq.s32.totalorder %s10, 0
    %p51 = por %p49, %p50
    %p52 = scmp.ne.s32.totalorder %s44, %s46
    %p53 = scmp.eq.s32.totalorder %s15, 1
    %p54 = por %p52, %p53
    %p55 = scmp.ne.s32.totalorder %s46, %s47
    %p56 = scmp.eq.s32.totalorder %s15, 0
    %p57 = por %p55, %p56
    %p58 = scmp.ne.s32.totalorder %s46, %s47
    %p59 = scmp.eq.s32.totalorder %s16, 1
    %p60 = por %p58, %p59
    %p62 = scmp.ne.s32.totalorder %s47, %s61
    %p63 = scmp.eq.s32.totalorder %s16, 0
    %p64 = por %p62, %p63
    %s66 = sadd.s32 %s65, 1
    %p69 = scmp.eq.s32.totalorder %s10, 1
    %p70 = scmp.ne.s32.totalorder %s65, %s67
    %p71 = scmp.eq.s32.totalorder %s10, 0
    %p72 = por %p70, %p71
    %p73 = scmp.ne.s32.totalorder %s65, %s67
    %p74 = scmp.eq.s32.totalorder %s15, 1
    %p75 = por %p73, %p74
    %p76 = scmp.ne.s32.totalorder %s67, %s68
    %p77 = scmp.eq.s32.totalorder %s15, 0
    %p78 = por %p76, %p77
    %p79 = scmp.ne.s32.totalorder %s67, %s68
    %p80 = scmp.eq.s32.totalorder %s16, 1
    %p81 = por %p79, %p80
    %p83 = scmp.ne.s32.totalorder %s68, %s82
    %p84 = scmp.eq.s32.totalorder %s16, 0
    %p85 = por %p83, %p84
    %s87 = sadd.s32 %s86, 1
    %p90 = scmp.eq.s32.totalorder %s10, 1
    %p91 = scmp.ne.s32.totalorder %s86, %s88
    %p92 = scmp.eq.s32.totalorder %s10, 0
    %p93 = por %p91, %p92
    %p94 = scmp.ne.s32.totalorder %s86, %s88
    %p95 = scmp.eq.s32.totalorder %s15, 1
    %p96 = por %p94, %p95
    %p97 = scmp.ne.s32.totalorder %s88, %s89
    %p98 = scmp.eq.s32.totalorder %s15, 0
    %p99 = por %p97, %p98
    %p100 = scmp.ne.s32.totalorder %s88, %s89
    %p101 = scmp.eq.s32.totalorder %s16, 1
    %p102 = por %p100, %p101
    %p104 = scmp.ne.s32.totalorder %s89, %s103
    %p105 = scmp.eq.s32.totalorder %s16, 0
    %p106 = por %p104, %p105
    %s107 = ssub.s32 %s10, %s17
    %p108 = scmp.eq.s32.totalorder %s107, 0
    %s110 = sadd.s32 %s109, 1
    %s111 = scalar_select %p108, %s109, %s110
    %p114 = pneg %p108
    %p115 = scmp.eq.s32.totalorder %s10, 1
    %p116 = por %p114, %p115
    %p117 = scmp.ne.s32.totalorder %s109, %s112
    %p118 = scmp.eq.s32.totalorder %s10, 0
    %p119 = por %p117, %p118
    %p120 = scmp.ne.s32.totalorder %s109, %s112
    %p121 = scmp.eq.s32.totalorder %s15, 1
    %p122 = por %p120, %p121
    %p123 = scmp.ne.s32.totalorder %s112, %s113
    %p124 = scmp.eq.s32.totalorder %s15, 0
    %p125 = por %p123, %p124
    %p126 = scmp.ne.s32.totalorder %s112, %s113
    %p127 = scmp.eq.s32.totalorder %s16, 1
    %p128 = por %p126, %p127
    %p130 = scmp.ne.s32.totalorder %s113, %s129
    %p131 = scmp.eq.s32.totalorder %s16, 0
    %p132 = por %p130, %p131
    %p133 = scmp.le.s32.totalorder 1, %s10
    %p134 = scmp.lt.s32.totalorder %s10, 3
    %p135 = pnand %p133, %p134
    %p136 = pneg %p135
    // Predicated region
    $region9: #{short_attention_forward.1} parent=5 // pred_check
      _
    $region10: #{short_attention_forward.1} parent=5 // pred_check_branch
      %138 = sbr.rel (%p135) target = $region12
    $region11: #{short_attention_forward.1} parent=5 // pred_region
      %s139 = ssub.s32 %s10, 1
      // Predicated region
      $region13: #{short_attention_forward.1} parent=11 // pred_check
        %p140 = pneg %p57
      $region14: #{short_attention_forward.1} parent=11 // pred_check_branch
        %142 = sbr.rel (%p140) target = $region16
      $region15: #{short_attention_forward.1} parent=11 // pred_region
        _
      $region16: #{short_attention_forward.1} parent=11 // pred_fallthru
        _
      // Predicated region
      $region17: #{short_attention_forward.1} parent=11 // pred_check
        %p143 = pneg %p78
      $region18: #{short_attention_forward.1} parent=11 // pred_check_branch
        %145 = sbr.rel (%p143) target = $region20
      $region19: #{short_attention_forward.1} parent=11 // pred_region
        _
      $region20: #{short_attention_forward.1} parent=11 // pred_fallthru
        _
      // Predicated region
      $region21: #{short_attention_forward.1} parent=11 // pred_check
        %p146 = pneg %p99
      $region22: #{short_attention_forward.1} parent=11 // pred_check_branch
        %148 = sbr.rel (%p146) target = $region24
      $region23: #{short_attention_forward.1} parent=11 // pred_region
        _
      $region24: #{short_attention_forward.1} parent=11 // pred_fallthru
        _
    $region12: #{short_attention_forward.1} parent=5 // pred_fallthru
      _
    %p149 = scmp.lt.s32.totalorder %s10, 2
    // Predicated region
    $region25: #{short_attention_forward.1} parent=5 // pred_check
      %p150 = pneg %p149
    $region26: #{short_attention_forward.1} parent=5 // pred_check_branch
      %152 = sbr.rel (%p150) target = $region28
    $region27: #{short_attention_forward.1} parent=5 // pred_region
      // Predicated region
      $region29: #{short_attention_forward.1} parent=27 // pred_check
        %p153 = pneg %p30
      $region30: #{short_attention_forward.1} parent=27 // pred_check_branch
        %155 = sbr.rel (%p153) target = $region32
      $region31: #{short_attention_forward.1} parent=27 // pred_region
        %p156 = scmp.lt.s32.totalorder %s10, 1
        %s157 = scalar_select %p156, %s10, 1
        %s158 = smul.addr %s157, 8
        %s159 = smul.addr %s158, 8
        %s160 = scalar_lea.vmem %s0, %s159
      $region32: #{short_attention_forward.1} parent=27 // pred_fallthru
        _
    $region28: #{short_attention_forward.1} parent=5 // pred_fallthru
      _
    %p161 = scmp.le.s32.totalorder 1, %s10
    %p162 = scmp.lt.s32.totalorder %s10, 3
    %p163 = pnand %p161, %p162
    %p164 = pneg %p163
    // Predicated region
    $region33: #{short_attention_forward.1} parent=5 // pred_check
      _
    $region34: #{short_attention_forward.1} parent=5 // pred_check_branch
      %166 = sbr.rel (%p163) target = $region36
    $region35: #{short_attention_forward.1} parent=5 // pred_region
      %s167 = ssub.s32 %s10, 1
      %p168 = scmp.lt.s32.totalorder %s15, 1
      %s169 = scalar_select %p168, %s15, 1
      %s170 = smul.addr %s169, 8
      %s171 = smul.addr %s170, 8
      %s172 = scalar_lea.vmem %s0, %s171
      %p173 = pneg %p36
      %p174 = pneg %p33
      %p175 = pneg %p57
      %p176 = pneg %p54
      %p177 = pneg %p78
      %p178 = pneg %p75
      %p179 = pneg %p99
      %p180 = pneg %p96
      %p181 = pneg %p125
      %p182 = pneg %p122
      %p183 = scmp.lt.s32.totalorder %s15, 1
      %s184 = scalar_select %p183, %s15, 1
      %s185 = smul.addr %s184, 8
      %s186 = smul.addr %s185, 8
      %s187 = scalar_lea.vmem %s4, %s186
      %p188 = scmp.lt.s32.totalorder %s15, 1
      %s189 = scalar_select %p188, %s15, 1
      %s190 = smul.addr %s189, 8
      %s191 = smul.addr %s190, 8
      %s192 = scalar_lea.vmem %s0, %s191
      %p193 = scmp.lt.s32.totalorder %s15, 1
      %s194 = scalar_select %p193, %s15, 1
      %s195 = smul.addr %s194, 8
      %s196 = smul.addr %s195, 8
      %s197 = scalar_lea.vmem %s4, %s196
      %v198 = vld [vmem:[%s1] sm:$0xff]
      %v199 = vld [vmem:[%s1 + $0x8] sm:$0xff]
      %v200 = vld [vmem:[%s1 + $0x10] sm:$0xf]
      %v201 = vld [vmem:[%s1 + $0x18] sm:$0xf]
      %v202 = vld [vmem:[%s2] sm:$0xff]
      %v203 = vld [vmem:[%s2 + $0x8] sm:$0xff]
      %v204 = vld [vmem:[%s2 + $0x10] sm:$0xff]
      %v205 = vld [vmem:[%s2 + $0x18] sm:$0xff]
      %v206 = vld [vmem:[%s2 + $0x20] sm:$0xff]
      %v207 = vld [vmem:[%s2 + $0x28] sm:$0xff]
      %v208 = vld [vmem:[%s3] sm:$0xff]
      %v209 = vld [vmem:[%s3 + $0x8] sm:$0xff]
      %v210 = vld [vmem:[%s3 + $0x10] sm:$0xff]
      %v211 = vld [vmem:[%s3 + $0x18] sm:$0xff]
      %v212 = vld [vmem:[%s3 + $0x20] sm:$0x3]
      %v213 = vld [vmem:[%s3 + $0x28] sm:$0x3]
      %v214 = vld [vmem:[%s3 + $0x30] sm:$0x3]
      %v215 = vld [vmem:[%s3 + $0x38] sm:$0x3]
      %v216 = vld [vmem:[%s192] sm:$0xff]
      %v217 = vld [vmem:[%s192 + $0x8] sm:$0xff]
      %v218 = vld [vmem:[%s192 + $0x10] sm:$0xff]
      %v219 = vld [vmem:[%s192 + $0x18] sm:$0xff]
      %v220 = vld [vmem:[%s192 + $0x20] sm:$0xf]
      %v221 = vld [vmem:[%s192 + $0x28] sm:$0xf]
      %v222 = vld [vmem:[%s192 + $0x30] sm:$0xf]
      %v223 = vld [vmem:[%s192 + $0x38] sm:$0xf]
      %225 = vset.pattern.permute.xlu0 4
      %226 = vperm.xlu0 %225, %v198
      %v227 = vpop.permute.xlu0 %226
      %230 = vset.pattern.permute.xlu0 4
      %231 = vperm.xlu0 %230, %v200
      %v232 = vpop.permute.xlu0 %231
      %v234 = vmul.f32 %v216, %v227
      %v235 = vmul.f32 %v217, %v227
      %v236 = vmul.f32 %v218, %v227
      %v237 = vmul.f32 %v219, %v227
      %v238 = vmul.f32 %v220, %v232
      %v239 = vmul.f32 %v221, %v232
      %v240 = vmul.f32 %v222, %v232
      %v241 = vmul.f32 %v223, %v232
      %242 = vrot.lane.b32.xlu0 %v216, 17
      %v243 = vpop.permute.xlu0 %242
      %244 = vrot.lane.b32.xlu0 %v220, 17
      %v245 = vpop.permute.xlu0 %244
      %246 = vrot.lane.b32.xlu0 %v217, 17
      %v247 = vpop.permute.xlu0 %246
      %248 = vrot.lane.b32.xlu0 %v221, 17
      %v249 = vpop.permute.xlu0 %248
      %250 = vrot.lane.b32.xlu0 %v218, 17
      %v251 = vpop.permute.xlu0 %250
      %252 = vrot.lane.b32.xlu0 %v222, 17
      %v253 = vpop.permute.xlu0 %252
      %254 = vrot.lane.b32.xlu0 %v219, 17
      %v255 = vpop.permute.xlu0 %254
      %256 = vrot.lane.b32.xlu0 %v223, 17
      %v257 = vpop.permute.xlu0 %256
      %v258 = vlaneseq
      %v259 = vand.u32 %v258, 127
      %vm260 = vcmp.lt.s32.totalorder %v259, 17
      %v261 = vsel %vm260, %v251, %v255
      %v262 = vsel %vm260, %v253, %v257
      %v263 = vsel %vm260, %v247, %v251
      %v264 = vsel %vm260, %v249, %v253
      %v265 = vsel %vm260, %v243, %v247
      %v266 = vsel %vm260, %v245, %v249
      %v267 = vsel %vm260, %v255, %v243
      %v268 = vsel %vm260, %v257, %v245
      %v269 = vlaneseq
      %v270 = vshrl.u32 %v269, 7
      %v271 = vsub.s32 0, %v270
      %v272 = vrot.slane %v208, %v271
      %v273 = vlaneseq
      %v274 = vshrl.u32 %v273, 7
      %v275 = vsub.s32 0, %v274
      %v276 = vrot.slane %v209, %v275
      %v277 = vlaneseq
      %v278 = vshrl.u32 %v277, 7
      %v279 = vsub.s32 0, %v278
      %v280 = vrot.slane %v210, %v279
      %v281 = vlaneseq
      %v282 = vshrl.u32 %v281, 7
      %v283 = vsub.s32 0, %v282
      %v284 = vrot.slane %v211, %v283
      %v285 = vmul.f32 %v267, %v272
      %v286 = vmul.f32 %v265, %v276
      %v287 = vmul.f32 %v263, %v280
      %v288 = vmul.f32 %v261, %v284
      %v289 = vmul.f32 %v268, %v272
      %v290 = vmul.f32 %v266, %v276
      %v291 = vmul.f32 %v264, %v280
      %v292 = vmul.f32 %v262, %v284
      %293 = vset.pattern.permute.xlu0 0
      %294 = vperm.xlu0 %293, %v198
      %v295 = vpop.permute.xlu0 %294
      %297 = vset.pattern.permute.xlu0 0
      %298 = vperm.xlu0 %297, %v200
      %v299 = vpop.permute.xlu0 %298
      %v301 = vmul.f32 %v285, %v295
      %v302 = vmul.f32 %v286, %v295
      %v303 = vmul.f32 %v287, %v295
      %v304 = vmul.f32 %v288, %v295
      %v305 = vmul.f32 %v289, %v299
      %v306 = vmul.f32 %v290, %v299
      %v307 = vmul.f32 %v291, %v299
      %v308 = vmul.f32 %v292, %v299
      %v309 = vadd.f32 %v234, %v301
      %v310 = vadd.f32 %v235, %v302
      %v311 = vadd.f32 %v236, %v303
      %v312 = vadd.f32 %v237, %v304
      %v313 = vadd.f32 %v238, %v305
      %v314 = vadd.f32 %v239, %v306
      %v315 = vadd.f32 %v240, %v307
      %v316 = vadd.f32 %v241, %v308
      %317 = vrot.lane.b32.xlu0 %v216, 16
      %v318 = vpop.permute.xlu0 %317
      %319 = vrot.lane.b32.xlu0 %v220, 16
      %v320 = vpop.permute.xlu0 %319
      %321 = vrot.lane.b32.xlu0 %v217, 16
      %v322 = vpop.permute.xlu0 %321
      %323 = vrot.lane.b32.xlu0 %v221, 16
      %v324 = vpop.permute.xlu0 %323
      %325 = vrot.lane.b32.xlu0 %v218, 16
      %v326 = vpop.permute.xlu0 %325
      %327 = vrot.lane.b32.xlu0 %v222, 16
      %v328 = vpop.permute.xlu0 %327
      %329 = vrot.lane.b32.xlu0 %v219, 16
      %v330 = vpop.permute.xlu0 %329
      %331 = vrot.lane.b32.xlu0 %v223, 16
      %v332 = vpop.permute.xlu0 %331
      %vm333 = vcmp.lt.s32.totalorder %v259, 16
      %v334 = vsel %vm333, %v326, %v330
      %v335 = vsel %vm333, %v328, %v332
      %v336 = vsel %vm333, %v322, %v326
      %v337 = vsel %vm333, %v324, %v328
      %v338 = vsel %vm333, %v318, %v322
      %v339 = vsel %vm333, %v320, %v324
      %v340 = vsel %vm333, %v330, %v318
      %v341 = vsel %vm333, %v332, %v320
      %v342 = vlaneseq
      %v343 = vshrl.u32 %v342, 7
      %v344 = vsub.s32 1, %v343
      %v345 = vrot.slane %v208, %v344
      %v346 = vlaneseq
      %v347 = vshrl.u32 %v346, 7
      %v348 = vsub.s32 1, %v347
      %v349 = vrot.slane %v209, %v348
      %v350 = vlaneseq
      %v351 = vshrl.u32 %v350, 7
      %v352 = vsub.s32 1, %v351
      %v353 = vrot.slane %v210, %v352
      %v354 = vlaneseq
      %v355 = vshrl.u32 %v354, 7
      %v356 = vsub.s32 1, %v355
      %v357 = vrot.slane %v211, %v356
      %v358 = vmul.f32 %v340, %v345
      %v359 = vmul.f32 %v338, %v349
      %v360 = vmul.f32 %v336, %v353
      %v361 = vmul.f32 %v334, %v357
      %v362 = vmul.f32 %v341, %v345
      %v363 = vmul.f32 %v339, %v349
      %v364 = vmul.f32 %v337, %v353
      %v365 = vmul.f32 %v335, %v357
      %366 = vset.pattern.permute.xlu0 1
      %367 = vperm.xlu0 %366, %v198
      %v368 = vpop.permute.xlu0 %367
      %370 = vset.pattern.permute.xlu0 1
      %371 = vperm.xlu0 %370, %v200
      %v372 = vpop.permute.xlu0 %371
      %v374 = vmul.f32 %v358, %v368
      %v375 = vmul.f32 %v359, %v368
      %v376 = vmul.f32 %v360, %v368
      %v377 = vmul.f32 %v361, %v368
      %v378 = vmul.f32 %v362, %v372
      %v379 = vmul.f32 %v363, %v372
      %v380 = vmul.f32 %v364, %v372
      %v381 = vmul.f32 %v365, %v372
      %v382 = vadd.f32 %v309, %v374
      %v383 = vadd.f32 %v310, %v375
      %v384 = vadd.f32 %v311, %v376
      %v385 = vadd.f32 %v312, %v377
      %v386 = vadd.f32 %v313, %v378
      %v387 = vadd.f32 %v314, %v379
      %v388 = vadd.f32 %v315, %v380
      %v389 = vadd.f32 %v316, %v381
      %390 = vrot.lane.b32.xlu0 %v216, 15
      %v391 = vpop.permute.xlu0 %390
      %392 = vrot.lane.b32.xlu0 %v220, 15
      %v393 = vpop.permute.xlu0 %392
      %394 = vrot.lane.b32.xlu0 %v217, 15
      %v395 = vpop.permute.xlu0 %394
      %396 = vrot.lane.b32.xlu0 %v221, 15
      %v397 = vpop.permute.xlu0 %396
      %398 = vrot.lane.b32.xlu0 %v218, 15
      %v399 = vpop.permute.xlu0 %398
      %400 = vrot.lane.b32.xlu0 %v222, 15
      %v401 = vpop.permute.xlu0 %400
      %402 = vrot.lane.b32.xlu0 %v219, 15
      %v403 = vpop.permute.xlu0 %402
      %404 = vrot.lane.b32.xlu0 %v223, 15
      %v405 = vpop.permute.xlu0 %404
      %vm406 = vcmp.lt.s32.totalorder %v259, 15
      %v407 = vsel %vm406, %v399, %v403
      %v408 = vsel %vm406, %v401, %v405
      %v409 = vsel %vm406, %v395, %v399
      %v410 = vsel %vm406, %v397, %v401
      %v411 = vsel %vm406, %v391, %v395
      %v412 = vsel %vm406, %v393, %v397
      %v413 = vsel %vm406, %v403, %v391
      %v414 = vsel %vm406, %v405, %v393
      %v415 = vlaneseq
      %v416 = vshrl.u32 %v415, 7
      %v417 = vsub.s32 2, %v416
      %v418 = vrot.slane %v208, %v417
      %v419 = vlaneseq
      %v420 = vshrl.u32 %v419, 7
      %v421 = vsub.s32 2, %v420
      %v422 = vrot.slane %v209, %v421
      %v423 = vlaneseq
      %v424 = vshrl.u32 %v423, 7
      %v425 = vsub.s32 2, %v424
      %v426 = vrot.slane %v210, %v425
      %v427 = vlaneseq
      %v428 = vshrl.u32 %v427, 7
      %v429 = vsub.s32 2, %v428
      %v430 = vrot.slane %v211, %v429
      %v431 = vmul.f32 %v413, %v418
      %v432 = vmul.f32 %v411, %v422
      %v433 = vmul.f32 %v409, %v426
      %v434 = vmul.f32 %v407, %v430
      %v435 = vmul.f32 %v414, %v418
      %v436 = vmul.f32 %v412, %v422
      %v437 = vmul.f32 %v410, %v426
      %v438 = vmul.f32 %v408, %v430
      %439 = vset.pattern.permute.xlu0 2
      %440 = vperm.xlu0 %439, %v198
      %v441 = vpop.permute.xlu0 %440
      %443 = vset.pattern.permute.xlu0 2
      %444 = vperm.xlu0 %443, %v200
      %v445 = vpop.permute.xlu0 %444
      %v447 = vmul.f32 %v431, %v441
      %v448 = vmul.f32 %v432, %v441
      %v449 = vmul.f32 %v433, %v441
      %v450 = vmul.f32 %v434, %v441
      %v451 = vmul.f32 %v435, %v445
      %v452 = vmul.f32 %v436, %v445
      %v453 = vmul.f32 %v437, %v445
      %v454 = vmul.f32 %v438, %v445
      %v455 = vadd.f32 %v382, %v447
      %v456 = vadd.f32 %v383, %v448
      %v457 = vadd.f32 %v384, %v449
      %v458 = vadd.f32 %v385, %v450
      %v459 = vadd.f32 %v386, %v451
      %v460 = vadd.f32 %v387, %v452
      %v461 = vadd.f32 %v388, %v453
      %v462 = vadd.f32 %v389, %v454
      %463 = vrot.lane.b32.xlu0 %v216, 1
      %v464 = vpop.permute.xlu0 %463
      %465 = vrot.lane.b32.xlu0 %v220, 1
      %v466 = vpop.permute.xlu0 %465
      %467 = vrot.lane.b32.xlu0 %v217, 1
      %v468 = vpop.permute.xlu0 %467
      %469 = vrot.lane.b32.xlu0 %v221, 1
      %v470 = vpop.permute.xlu0 %469
      %471 = vrot.lane.b32.xlu0 %v218, 1
      %v472 = vpop.permute.xlu0 %471
      %473 = vrot.lane.b32.xlu0 %v222, 1
      %v474 = vpop.permute.xlu0 %473
      %475 = vrot.lane.b32.xlu0 %v219, 1
      %v476 = vpop.permute.xlu0 %475
      %477 = vrot.lane.b32.xlu0 %v223, 1
      %v478 = vpop.permute.xlu0 %477
      %vm479 = vcmp.lt.s32.totalorder %v259, 1
      %v480 = vsel %vm479, %v472, %v476
      %v481 = vsel %vm479, %v474, %v478
      %v482 = vsel %vm479, %v468, %v472
      %v483 = vsel %vm479, %v470, %v474
      %v484 = vsel %vm479, %v464, %v468
      %v485 = vsel %vm479, %v466, %v470
      %v486 = vsel %vm479, %v476, %v464
      %v487 = vsel %vm479, %v478, %v466
      %v488 = vlaneseq
      %v489 = vshrl.u32 %v488, 7
      %v490 = vsub.s32 3, %v489
      %v491 = vrot.slane %v208, %v490
      %v492 = vlaneseq
      %v493 = vshrl.u32 %v492, 7
      %v494 = vsub.s32 3, %v493
      %v495 = vrot.slane %v209, %v494
      %v496 = vlaneseq
      %v497 = vshrl.u32 %v496, 7
      %v498 = vsub.s32 3, %v497
      %v499 = vrot.slane %v210, %v498
      %v500 = vlaneseq
      %v501 = vshrl.u32 %v500, 7
      %v502 = vsub.s32 3, %v501
      %v503 = vrot.slane %v211, %v502
      %v504 = vmul.f32 %v486, %v491
      %v505 = vmul.f32 %v484, %v495
      %v506 = vmul.f32 %v482, %v499
      %v507 = vmul.f32 %v480, %v503
      %v508 = vmul.f32 %v487, %v491
      %v509 = vmul.f32 %v485, %v495
      %v510 = vmul.f32 %v483, %v499
      %v511 = vmul.f32 %v481, %v503
      %512 = vset.pattern.permute.xlu0 3
      %513 = vperm.xlu0 %512, %v198
      %v514 = vpop.permute.xlu0 %513
      %516 = vset.pattern.permute.xlu0 3
      %517 = vperm.xlu0 %516, %v200
      %v518 = vpop.permute.xlu0 %517
      %v520 = vmul.f32 %v504, %v514
      %v521 = vmul.f32 %v505, %v514
      %v522 = vmul.f32 %v506, %v514
      %v523 = vmul.f32 %v507, %v514
      %v524 = vmul.f32 %v508, %v518
      %v525 = vmul.f32 %v509, %v518
      %v526 = vmul.f32 %v510, %v518
      %v527 = vmul.f32 %v511, %v518
      %v528 = vadd.f32 %v455, %v520
      %v529 = vadd.f32 %v456, %v521
      %v530 = vadd.f32 %v457, %v522
      %v531 = vadd.f32 %v458, %v523
      %v532 = vadd.f32 %v459, %v524
      %v533 = vadd.f32 %v460, %v525
      %v534 = vadd.f32 %v461, %v526
      %v535 = vadd.f32 %v462, %v527
      %536 = vrot.lane.b32.xlu0 %v216, 127
      %v537 = vpop.permute.xlu0 %536
      %538 = vrot.lane.b32.xlu0 %v220, 127
      %v539 = vpop.permute.xlu0 %538
      %540 = vrot.lane.b32.xlu0 %v217, 127
      %v541 = vpop.permute.xlu0 %540
      %542 = vrot.lane.b32.xlu0 %v221, 127
      %v543 = vpop.permute.xlu0 %542
      %544 = vrot.lane.b32.xlu0 %v218, 127
      %v545 = vpop.permute.xlu0 %544
      %546 = vrot.lane.b32.xlu0 %v222, 127
      %v547 = vpop.permute.xlu0 %546
      %548 = vrot.lane.b32.xlu0 %v219, 127
      %v549 = vpop.permute.xlu0 %548
      %550 = vrot.lane.b32.xlu0 %v223, 127
      %v551 = vpop.permute.xlu0 %550
      %vm552 = vcmp.lt.s32.totalorder %v259, 127
      %v553 = vsel %vm552, %v545, %v549
      %v554 = vsel %vm552, %v547, %v551
      %v555 = vsel %vm552, %v541, %v545
      %v556 = vsel %vm552, %v543, %v547
      %v557 = vsel %vm552, %v537, %v541
      %v558 = vsel %vm552, %v539, %v543
      %v559 = vsel %vm552, %v549, %v537
      %v560 = vsel %vm552, %v551, %v539
      %v561 = vlaneseq
      %v562 = vshrl.u32 %v561, 7
      %v563 = vsub.s32 4, %v562
      %v564 = vrot.slane %v208, %v563
      %v565 = vlaneseq
      %v566 = vshrl.u32 %v565, 7
      %v567 = vsub.s32 4, %v566
      %v568 = vrot.slane %v209, %v567
      %v569 = vlaneseq
      %v570 = vshrl.u32 %v569, 7
      %v571 = vsub.s32 4, %v570
      %v572 = vrot.slane %v210, %v571
      %v573 = vlaneseq
      %v574 = vshrl.u32 %v573, 7
      %v575 = vsub.s32 4, %v574
      %v576 = vrot.slane %v211, %v575
      %v577 = vmul.f32 %v557, %v564
      %v578 = vmul.f32 %v555, %v568
      %v579 = vmul.f32 %v553, %v572
      %v580 = vmul.f32 %v559, %v576
      %v581 = vmul.f32 %v558, %v564
      %v582 = vmul.f32 %v556, %v568
      %v583 = vmul.f32 %v554, %v572
      %v584 = vmul.f32 %v560, %v576
      %585 = vset.pattern.permute.xlu0 5
      %586 = vperm.xlu0 %585, %v198
      %v587 = vpop.permute.xlu0 %586
      %589 = vset.pattern.permute.xlu0 5
      %590 = vperm.xlu0 %589, %v200
      %v591 = vpop.permute.xlu0 %590
      %v593 = vmul.f32 %v577, %v587
      %v594 = vmul.f32 %v578, %v587
      %v595 = vmul.f32 %v579, %v587
      %v596 = vmul.f32 %v580, %v587
      %v597 = vmul.f32 %v581, %v591
      %v598 = vmul.f32 %v582, %v591
      %v599 = vmul.f32 %v583, %v591
      %v600 = vmul.f32 %v584, %v591
      %v601 = vadd.f32 %v528, %v593
      %v602 = vadd.f32 %v529, %v594
      %v603 = vadd.f32 %v530, %v595
      %v604 = vadd.f32 %v531, %v596
      %v605 = vadd.f32 %v532, %v597
      %v606 = vadd.f32 %v533, %v598
      %v607 = vadd.f32 %v534, %v599
      %v608 = vadd.f32 %v535, %v600
      %609 = vrot.lane.b32.xlu0 %v216, 113
      %v610 = vpop.permute.xlu0 %609
      %611 = vrot.lane.b32.xlu0 %v220, 113
      %v612 = vpop.permute.xlu0 %611
      %613 = vrot.lane.b32.xlu0 %v217, 113
      %v614 = vpop.permute.xlu0 %613
      %615 = vrot.lane.b32.xlu0 %v221, 113
      %v616 = vpop.permute.xlu0 %615
      %617 = vrot.lane.b32.xlu0 %v218, 113
      %v618 = vpop.permute.xlu0 %617
      %619 = vrot.lane.b32.xlu0 %v222, 113
      %v620 = vpop.permute.xlu0 %619
      %621 = vrot.lane.b32.xlu0 %v219, 113
      %v622 = vpop.permute.xlu0 %621
      %623 = vrot.lane.b32.xlu0 %v223, 113
      %v624 = vpop.permute.xlu0 %623
      %vm625 = vcmp.lt.s32.totalorder %v259, 113
      %v626 = vsel %vm625, %v618, %v622
      %v627 = vsel %vm625, %v620, %v624
      %v628 = vsel %vm625, %v614, %v618
      %v629 = vsel %vm625, %v616, %v620
      %v630 = vsel %vm625, %v610, %v614
      %v631 = vsel %vm625, %v612, %v616
      %v632 = vsel %vm625, %v622, %v610
      %v633 = vsel %vm625, %v624, %v612
      %v634 = vlaneseq
      %v635 = vshrl.u32 %v634, 7
      %v636 = vsub.s32 5, %v635
      %v637 = vrot.slane %v208, %v636
      %v638 = vlaneseq
      %v639 = vshrl.u32 %v638, 7
      %v640 = vsub.s32 5, %v639
      %v641 = vrot.slane %v209, %v640
      %v642 = vlaneseq
      %v643 = vshrl.u32 %v642, 7
      %v644 = vsub.s32 5, %v643
      %v645 = vrot.slane %v210, %v644
      %v646 = vlaneseq
      %v647 = vshrl.u32 %v646, 7
      %v648 = vsub.s32 5, %v647
      %v649 = vrot.slane %v211, %v648
      %v650 = vmul.f32 %v630, %v637
      %v651 = vmul.f32 %v628, %v641
      %v652 = vmul.f32 %v626, %v645
      %v653 = vmul.f32 %v632, %v649
      %v654 = vmul.f32 %v631, %v637
      %v655 = vmul.f32 %v629, %v641
      %v656 = vmul.f32 %v627, %v645
      %v657 = vmul.f32 %v633, %v649
      %658 = vset.pattern.permute.xlu0 6
      %659 = vperm.xlu0 %658, %v198
      %v660 = vpop.permute.xlu0 %659
      %662 = vset.pattern.permute.xlu0 6
      %663 = vperm.xlu0 %662, %v200
      %v664 = vpop.permute.xlu0 %663
      %v666 = vmul.f32 %v650, %v660
      %v667 = vmul.f32 %v651, %v660
      %v668 = vmul.f32 %v652, %v660
      %v669 = vmul.f32 %v653, %v660
      %v670 = vmul.f32 %v654, %v664
      %v671 = vmul.f32 %v655, %v664
      %v672 = vmul.f32 %v656, %v664
      %v673 = vmul.f32 %v657, %v664
      %v674 = vadd.f32 %v601, %v666
      %v675 = vadd.f32 %v602, %v667
      %v676 = vadd.f32 %v603, %v668
      %v677 = vadd.f32 %v604, %v669
      %v678 = vadd.f32 %v605, %v670
      %v679 = vadd.f32 %v606, %v671
      %v680 = vadd.f32 %v607, %v672
      %v681 = vadd.f32 %v608, %v673
      %682 = vrot.lane.b32.xlu0 %v216, 112
      %v683 = vpop.permute.xlu0 %682
      %684 = vrot.lane.b32.xlu0 %v220, 112
      %v685 = vpop.permute.xlu0 %684
      %686 = vrot.lane.b32.xlu0 %v217, 112
      %v687 = vpop.permute.xlu0 %686
      %688 = vrot.lane.b32.xlu0 %v221, 112
      %v689 = vpop.permute.xlu0 %688
      %690 = vrot.lane.b32.xlu0 %v218, 112
      %v691 = vpop.permute.xlu0 %690
      %692 = vrot.lane.b32.xlu0 %v222, 112
      %v693 = vpop.permute.xlu0 %692
      %694 = vrot.lane.b32.xlu0 %v219, 112
      %v695 = vpop.permute.xlu0 %694
      %696 = vrot.lane.b32.xlu0 %v223, 112
      %v697 = vpop.permute.xlu0 %696
      %vm698 = vcmp.lt.s32.totalorder %v259, 112
      %v699 = vsel %vm698, %v691, %v695
      %v700 = vsel %vm698, %v693, %v697
      %v701 = vsel %vm698, %v687, %v691
      %v702 = vsel %vm698, %v689, %v693
      %v703 = vsel %vm698, %v683, %v687
      %v704 = vsel %vm698, %v685, %v689
      %v705 = vsel %vm698, %v695, %v683
      %v706 = vsel %vm698, %v697, %v685
      %v707 = vlaneseq
      %v708 = vshrl.u32 %v707, 7
      %v709 = vsub.s32 6, %v708
      %v710 = vrot.slane %v208, %v709
      %v711 = vlaneseq
      %v712 = vshrl.u32 %v711, 7
      %v713 = vsub.s32 6, %v712
      %v714 = vrot.slane %v209, %v713
      %v715 = vlaneseq
      %v716 = vshrl.u32 %v715, 7
      %v717 = vsub.s32 6, %v716
      %v718 = vrot.slane %v210, %v717
      %v719 = vlaneseq
      %v720 = vshrl.u32 %v719, 7
      %v721 = vsub.s32 6, %v720
      %v722 = vrot.slane %v211, %v721
      %v723 = vmul.f32 %v703, %v710
      %v724 = vmul.f32 %v701, %v714
      %v725 = vmul.f32 %v699, %v718
      %v726 = vmul.f32 %v705, %v722
      %v727 = vmul.f32 %v704, %v710
      %v728 = vmul.f32 %v702, %v714
      %v729 = vmul.f32 %v700, %v718
      %v730 = vmul.f32 %v706, %v722
      %731 = vset.pattern.permute.xlu0 7
      %732 = vperm.xlu0 %731, %v198
      %v733 = vpop.permute.xlu0 %732
      %735 = vset.pattern.permute.xlu0 7
      %736 = vperm.xlu0 %735, %v200
      %v737 = vpop.permute.xlu0 %736
      %v739 = vmul.f32 %v723, %v733
      %v740 = vmul.f32 %v724, %v733
      %v741 = vmul.f32 %v725, %v733
      %v742 = vmul.f32 %v726, %v733
      %v743 = vmul.f32 %v727, %v737
      %v744 = vmul.f32 %v728, %v737
      %v745 = vmul.f32 %v729, %v737
      %v746 = vmul.f32 %v730, %v737
      %v747 = vadd.f32 %v674, %v739
      %v748 = vadd.f32 %v675, %v740
      %v749 = vadd.f32 %v676, %v741
      %v750 = vadd.f32 %v677, %v742
      %v751 = vadd.f32 %v678, %v743
      %v752 = vadd.f32 %v679, %v744
      %v753 = vadd.f32 %v680, %v745
      %v754 = vadd.f32 %v681, %v746
      %755 = vrot.lane.b32.xlu0 %v216, 111
      %v756 = vpop.permute.xlu0 %755
      %757 = vrot.lane.b32.xlu0 %v220, 111
      %v758 = vpop.permute.xlu0 %757
      %759 = vrot.lane.b32.xlu0 %v217, 111
      %v760 = vpop.permute.xlu0 %759
      %761 = vrot.lane.b32.xlu0 %v221, 111
      %v762 = vpop.permute.xlu0 %761
      %763 = vrot.lane.b32.xlu0 %v218, 111
      %v764 = vpop.permute.xlu0 %763
      %765 = vrot.lane.b32.xlu0 %v222, 111
      %v766 = vpop.permute.xlu0 %765
      %767 = vrot.lane.b32.xlu0 %v219, 111
      %v768 = vpop.permute.xlu0 %767
      %769 = vrot.lane.b32.xlu0 %v223, 111
      %v770 = vpop.permute.xlu0 %769
      %vm771 = vcmp.lt.s32.totalorder %v259, 111
      %v772 = vsel %vm771, %v764, %v768
      %v773 = vsel %vm771, %v766, %v770
      %v774 = vsel %vm771, %v760, %v764
      %v775 = vsel %vm771, %v762, %v766
      %v776 = vsel %vm771, %v756, %v760
      %v777 = vsel %vm771, %v758, %v762
      %v778 = vsel %vm771, %v768, %v756
      %v779 = vsel %vm771, %v770, %v758
      %v780 = vlaneseq
      %v781 = vshrl.u32 %v780, 7
      %v782 = vsub.s32 7, %v781
      %v783 = vrot.slane %v208, %v782
      %v784 = vlaneseq
      %v785 = vshrl.u32 %v784, 7
      %v786 = vsub.s32 7, %v785
      %v787 = vrot.slane %v209, %v786
      %v788 = vlaneseq
      %v789 = vshrl.u32 %v788, 7
      %v790 = vsub.s32 7, %v789
      %v791 = vrot.slane %v210, %v790
      %v792 = vlaneseq
      %v793 = vshrl.u32 %v792, 7
      %v794 = vsub.s32 7, %v793
      %v795 = vrot.slane %v211, %v794
      %v796 = vmul.f32 %v776, %v783
      %v797 = vmul.f32 %v774, %v787
      %v798 = vmul.f32 %v772, %v791
      %v799 = vmul.f32 %v778, %v795
      %v800 = vmul.f32 %v777, %v783
      %v801 = vmul.f32 %v775, %v787
      %v802 = vmul.f32 %v773, %v791
      %v803 = vmul.f32 %v779, %v795
      %804 = vset.pattern.permute.xlu0 8
      %805 = vperm.xlu0 %804, %v198
      %v806 = vpop.permute.xlu0 %805
      %808 = vset.pattern.permute.xlu0 8
      %809 = vperm.xlu0 %808, %v200
      %v810 = vpop.permute.xlu0 %809
      %v812 = vmul.f32 %v796, %v806
      %v813 = vmul.f32 %v797, %v806
      %v814 = vmul.f32 %v798, %v806
      %v815 = vmul.f32 %v799, %v806
      %v816 = vmul.f32 %v800, %v810
      %v817 = vmul.f32 %v801, %v810
      %v818 = vmul.f32 %v802, %v810
      %v819 = vmul.f32 %v803, %v810
      %v820 = vadd.f32 %v747, %v812
      %v821 = vadd.f32 %v748, %v813
      %v822 = vadd.f32 %v749, %v814
      %v823 = vadd.f32 %v750, %v815
      %v824 = vadd.f32 %v751, %v816
      %v825 = vadd.f32 %v752, %v817
      %v826 = vadd.f32 %v753, %v818
      %v827 = vadd.f32 %v754, %v819
      %828 = vset.pattern.permute.xlu0 9
      %829 = vperm.xlu0 %828, %v198
      %v830 = vpop.permute.xlu0 %829
      %832 = vset.pattern.permute.xlu0 9
      %833 = vperm.xlu0 %832, %v200
      %v834 = vpop.permute.xlu0 %833
      %v836 = vadd.f32 %v820, %v830
      %v837 = vadd.f32 %v821, %v830
      %v838 = vadd.f32 %v822, %v830
      %v839 = vadd.f32 %v823, %v830
      %v840 = vadd.f32 %v824, %v834
      %v841 = vadd.f32 %v825, %v834
      %v842 = vadd.f32 %v826, %v834
      %v843 = vadd.f32 %v827, %v834
      %845 = vset.pattern.permute.xlu0 12
      %846 = vperm.xlu0 %845, %v202
      %v847 = vpop.permute.xlu0 %846
      %850 = vset.pattern.permute.xlu0 12
      %851 = vperm.xlu0 %850, %v203
      %v852 = vpop.permute.xlu0 %851
      %855 = vset.pattern.permute.xlu0 12
      %856 = vperm.xlu0 %855, %v204
      %v857 = vpop.permute.xlu0 %856
      %860 = vset.pattern.permute.xlu0 12
      %861 = vperm.xlu0 %860, %v205
      %v862 = vpop.permute.xlu0 %861
      %865 = vset.pattern.permute.xlu0 12
      %866 = vperm.xlu0 %865, %v206
      %v867 = vpop.permute.xlu0 %866
      %870 = vset.pattern.permute.xlu0 12
      %871 = vperm.xlu0 %870, %v207
      %v872 = vpop.permute.xlu0 %871
      %vm874 = vcmask 97280
      %v875 = vsel %vm874, %v202, 0
      %v877 = vsel %vm874, %v203, 0
      %v879 = vsel %vm874, %v204, 0
      %v881 = vsel %vm874, %v205, 0
      %v883 = vsel %vm874, %v206, 0
      %v885 = vsel %vm874, %v207, 0
      %vm887 = vcmask 1043456
      %v889 = vsel %vm887, %v840, 0
      %v892 = vsel %vm887, %v841, 0
      %v895 = vsel %vm887, %v842, 0
      %v898 = vsel %vm887, %v843, 0
      %900 = vmatprep.subr.mxu0 %v837
      %901 = vmatpush1.msra.mxu0 %v836
      %902 = vmatprep.subr.mxu0 %v892
      %903 = vmatpush1.msra.mxu0 %v889
      %904 = vmatprep.subr.mxu0 0.0
      %905 = vmatpush1.msra.mxu0 0.0
      %906 = vmatprep.subr.mxu0 0.0
      %907 = vmatpush1.msra.mxu0 0.0
      %908 = vmatprep.subr.mxu0 0.0
      %909 = vmatpush1.msra.mxu0 0.0
      %910 = vmatprep.subr.mxu0 0.0
      %911 = vmatpush1.msra.mxu0 0.0
      %912 = vmatprep.subr.mxu0 0.0
      %913 = vmatpush1.msra.mxu0 0.0
      %914 = vmatprep.subr.mxu0 0.0
      %915 = vmatpush1.msra.mxu0 0.0
      %916 = vmatprep.subr.mxu0 0.0
      %917 = vmatpush1.msra.mxu0 0.0
      %918 = vmatprep.subr.mxu0 0.0
      %919 = vmatpush1.msra.mxu0 0.0
      %920 = vmatprep.subr.mxu0 0.0
      %921 = vmatpush1.msra.mxu0 0.0
      %922 = vmatprep.subr.mxu0 0.0
      %923 = vmatpush1.msra.mxu0 0.0
      %924 = vmatprep.subr.mxu0 0.0
      %925 = vmatpush1.msra.mxu0 0.0
      %926 = vmatprep.subr.mxu0 0.0
      %927 = vmatpush1.msra.mxu0 0.0
      %928 = vmatprep.subr.mxu0 0.0
      %929 = vmatpush1.msra.mxu0 0.0
      %930 = vmatprep.subr.mxu0 0.0
      %931 = vmatpush1.msra.mxu0 0.0
      %932 = vmatprep.subr.mxu0 0.0
      %933 = vmatpush1.msra.mxu0 0.0
      %934 = vmatprep.subr.mxu0 0.0
      %935 = vmatpush1.msra.mxu0 0.0
      %936 = vmatprep.subr.mxu0 0.0
      %937 = vmatpush1.msra.mxu0 0.0
      %938 = vmatprep.subr.mxu0 0.0
      %939 = vmatpush1.msra.mxu0 0.0
      %940 = vmatprep.subr.mxu0 0.0
      %941 = vmatpush1.msra.mxu0 0.0
      %942 = vmatprep.subr.mxu0 0.0
      %943 = vmatpush1.msra.mxu0 0.0
      %944 = vmatprep.subr.mxu0 0.0
      %945 = vmatpush1.msra.mxu0 0.0
      %946 = vmatprep.subr.mxu0 0.0
      %947 = vmatpush1.msra.mxu0 0.0
      %948 = vmatprep.subr.mxu0 0.0
      %949 = vmatpush1.msra.mxu0 0.0
      %950 = vmatprep.subr.mxu0 0.0
      %951 = vmatpush1.msra.mxu0 0.0
      %952 = vmatprep.subr.mxu0 0.0
      %953 = vmatpush1.msra.mxu0 0.0
      %954 = vmatprep.subr.mxu0 0.0
      %955 = vmatpush1.msra.mxu0 0.0
      %956 = vmatprep.subr.mxu0 0.0
      %957 = vmatpush1.msra.mxu0 0.0
      %958 = vmatprep.subr.mxu0 0.0
      %959 = vmatpush1.msra.mxu0 0.0
      %960 = vmatprep.subr.mxu0 0.0
      %961 = vmatpush1.msra.mxu0 0.0
      %962 = vmatprep.subr.mxu0 0.0
      %963 = vmatpush1.msra.mxu0 0.0
      %964 = vmatprep.mubr.f32.mxu0 0.0
      %965 = vmatmul.mubr.f32.gmra.mrb[0].mxu0 %v875
      %v966 = vpop.f32.mrb[0].mxu0
      %v967 = vadd.f32 %v847, %v966
      %v968 = vpop.f32.mrb[0].mxu0
      %v969 = vadd.f32 %v847, %v968
      %970 = vmatprep.mubr.f32.mxu0 0.0
      %971 = vmatmul.mubr.f32.gmra.mrb[0].mxu0 %v877
      %v972 = vpop.f32.mrb[0].mxu0
      %v973 = vadd.f32 %v852, %v972
      %v974 = vpop.f32.mrb[0].mxu0
      %v975 = vadd.f32 %v852, %v974
      %976 = vmatprep.mubr.f32.mxu0 0.0
      %977 = vmatmul.mubr.f32.gmra.mrb[0].mxu0 %v879
      %v978 = vpop.f32.mrb[0].mxu0
      %v979 = vadd.f32 %v857, %v978
      %v980 = vpop.f32.mrb[0].mxu0
      %v981 = vadd.f32 %v857, %v980
      %982 = vmatprep.mubr.f32.mxu0 0.0
      %983 = vmatmul.mubr.f32.gmra.mrb[0].mxu0 %v881
      %v984 = vpop.f32.mrb[0].mxu0
      %v985 = vadd.f32 %v862, %v984
      %v986 = vpop.f32.mrb[0].mxu0
      %v987 = vadd.f32 %v862, %v986
      %988 = vmatprep.mubr.f32.mxu0 0.0
      %989 = vmatmul.mubr.f32.gmra.mrb[0].mxu0 %v883
      %v990 = vpop.f32.mrb[0].mxu0
      %v991 = vadd.f32 %v867, %v990
      %v992 = vpop.f32.mrb[0].mxu0
      %v993 = vadd.f32 %v867, %v992
      %994 = vmatprep.mubr.f32.mxu0 0.0
      %995 = vmatmul.mubr.f32.gmra.mrb[0].mxu0 %v885
      %v996 = vpop.f32.mrb[0].mxu0
      %v997 = vadd.f32 %v872, %v996
      %v998 = vpop.f32.mrb[0].mxu0
      %v999 = vadd.f32 %v872, %v998
      %1000 = vdwg.mxu0
      %1001 = vmatprep.subr.mxu0 %v839
      %1002 = vmatpush1.msra.mxu0 %v838
      %1003 = vmatprep.subr.mxu0 %v898
      %1004 = vmatpush1.msra.mxu0 %v895
      %1005 = vmatprep.subr.mxu0 0.0
      %1006 = vmatpush1.msra.mxu0 0.0
      %1007 = vmatprep.subr.mxu0 0.0
      %1008 = vmatpush1.msra.mxu0 0.0
      %1009 = vmatprep.subr.mxu0 0.0
      %1010 = vmatpush1.msra.mxu0 0.0
      %1011 = vmatprep.subr.mxu0 0.0
      %1012 = vmatpush1.msra.mxu0 0.0
      %1013 = vmatprep.subr.mxu0 0.0
      %1014 = vmatpush1.msra.mxu0 0.0
      %1015 = vmatprep.subr.mxu0 0.0
      %1016 = vmatpush1.msra.mxu0 0.0
      %1017 = vmatprep.subr.mxu0 0.0
      %1018 = vmatpush1.msra.mxu0 0.0
      %1019 = vmatprep.subr.mxu0 0.0
      %1020 = vmatpush1.msra.mxu0 0.0
      %1021 = vmatprep.subr.mxu0 0.0
      %1022 = vmatpush1.msra.mxu0 0.0
      %1023 = vmatprep.subr.mxu0 0.0
      %1024 = vmatpush1.msra.mxu0 0.0
      %1025 = vmatprep.subr.mxu0 0.0
      %1026 = vmatpush1.msra.mxu0 0.0
      %1027 = vmatprep.subr.mxu0 0.0
      %1028 = vmatpush1.msra.mxu0 0.0
      %1029 = vmatprep.subr.mxu0 0.0
      %1030 = vmatpush1.msra.mxu0 0.0
      %1031 = vmatprep.subr.mxu0 0.0
      %1032 = vmatpush1.msra.mxu0 0.0
      %1033 = vmatprep.subr.mxu0 0.0
      %1034 = vmatpush1.msra.mxu0 0.0
      %1035 = vmatprep.subr.mxu0 0.0
      %1036 = vmatpush1.msra.mxu0 0.0
      %1037 = vmatprep.subr.mxu0 0.0
      %1038 = vmatpush1.msra.mxu0 0.0
      %1039 = vmatprep.subr.mxu0 0.0
      %1040 = vmatpush1.msra.mxu0 0.0
      %1041 = vmatprep.subr.mxu0 0.0
      %1042 = vmatpush1.msra.mxu0 0.0
      %1043 = vmatprep.subr.mxu0 0.0
      %1044 = vmatpush1.msra.mxu0 0.0
      %1045 = vmatprep.subr.mxu0 0.0
      %1046 = vmatpush1.msra.mxu0 0.0
      %1047 = vmatprep.subr.mxu0 0.0
      %1048 = vmatpush1.msra.mxu0 0.0
      %1049 = vmatprep.subr.mxu0 0.0
      %1050 = vmatpush1.msra.mxu0 0.0
      %1051 = vmatprep.subr.mxu0 0.0
      %1052 = vmatpush1.msra.mxu0 0.0
      %1053 = vmatprep.subr.mxu0 0.0
      %1054 = vmatpush1.msra.mxu0 0.0
      %1055 = vmatprep.subr.mxu0 0.0
      %1056 = vmatpush1.msra.mxu0 0.0
      %1057 = vmatprep.subr.mxu0 0.0
      %1058 = vmatpush1.msra.mxu0 0.0
      %1059 = vmatprep.subr.mxu0 0.0
      %1060 = vmatpush1.msra.mxu0 0.0
      %1061 = vmatprep.subr.mxu0 0.0
      %1062 = vmatpush1.msra.mxu0 0.0
      %1063 = vmatprep.subr.mxu0 0.0
      %1064 = vmatpush1.msra.mxu0 0.0
      %1065 = vmatprep.mubr.f32.mxu0 0.0
      %1066 = vmatmul.mubr.f32.gmra.mrb[0].mxu0 %v875
      %v1067 = vpop.f32.mrb[0].mxu0
      %v1068 = vadd.f32 %v847, %v1067
      %v1069 = vpop.f32.mrb[0].mxu0
      %v1070 = vadd.f32 %v847, %v1069
      %1071 = vmatprep.mubr.f32.mxu0 0.0
      %1072 = vmatmul.mubr.f32.gmra.mrb[0].mxu0 %v877
      %v1073 = vpop.f32.mrb[0].mxu0
      %v1074 = vadd.f32 %v852, %v1073
      %v1075 = vpop.f32.mrb[0].mxu0
      %v1076 = vadd.f32 %v852, %v1075
      %1077 = vmatprep.mubr.f32.mxu0 0.0
      %1078 = vmatmul.mubr.f32.gmra.mrb[0].mxu0 %v879
      %v1079 = vpop.f32.mrb[0].mxu0
      %v1080 = vadd.f32 %v857, %v1079
      %v1081 = vpop.f32.mrb[0].mxu0
      %v1082 = vadd.f32 %v857, %v1081
      %1083 = vmatprep.mubr.f32.mxu0 0.0
      %1084 = vmatmul.mubr.f32.gmra.mrb[0].mxu0 %v881
      %v1085 = vpop.f32.mrb[0].mxu0
      %v1086 = vadd.f32 %v862, %v1085
      %v1087 = vpop.f32.mrb[0].mxu0
      %v1088 = vadd.f32 %v862, %v1087
      %1089 = vmatprep.mubr.f32.mxu0 0.0
      %1090 = vmatmul.mubr.f32.gmra.mrb[0].mxu0 %v883
      %v1091 = vpop.f32.mrb[0].mxu0
      %v1092 = vadd.f32 %v867, %v1091
      %v1093 = vpop.f32.mrb[0].mxu0
      %v1094 = vadd.f32 %v867, %v1093
      %1095 = vmatprep.mubr.f32.mxu0 0.0
      %1096 = vmatmul.mubr.f32.gmra.mrb[0].mxu0 %v885
      %v1097 = vpop.f32.mrb[0].mxu0
      %v1098 = vadd.f32 %v872, %v1097
      %v1099 = vpop.f32.mrb[0].mxu0
      %v1100 = vadd.f32 %v872, %v1099
      %1101 = vdwg.mxu0
      %v1102 = vmul.f32 %v967, 0.5
      %v1103 = vmul.f32 %v969, 0.5
      %v1104 = vmul.f32 %v1068, 0.5
      %v1105 = vmul.f32 %v1070, 0.5
      %v1106 = vmul.f32 %v973, 0.5
      %v1107 = vmul.f32 %v975, 0.5
      %v1108 = vmul.f32 %v1074, 0.5
      %v1109 = vmul.f32 %v1076, 0.5
      %v1110 = vmul.f32 %v979, 0.5
      %v1111 = vmul.f32 %v981, 0.5
      %v1112 = vmul.f32 %v1080, 0.5
      %v1113 = vmul.f32 %v1082, 0.5
      %v1114 = vmul.f32 %v985, 0.5
      %v1115 = vmul.f32 %v987, 0.5
      %v1116 = vmul.f32 %v1086, 0.5
      %v1117 = vmul.f32 %v1088, 0.5
      %v1118 = vmul.f32 %v991, 0.5
      %v1119 = vmul.f32 %v993, 0.5
      %v1120 = vmul.f32 %v1092, 0.5
      %v1121 = vmul.f32 %v1094, 0.5
      %v1122 = vmul.f32 %v997, 0.5
      %v1123 = vmul.f32 %v999, 0.5
      %v1124 = vmul.f32 %v1098, 0.5
      %v1125 = vmul.f32 %v1100, 0.5
      %v1126 = vmul.f32 %v967, 0.70710677
      %v1127 = vmul.f32 %v969, 0.70710677
      %v1128 = vmul.f32 %v1068, 0.70710677
      %v1129 = vmul.f32 %v1070, 0.70710677
      %v1130 = vmul.f32 %v973, 0.70710677
      %v1131 = vmul.f32 %v975, 0.70710677
      %v1132 = vmul.f32 %v1074, 0.70710677
      %v1133 = vmul.f32 %v1076, 0.70710677
      %v1134 = vmul.f32 %v979, 0.70710677
      %v1135 = vmul.f32 %v981, 0.70710677
      %v1136 = vmul.f32 %v1080, 0.70710677
      %v1137 = vmul.f32 %v1082, 0.70710677
      %v1138 = vmul.f32 %v985, 0.70710677
      %v1139 = vmul.f32 %v987, 0.70710677
      %v1140 = vmul.f32 %v1086, 0.70710677
      %v1141 = vmul.f32 %v1088, 0.70710677
      %v1142 = vmul.f32 %v991, 0.70710677
      %v1143 = vmul.f32 %v993, 0.70710677
      %v1144 = vmul.f32 %v1092, 0.70710677
      %v1145 = vmul.f32 %v1094, 0.70710677
      %v1146 = vmul.f32 %v997, 0.70710677
      %v1147 = vmul.f32 %v999, 0.70710677
      %v1148 = vmul.f32 %v1098, 0.70710677
      %v1149 = vmul.f32 %v1100, 0.70710677
      %v1150 = verf.f32.pop %v1126
      %v1151 = verf.f32.pop %v1127
      %v1152 = verf.f32.pop %v1128
      %v1153 = verf.f32.pop %v1129
      %v1154 = verf.f32.pop %v1130
      %v1155 = verf.f32.pop %v1131
      %v1156 = verf.f32.pop %v1132
      %v1157 = verf.f32.pop %v1133
      %v1158 = verf.f32.pop %v1134
      %v1159 = verf.f32.pop %v1135
      %v1160 = verf.f32.pop %v1136
      %v1161 = verf.f32.pop %v1137
      %v1162 = verf.f32.pop %v1138
      %v1163 = verf.f32.pop %v1139
      %v1164 = verf.f32.pop %v1140
      %v1165 = verf.f32.pop %v1141
      %v1166 = verf.f32.pop %v1142
      %v1167 = verf.f32.pop %v1143
      %v1168 = verf.f32.pop %v1144
      %v1169 = verf.f32.pop %v1145
      %v1170 = verf.f32.pop %v1146
      %v1171 = verf.f32.pop %v1147
      %v1172 = verf.f32.pop %v1148
      %v1173 = verf.f32.pop %v1149
      %v1174 = vadd.f32 %v1150, 1.0
      %v1175 = vadd.f32 %v1151, 1.0
      %v1176 = vadd.f32 %v1152, 1.0
      %v1177 = vadd.f32 %v1153, 1.0
      %v1178 = vadd.f32 %v1154, 1.0
      %v1179 = vadd.f32 %v1155, 1.0
      %v1180 = vadd.f32 %v1156, 1.0
      %v1181 = vadd.f32 %v1157, 1.0
      %v1182 = vadd.f32 %v1158, 1.0
      %v1183 = vadd.f32 %v1159, 1.0
      %v1184 = vadd.f32 %v1160, 1.0
      %v1185 = vadd.f32 %v1161, 1.0
      %v1186 = vadd.f32 %v1162, 1.0
      %v1187 = vadd.f32 %v1163, 1.0
      %v1188 = vadd.f32 %v1164, 1.0
      %v1189 = vadd.f32 %v1165, 1.0
      %v1190 = vadd.f32 %v1166, 1.0
      %v1191 = vadd.f32 %v1167, 1.0
      %v1192 = vadd.f32 %v1168, 1.0
      %v1193 = vadd.f32 %v1169, 1.0
      %v1194 = vadd.f32 %v1170, 1.0
      %v1195 = vadd.f32 %v1171, 1.0
      %v1196 = vadd.f32 %v1172, 1.0
      %v1197 = vadd.f32 %v1173, 1.0
      %v1198 = vmul.f32 %v1102, %v1174
      %v1199 = vmul.f32 %v1103, %v1175
      %v1200 = vmul.f32 %v1104, %v1176
      %v1201 = vmul.f32 %v1105, %v1177
      %v1202 = vmul.f32 %v1106, %v1178
      %v1203 = vmul.f32 %v1107, %v1179
      %v1204 = vmul.f32 %v1108, %v1180
      %v1205 = vmul.f32 %v1109, %v1181
      %v1206 = vmul.f32 %v1110, %v1182
      %v1207 = vmul.f32 %v1111, %v1183
      %v1208 = vmul.f32 %v1112, %v1184
      %v1209 = vmul.f32 %v1113, %v1185
      %v1210 = vmul.f32 %v1114, %v1186
      %v1211 = vmul.f32 %v1115, %v1187
      %v1212 = vmul.f32 %v1116, %v1188
      %v1213 = vmul.f32 %v1117, %v1189
      %v1214 = vmul.f32 %v1118, %v1190
      %v1215 = vmul.f32 %v1119, %v1191
      %v1216 = vmul.f32 %v1120, %v1192
      %v1217 = vmul.f32 %v1121, %v1193
      %v1218 = vmul.f32 %v1122, %v1194
      %v1219 = vmul.f32 %v1123, %v1195
      %v1220 = vmul.f32 %v1124, %v1196
      %v1221 = vmul.f32 %v1125, %v1197
      %1222 = vset.pattern.permute.xlu0 10
      %1223 = vperm.xlu0 %1222, %v198
      %v1224 = vpop.permute.xlu0 %1223
      %1226 = vset.pattern.permute.xlu0 10
      %1227 = vperm.xlu0 %1226, %v200
      %v1228 = vpop.permute.xlu0 %1227
      %1230 = vrot.lane.b32.xlu0 %v198, 116
      %v1231 = vpop.permute.xlu0 %1230
      %1232 = vrot.lane.b32.xlu0 %v200, 116
      %v1233 = vpop.permute.xlu0 %1232
      %vm1234 = vcmask 392192
      %v1235 = vsel %vm1234, %v1231, 0
      %v1237 = vsel %vm1234, %v1233, 0
      %1239 = vmatprep.subr.mxu0 %v1199
      %1240 = vmatpush1.msra.mxu0 %v1198
      %1241 = vmatprep.subr.mxu0 %v1203
      %1242 = vmatpush1.msra.mxu0 %v1202
      %1243 = vmatprep.subr.mxu0 %v1207
      %1244 = vmatpush1.msra.mxu0 %v1206
      %1245 = vmatprep.subr.mxu0 %v1211
      %1246 = vmatpush1.msra.mxu0 %v1210
      %1247 = vmatprep.subr.mxu0 %v1215
      %1248 = vmatpush1.msra.mxu0 %v1214
      %1249 = vmatprep.subr.mxu0 %v1219
      %1250 = vmatpush1.msra.mxu0 %v1218
      %1251 = vmatprep.subr.mxu0 0.0
      %1252 = vmatpush1.msra.mxu0 0.0
      %1253 = vmatprep.subr.mxu0 0.0
      %1254 = vmatpush1.msra.mxu0 0.0
      %1255 = vmatprep.subr.mxu0 0.0
      %1256 = vmatpush1.msra.mxu0 0.0
      %1257 = vmatprep.subr.mxu0 0.0
      %1258 = vmatpush1.msra.mxu0 0.0
      %1259 = vmatprep.subr.mxu0 0.0
      %1260 = vmatpush1.msra.mxu0 0.0
      %1261 = vmatprep.subr.mxu0 0.0
      %1262 = vmatpush1.msra.mxu0 0.0
      %1263 = vmatprep.subr.mxu0 0.0
      %1264 = vmatpush1.msra.mxu0 0.0
      %1265 = vmatprep.subr.mxu0 0.0
      %1266 = vmatpush1.msra.mxu0 0.0
      %1267 = vmatprep.subr.mxu0 0.0
      %1268 = vmatpush1.msra.mxu0 0.0
      %1269 = vmatprep.subr.mxu0 0.0
      %1270 = vmatpush1.msra.mxu0 0.0
      %1271 = vmatprep.subr.mxu0 0.0
      %1272 = vmatpush1.msra.mxu0 0.0
      %1273 = vmatprep.subr.mxu0 0.0
      %1274 = vmatpush1.msra.mxu0 0.0
      %1275 = vmatprep.subr.mxu0 0.0
      %1276 = vmatpush1.msra.mxu0 0.0
      %1277 = vmatprep.subr.mxu0 0.0
      %1278 = vmatpush1.msra.mxu0 0.0
      %1279 = vmatprep.subr.mxu0 0.0
      %1280 = vmatpush1.msra.mxu0 0.0
      %1281 = vmatprep.subr.mxu0 0.0
      %1282 = vmatpush1.msra.mxu0 0.0
      %1283 = vmatprep.subr.mxu0 0.0
      %1284 = vmatpush1.msra.mxu0 0.0
      %1285 = vmatprep.subr.mxu0 0.0
      %1286 = vmatpush1.msra.mxu0 0.0
      %1287 = vmatprep.subr.mxu0 0.0
      %1288 = vmatpush1.msra.mxu0 0.0
      %1289 = vmatprep.subr.mxu0 0.0
      %1290 = vmatpush1.msra.mxu0 0.0
      %1291 = vmatprep.subr.mxu0 0.0
      %1292 = vmatpush1.msra.mxu0 0.0
      %1293 = vmatprep.subr.mxu0 0.0
      %1294 = vmatpush1.msra.mxu0 0.0
      %1295 = vmatprep.subr.mxu0 0.0
      %1296 = vmatpush1.msra.mxu0 0.0
      %1297 = vmatprep.subr.mxu0 0.0
      %1298 = vmatpush1.msra.mxu0 0.0
      %1299 = vmatprep.subr.mxu0 0.0
      %1300 = vmatpush1.msra.mxu0 0.0
      %1301 = vmatprep.subr.mxu0 0.0
      %1302 = vmatpush1.msra.mxu0 0.0
      %1303 = vmatprep.mubr.f32.mxu0 0.0
      %1304 = vmatmul.mubr.f32.gmra.mrb[0].mxu0 %v1235
      %v1305 = vpop.f32.mrb[0].mxu0
      %v1306 = vadd.f32 %v1224, %v1305
      %v1307 = vpop.f32.mrb[0].mxu0
      %v1308 = vadd.f32 %v1224, %v1307
      %1309 = vmatprep.mubr.f32.mxu0 0.0
      %1310 = vmatmul.mubr.f32.gmra.mrb[0].mxu0 %v1237
      %v1311 = vpop.f32.mrb[0].mxu0
      %v1312 = vadd.f32 %v1228, %v1311
      %v1313 = vpop.f32.mrb[0].mxu0
      %v1314 = vadd.f32 %v1228, %v1313
      %1315 = vdwg.mxu0
      %1316 = vmatprep.subr.mxu0 %v1201
      %1317 = vmatpush1.msra.mxu0 %v1200
      %1318 = vmatprep.subr.mxu0 %v1205
      %1319 = vmatpush1.msra.mxu0 %v1204
      %1320 = vmatprep.subr.mxu0 %v1209
      %1321 = vmatpush1.msra.mxu0 %v1208
      %1322 = vmatprep.subr.mxu0 %v1213
      %1323 = vmatpush1.msra.mxu0 %v1212
      %1324 = vmatprep.subr.mxu0 %v1217
      %1325 = vmatpush1.msra.mxu0 %v1216
      %1326 = vmatprep.subr.mxu0 %v1221
      %1327 = vmatpush1.msra.mxu0 %v1220
      %1328 = vmatprep.subr.mxu0 0.0
      %1329 = vmatpush1.msra.mxu0 0.0
      %1330 = vmatprep.subr.mxu0 0.0
      %1331 = vmatpush1.msra.mxu0 0.0
      %1332 = vmatprep.subr.mxu0 0.0
      %1333 = vmatpush1.msra.mxu0 0.0
      %1334 = vmatprep.subr.mxu0 0.0
      %1335 = vmatpush1.msra.mxu0 0.0
      %1336 = vmatprep.subr.mxu0 0.0
      %1337 = vmatpush1.msra.mxu0 0.0
      %1338 = vmatprep.subr.mxu0 0.0
      %1339 = vmatpush1.msra.mxu0 0.0
      %1340 = vmatprep.subr.mxu0 0.0
      %1341 = vmatpush1.msra.mxu0 0.0
      %1342 = vmatprep.subr.mxu0 0.0
      %1343 = vmatpush1.msra.mxu0 0.0
      %1344 = vmatprep.subr.mxu0 0.0
      %1345 = vmatpush1.msra.mxu0 0.0
      %1346 = vmatprep.subr.mxu0 0.0
      %1347 = vmatpush1.msra.mxu0 0.0
      %1348 = vmatprep.subr.mxu0 0.0
      %1349 = vmatpush1.msra.mxu0 0.0
      %1350 = vmatprep.subr.mxu0 0.0
      %1351 = vmatpush1.msra.mxu0 0.0
      %1352 = vmatprep.subr.mxu0 0.0
      %1353 = vmatpush1.msra.mxu0 0.0
      %1354 = vmatprep.subr.mxu0 0.0
      %1355 = vmatpush1.msra.mxu0 0.0
      %1356 = vmatprep.subr.mxu0 0.0
      %1357 = vmatpush1.msra.mxu0 0.0
      %1358 = vmatprep.subr.mxu0 0.0
      %1359 = vmatpush1.msra.mxu0 0.0
      %1360 = vmatprep.subr.mxu0 0.0
      %1361 = vmatpush1.msra.mxu0 0.0
      %1362 = vmatprep.subr.mxu0 0.0
      %1363 = vmatpush1.msra.mxu0 0.0
      %1364 = vmatprep.subr.mxu0 0.0
      %1365 = vmatpush1.msra.mxu0 0.0
      %1366 = vmatprep.subr.mxu0 0.0
      %1367 = vmatpush1.msra.mxu0 0.0
      %1368 = vmatprep.subr.mxu0 0.0
      %1369 = vmatpush1.msra.mxu0 0.0
      %1370 = vmatprep.subr.mxu0 0.0
      %1371 = vmatpush1.msra.mxu0 0.0
      %1372 = vmatprep.subr.mxu0 0.0
      %1373 = vmatpush1.msra.mxu0 0.0
      %1374 = vmatprep.subr.mxu0 0.0
      %1375 = vmatpush1.msra.mxu0 0.0
      %1376 = vmatprep.subr.mxu0 0.0
      %1377 = vmatpush1.msra.mxu0 0.0
      %1378 = vmatprep.subr.mxu0 0.0
      %1379 = vmatpush1.msra.mxu0 0.0
      %1380 = vmatprep.mubr.f32.mxu0 0.0
      %1381 = vmatmul.mubr.f32.gmra.mrb[0].mxu0 %v1235
      %v1382 = vpop.f32.mrb[0].mxu0
      %v1383 = vadd.f32 %v1224, %v1382
      %v1384 = vpop.f32.mrb[0].mxu0
      %v1385 = vadd.f32 %v1224, %v1384
      %1386 = vmatprep.mubr.f32.mxu0 0.0
      %1387 = vmatmul.mubr.f32.gmra.mrb[0].mxu0 %v1237
      %v1388 = vpop.f32.mrb[0].mxu0
      %v1389 = vadd.f32 %v1228, %v1388
      %v1390 = vpop.f32.mrb[0].mxu0
      %v1391 = vadd.f32 %v1228, %v1390
      %1392 = vdwg.mxu0
      %1393 = vset.pattern.permute.xlu0 11
      %1394 = vperm.xlu0 %1393, %v198
      %v1395 = vpop.permute.xlu0 %1394
      %1397 = vset.pattern.permute.xlu0 11
      %1398 = vperm.xlu0 %1397, %v200
      %v1399 = vpop.permute.xlu0 %1398
      %v1401 = vmul.f32 %v1395, %v1306
      %v1402 = vmul.f32 %v1395, %v1308
      %v1403 = vmul.f32 %v1395, %v1383
      %v1404 = vmul.f32 %v1395, %v1385
      %v1405 = vmul.f32 %v1399, %v1312
      %v1406 = vmul.f32 %v1399, %v1314
      %v1407 = vmul.f32 %v1399, %v1389
      %v1408 = vmul.f32 %v1399, %v1391
      %v1409 = vadd.f32 %v216, %v1401
      %v1410 = vadd.f32 %v217, %v1402
      %v1411 = vadd.f32 %v218, %v1403
      %v1412 = vadd.f32 %v219, %v1404
      %v1413 = vadd.f32 %v220, %v1405
      %v1414 = vadd.f32 %v221, %v1406
      %v1415 = vadd.f32 %v222, %v1407
      %v1416 = vadd.f32 %v223, %v1408
      %1417 = vset.pattern.permute.xlu0 64
      %1418 = vperm.xlu0 %1417, %v198
      %v1419 = vpop.permute.xlu0 %1418
      %1421 = vset.pattern.permute.xlu0 64
      %1422 = vperm.xlu0 %1421, %v200
      %v1423 = vpop.permute.xlu0 %1422
      %v1425 = vmul.f32 %v1409, %v1419
      %v1426 = vmul.f32 %v1410, %v1419
      %v1427 = vmul.f32 %v1411, %v1419
      %v1428 = vmul.f32 %v1412, %v1419
      %v1429 = vmul.f32 %v1413, %v1423
      %v1430 = vmul.f32 %v1414, %v1423
      %v1431 = vmul.f32 %v1415, %v1423
      %v1432 = vmul.f32 %v1416, %v1423
      %1433 = vrot.lane.b32.xlu0 %v1409, 17
      %v1434 = vpop.permute.xlu0 %1433
      %1435 = vrot.lane.b32.xlu0 %v1413, 17
      %v1436 = vpop.permute.xlu0 %1435
      %1437 = vrot.lane.b32.xlu0 %v1410, 17
      %v1438 = vpop.permute.xlu0 %1437
      %1439 = vrot.lane.b32.xlu0 %v1414, 17
      %v1440 = vpop.permute.xlu0 %1439
      %1441 = vrot.lane.b32.xlu0 %v1411, 17
      %v1442 = vpop.permute.xlu0 %1441
      %1443 = vrot.lane.b32.xlu0 %v1415, 17
      %v1444 = vpop.permute.xlu0 %1443
      %1445 = vrot.lane.b32.xlu0 %v1412, 17
      %v1446 = vpop.permute.xlu0 %1445
      %1447 = vrot.lane.b32.xlu0 %v1416, 17
      %v1448 = vpop.permute.xlu0 %1447
      %v1449 = vsel %vm260, %v1442, %v1446
      %v1450 = vsel %vm260, %v1444, %v1448
      %v1451 = vsel %vm260, %v1438, %v1442
      %v1452 = vsel %vm260, %v1440, %v1444
      %v1453 = vsel %vm260, %v1434, %v1438
      %v1454 = vsel %vm260, %v1436, %v1440
      %v1455 = vsel %vm260, %v1446, %v1434
      %v1456 = vsel %vm260, %v1448, %v1436
      %v1457 = vmul.f32 %v1455, %v272
      %v1458 = vmul.f32 %v1453, %v276
      %v1459 = vmul.f32 %v1451, %v280
      %v1460 = vmul.f32 %v1449, %v284
      %v1461 = vmul.f32 %v1456, %v272
      %v1462 = vmul.f32 %v1454, %v276
      %v1463 = vmul.f32 %v1452, %v280
      %v1464 = vmul.f32 %v1450, %v284
      %1465 = vset.pattern.permute.xlu0 60
      %1466 = vperm.xlu0 %1465, %v198
      %v1467 = vpop.permute.xlu0 %1466
      %1469 = vset.pattern.permute.xlu0 60
      %1470 = vperm.xlu0 %1469, %v200
      %v1471 = vpop.permute.xlu0 %1470
      %v1473 = vmul.f32 %v1457, %v1467
      %v1474 = vmul.f32 %v1458, %v1467
      %v1475 = vmul.f32 %v1459, %v1467
      %v1476 = vmul.f32 %v1460, %v1467
      %v1477 = vmul.f32 %v1461, %v1471
      %v1478 = vmul.f32 %v1462, %v1471
      %v1479 = vmul.f32 %v1463, %v1471
      %v1480 = vmul.f32 %v1464, %v1471
      %v1481 = vadd.f32 %v1425, %v1473
      %v1482 = vadd.f32 %v1426, %v1474
      %v1483 = vadd.f32 %v1427, %v1475
      %v1484 = vadd.f32 %v1428, %v1476
      %v1485 = vadd.f32 %v1429, %v1477
      %v1486 = vadd.f32 %v1430, %v1478
      %v1487 = vadd.f32 %v1431, %v1479
      %v1488 = vadd.f32 %v1432, %v1480
      %1489 = vrot.lane.b32.xlu0 %v1409, 16
      %v1490 = vpop.permute.xlu0 %1489
      %1491 = vrot.lane.b32.xlu0 %v1413, 16
      %v1492 = vpop.permute.xlu0 %1491
      %1493 = vrot.lane.b32.xlu0 %v1410, 16
      %v1494 = vpop.permute.xlu0 %1493
      %1495 = vrot.lane.b32.xlu0 %v1414, 16
      %v1496 = vpop.permute.xlu0 %1495
      %1497 = vrot.lane.b32.xlu0 %v1411, 16
      %v1498 = vpop.permute.xlu0 %1497
      %1499 = vrot.lane.b32.xlu0 %v1415, 16
      %v1500 = vpop.permute.xlu0 %1499
      %1501 = vrot.lane.b32.xlu0 %v1412, 16
      %v1502 = vpop.permute.xlu0 %1501
      %1503 = vrot.lane.b32.xlu0 %v1416, 16
      %v1504 = vpop.permute.xlu0 %1503
      %v1505 = vsel %vm333, %v1498, %v1502
      %v1506 = vsel %vm333, %v1500, %v1504
      %v1507 = vsel %vm333, %v1494, %v1498
      %v1508 = vsel %vm333, %v1496, %v1500
      %v1509 = vsel %vm333, %v1490, %v1494
      %v1510 = vsel %vm333, %v1492, %v1496
      %v1511 = vsel %vm333, %v1502, %v1490
      %v1512 = vsel %vm333, %v1504, %v1492
      %v1513 = vmul.f32 %v1511, %v345
      %v1514 = vmul.f32 %v1509, %v349
      %v1515 = vmul.f32 %v1507, %v353
      %v1516 = vmul.f32 %v1505, %v357
      %v1517 = vmul.f32 %v1512, %v345
      %v1518 = vmul.f32 %v1510, %v349
      %v1519 = vmul.f32 %v1508, %v353
      %v1520 = vmul.f32 %v1506, %v357
      %1521 = vset.pattern.permute.xlu0 61
      %1522 = vperm.xlu0 %1521, %v198
      %v1523 = vpop.permute.xlu0 %1522
      %1525 = vset.pattern.permute.xlu0 61
      %1526 = vperm.xlu0 %1525, %v200
      %v1527 = vpop.permute.xlu0 %1526
      %v1529 = vmul.f32 %v1513, %v1523
      %v1530 = vmul.f32 %v1514, %v1523
      %v1531 = vmul.f32 %v1515, %v1523
      %v1532 = vmul.f32 %v1516, %v1523
      %v1533 = vmul.f32 %v1517, %v1527
      %v1534 = vmul.f32 %v1518, %v1527
      %v1535 = vmul.f32 %v1519, %v1527
      %v1536 = vmul.f32 %v1520, %v1527
      %v1537 = vadd.f32 %v1481, %v1529
      %v1538 = vadd.f32 %v1482, %v1530
      %v1539 = vadd.f32 %v1483, %v1531
      %v1540 = vadd.f32 %v1484, %v1532
      %v1541 = vadd.f32 %v1485, %v1533
      %v1542 = vadd.f32 %v1486, %v1534
      %v1543 = vadd.f32 %v1487, %v1535
      %v1544 = vadd.f32 %v1488, %v1536
      %1545 = vrot.lane.b32.xlu0 %v1409, 15
      %v1546 = vpop.permute.xlu0 %1545
      %1547 = vrot.lane.b32.xlu0 %v1413, 15
      %v1548 = vpop.permute.xlu0 %1547
      %1549 = vrot.lane.b32.xlu0 %v1410, 15
      %v1550 = vpop.permute.xlu0 %1549
      %1551 = vrot.lane.b32.xlu0 %v1414, 15
      %v1552 = vpop.permute.xlu0 %1551
      %1553 = vrot.lane.b32.xlu0 %v1411, 15
      %v1554 = vpop.permute.xlu0 %1553
      %1555 = vrot.lane.b32.xlu0 %v1415, 15
      %v1556 = vpop.permute.xlu0 %1555
      %1557 = vrot.lane.b32.xlu0 %v1412, 15
      %v1558 = vpop.permute.xlu0 %1557
      %1559 = vrot.lane.b32.xlu0 %v1416, 15
      %v1560 = vpop.permute.xlu0 %1559
      %v1561 = vsel %vm406, %v1554, %v1558
      %v1562 = vsel %vm406, %v1556, %v1560
      %v1563 = vsel %vm406, %v1550, %v1554
      %v1564 = vsel %vm406, %v1552, %v1556
      %v1565 = vsel %vm406, %v1546, %v1550
      %v1566 = vsel %vm406, %v1548, %v1552
      %v1567 = vsel %vm406, %v1558, %v1546
      %v1568 = vsel %vm406, %v1560, %v1548
      %v1569 = vmul.f32 %v1567, %v418
      %v1570 = vmul.f32 %v1565, %v422
      %v1571 = vmul.f32 %v1563, %v426
      %v1572 = vmul.f32 %v1561, %v430
      %v1573 = vmul.f32 %v1568, %v418
      %v1574 = vmul.f32 %v1566, %v422
      %v1575 = vmul.f32 %v1564, %v426
      %v1576 = vmul.f32 %v1562, %v430
      %1577 = vset.pattern.permute.xlu0 62
      %1578 = vperm.xlu0 %1577, %v198
      %v1579 = vpop.permute.xlu0 %1578
      %1581 = vset.pattern.permute.xlu0 62
      %1582 = vperm.xlu0 %1581, %v200
      %v1583 = vpop.permute.xlu0 %1582
      %v1585 = vmul.f32 %v1569, %v1579
      %v1586 = vmul.f32 %v1570, %v1579
      %v1587 = vmul.f32 %v1571, %v1579
      %v1588 = vmul.f32 %v1572, %v1579
      %v1589 = vmul.f32 %v1573, %v1583
      %v1590 = vmul.f32 %v1574, %v1583
      %v1591 = vmul.f32 %v1575, %v1583
      %v1592 = vmul.f32 %v1576, %v1583
      %v1593 = vadd.f32 %v1537, %v1585
      %v1594 = vadd.f32 %v1538, %v1586
      %v1595 = vadd.f32 %v1539, %v1587
      %v1596 = vadd.f32 %v1540, %v1588
      %v1597 = vadd.f32 %v1541, %v1589
      %v1598 = vadd.f32 %v1542, %v1590
      %v1599 = vadd.f32 %v1543, %v1591
      %v1600 = vadd.f32 %v1544, %v1592
      %1601 = vrot.lane.b32.xlu0 %v1409, 1
      %v1602 = vpop.permute.xlu0 %1601
      %1603 = vrot.lane.b32.xlu0 %v1413, 1
      %v1604 = vpop.permute.xlu0 %1603
      %1605 = vrot.lane.b32.xlu0 %v1410, 1
      %v1606 = vpop.permute.xlu0 %1605
      %1607 = vrot.lane.b32.xlu0 %v1414, 1
      %v1608 = vpop.permute.xlu0 %1607
      %1609 = vrot.lane.b32.xlu0 %v1411, 1
      %v1610 = vpop.permute.xlu0 %1609
      %1611 = vrot.lane.b32.xlu0 %v1415, 1
      %v1612 = vpop.permute.xlu0 %1611
      %1613 = vrot.lane.b32.xlu0 %v1412, 1
      %v1614 = vpop.permute.xlu0 %1613
      %1615 = vrot.lane.b32.xlu0 %v1416, 1
      %v1616 = vpop.permute.xlu0 %1615
      %v1617 = vsel %vm479, %v1610, %v1614
      %v1618 = vsel %vm479, %v1612, %v1616
      %v1619 = vsel %vm479, %v1606, %v1610
      %v1620 = vsel %vm479, %v1608, %v1612
      %v1621 = vsel %vm479, %v1602, %v1606
      %v1622 = vsel %vm479, %v1604, %v1608
      %v1623 = vsel %vm479, %v1614, %v1602
      %v1624 = vsel %vm479, %v1616, %v1604
      %v1625 = vmul.f32 %v1623, %v491
      %v1626 = vmul.f32 %v1621, %v495
      %v1627 = vmul.f32 %v1619, %v499
      %v1628 = vmul.f32 %v1617, %v503
      %v1629 = vmul.f32 %v1624, %v491
      %v1630 = vmul.f32 %v1622, %v495
      %v1631 = vmul.f32 %v1620, %v499
      %v1632 = vmul.f32 %v1618, %v503
      %1633 = vset.pattern.permute.xlu0 63
      %1634 = vperm.xlu0 %1633, %v198
      %v1635 = vpop.permute.xlu0 %1634
      %1637 = vset.pattern.permute.xlu0 63
      %1638 = vperm.xlu0 %1637, %v200
      %v1639 = vpop.permute.xlu0 %1638
      %v1641 = vmul.f32 %v1625, %v1635
      %v1642 = vmul.f32 %v1626, %v1635
      %v1643 = vmul.f32 %v1627, %v1635
      %v1644 = vmul.f32 %v1628, %v1635
      %v1645 = vmul.f32 %v1629, %v1639
      %v1646 = vmul.f32 %v1630, %v1639
      %v1647 = vmul.f32 %v1631, %v1639
      %v1648 = vmul.f32 %v1632, %v1639
      %v1649 = vadd.f32 %v1593, %v1641
      %v1650 = vadd.f32 %v1594, %v1642
      %v1651 = vadd.f32 %v1595, %v1643
      %v1652 = vadd.f32 %v1596, %v1644
      %v1653 = vadd.f32 %v1597, %v1645
      %v1654 = vadd.f32 %v1598, %v1646
      %v1655 = vadd.f32 %v1599, %v1647
      %v1656 = vadd.f32 %v1600, %v1648
      %1657 = vrot.lane.b32.xlu0 %v1409, 127
      %v1658 = vpop.permute.xlu0 %1657
      %1659 = vrot.lane.b32.xlu0 %v1413, 127
      %v1660 = vpop.permute.xlu0 %1659
      %1661 = vrot.lane.b32.xlu0 %v1410, 127
      %v1662 = vpop.permute.xlu0 %1661
      %1663 = vrot.lane.b32.xlu0 %v1414, 127
      %v1664 = vpop.permute.xlu0 %1663
      %1665 = vrot.lane.b32.xlu0 %v1411, 127
      %v1666 = vpop.permute.xlu0 %1665
      %1667 = vrot.lane.b32.xlu0 %v1415, 127
      %v1668 = vpop.permute.xlu0 %1667
      %1669 = vrot.lane.b32.xlu0 %v1412, 127
      %v1670 = vpop.permute.xlu0 %1669
      %1671 = vrot.lane.b32.xlu0 %v1416, 127
      %v1672 = vpop.permute.xlu0 %1671
      %v1673 = vsel %vm552, %v1666, %v1670
      %v1674 = vsel %vm552, %v1668, %v1672
      %v1675 = vsel %vm552, %v1662, %v1666
      %v1676 = vsel %vm552, %v1664, %v1668
      %v1677 = vsel %vm552, %v1658, %v1662
      %v1678 = vsel %vm552, %v1660, %v1664
      %v1679 = vsel %vm552, %v1670, %v1658
      %v1680 = vsel %vm552, %v1672, %v1660
      %v1681 = vmul.f32 %v1677, %v564
      %v1682 = vmul.f32 %v1675, %v568
      %v1683 = vmul.f32 %v1673, %v572
      %v1684 = vmul.f32 %v1679, %v576
      %v1685 = vmul.f32 %v1678, %v564
      %v1686 = vmul.f32 %v1676, %v568
      %v1687 = vmul.f32 %v1674, %v572
      %v1688 = vmul.f32 %v1680, %v576
      %1689 = vset.pattern.permute.xlu0 65
      %1690 = vperm.xlu0 %1689, %v198
      %v1691 = vpop.permute.xlu0 %1690
      %1693 = vset.pattern.permute.xlu0 65
      %1694 = vperm.xlu0 %1693, %v200
      %v1695 = vpop.permute.xlu0 %1694
      %v1697 = vmul.f32 %v1681, %v1691
      %v1698 = vmul.f32 %v1682, %v1691
      %v1699 = vmul.f32 %v1683, %v1691
      %v1700 = vmul.f32 %v1684, %v1691
      %v1701 = vmul.f32 %v1685, %v1695
      %v1702 = vmul.f32 %v1686, %v1695
      %v1703 = vmul.f32 %v1687, %v1695
      %v1704 = vmul.f32 %v1688, %v1695
      %v1705 = vadd.f32 %v1649, %v1697
      %v1706 = vadd.f32 %v1650, %v1698
      %v1707 = vadd.f32 %v1651, %v1699
      %v1708 = vadd.f32 %v1652, %v1700
      %v1709 = vadd.f32 %v1653, %v1701
      %v1710 = vadd.f32 %v1654, %v1702
      %v1711 = vadd.f32 %v1655, %v1703
      %v1712 = vadd.f32 %v1656, %v1704
      %1713 = vrot.lane.b32.xlu0 %v1409, 113
      %v1714 = vpop.permute.xlu0 %1713
      %1715 = vrot.lane.b32.xlu0 %v1413, 113
      %v1716 = vpop.permute.xlu0 %1715
      %1717 = vrot.lane.b32.xlu0 %v1410, 113
      %v1718 = vpop.permute.xlu0 %1717
      %1719 = vrot.lane.b32.xlu0 %v1414, 113
      %v1720 = vpop.permute.xlu0 %1719
      %1721 = vrot.lane.b32.xlu0 %v1411, 113
      %v1722 = vpop.permute.xlu0 %1721
      %1723 = vrot.lane.b32.xlu0 %v1415, 113
      %v1724 = vpop.permute.xlu0 %1723
      %1725 = vrot.lane.b32.xlu0 %v1412, 113
      %v1726 = vpop.permute.xlu0 %1725
      %1727 = vrot.lane.b32.xlu0 %v1416, 113
      %v1728 = vpop.permute.xlu0 %1727
      %v1729 = vsel %vm625, %v1722, %v1726
      %v1730 = vsel %vm625, %v1724, %v1728
      %v1731 = vsel %vm625, %v1718, %v1722
      %v1732 = vsel %vm625, %v1720, %v1724
      %v1733 = vsel %vm625, %v1714, %v1718
      %v1734 = vsel %vm625, %v1716, %v1720
      %v1735 = vsel %vm625, %v1726, %v1714
      %v1736 = vsel %vm625, %v1728, %v1716
      %v1737 = vmul.f32 %v1733, %v637
      %v1738 = vmul.f32 %v1731, %v641
      %v1739 = vmul.f32 %v1729, %v645
      %v1740 = vmul.f32 %v1735, %v649
      %v1741 = vmul.f32 %v1734, %v637
      %v1742 = vmul.f32 %v1732, %v641
      %v1743 = vmul.f32 %v1730, %v645
      %v1744 = vmul.f32 %v1736, %v649
      %1745 = vset.pattern.permute.xlu0 66
      %1746 = vperm.xlu0 %1745, %v198
      %v1747 = vpop.permute.xlu0 %1746
      %1749 = vset.pattern.permute.xlu0 66
      %1750 = vperm.xlu0 %1749, %v200
      %v1751 = vpop.permute.xlu0 %1750
      %v1753 = vmul.f32 %v1737, %v1747
      %v1754 = vmul.f32 %v1738, %v1747
      %v1755 = vmul.f32 %v1739, %v1747
      %v1756 = vmul.f32 %v1740, %v1747
      %v1757 = vmul.f32 %v1741, %v1751
      %v1758 = vmul.f32 %v1742, %v1751
      %v1759 = vmul.f32 %v1743, %v1751
      %v1760 = vmul.f32 %v1744, %v1751
      %v1761 = vadd.f32 %v1705, %v1753
      %v1762 = vadd.f32 %v1706, %v1754
      %v1763 = vadd.f32 %v1707, %v1755
      %v1764 = vadd.f32 %v1708, %v1756
      %v1765 = vadd.f32 %v1709, %v1757
      %v1766 = vadd.f32 %v1710, %v1758
      %v1767 = vadd.f32 %v1711, %v1759
      %v1768 = vadd.f32 %v1712, %v1760
      %1769 = vrot.lane.b32.xlu0 %v1409, 112
      %v1770 = vpop.permute.xlu0 %1769
      %1771 = vrot.lane.b32.xlu0 %v1413, 112
      %v1772 = vpop.permute.xlu0 %1771
      %1773 = vrot.lane.b32.xlu0 %v1410, 112
      %v1774 = vpop.permute.xlu0 %1773
      %1775 = vrot.lane.b32.xlu0 %v1414, 112
      %v1776 = vpop.permute.xlu0 %1775
      %1777 = vrot.lane.b32.xlu0 %v1411, 112
      %v1778 = vpop.permute.xlu0 %1777
      %1779 = vrot.lane.b32.xlu0 %v1415, 112
      %v1780 = vpop.permute.xlu0 %1779
      %1781 = vrot.lane.b32.xlu0 %v1412, 112
      %v1782 = vpop.permute.xlu0 %1781
      %1783 = vrot.lane.b32.xlu0 %v1416, 112
      %v1784 = vpop.permute.xlu0 %1783
      %v1785 = vsel %vm698, %v1778, %v1782
      %v1786 = vsel %vm698, %v1780, %v1784
      %v1787 = vsel %vm698, %v1774, %v1778
      %v1788 = vsel %vm698, %v1776, %v1780
      %v1789 = vsel %vm698, %v1770, %v1774
      %v1790 = vsel %vm698, %v1772, %v1776
      %v1791 = vsel %vm698, %v1782, %v1770
      %v1792 = vsel %vm698, %v1784, %v1772
      %v1793 = vmul.f32 %v1789, %v710
      %v1794 = vmul.f32 %v1787, %v714
      %v1795 = vmul.f32 %v1785, %v718
      %v1796 = vmul.f32 %v1791, %v722
      %v1797 = vmul.f32 %v1790, %v710
      %v1798 = vmul.f32 %v1788, %v714
      %v1799 = vmul.f32 %v1786, %v718
      %v1800 = vmul.f32 %v1792, %v722
      %1801 = vset.pattern.permute.xlu0 67
      %1802 = vperm.xlu0 %1801, %v198
      %v1803 = vpop.permute.xlu0 %1802
      %1805 = vset.pattern.permute.xlu0 67
      %1806 = vperm.xlu0 %1805, %v200
      %v1807 = vpop.permute.xlu0 %1806
      %v1809 = vmul.f32 %v1793, %v1803
      %v1810 = vmul.f32 %v1794, %v1803
      %v1811 = vmul.f32 %v1795, %v1803
      %v1812 = vmul.f32 %v1796, %v1803
      %v1813 = vmul.f32 %v1797, %v1807
      %v1814 = vmul.f32 %v1798, %v1807
      %v1815 = vmul.f32 %v1799, %v1807
      %v1816 = vmul.f32 %v1800, %v1807
      %v1817 = vadd.f32 %v1761, %v1809
      %v1818 = vadd.f32 %v1762, %v1810
      %v1819 = vadd.f32 %v1763, %v1811
      %v1820 = vadd.f32 %v1764, %v1812
      %v1821 = vadd.f32 %v1765, %v1813
      %v1822 = vadd.f32 %v1766, %v1814
      %v1823 = vadd.f32 %v1767, %v1815
      %v1824 = vadd.f32 %v1768, %v1816
      %1825 = vrot.lane.b32.xlu0 %v1409, 111
      %v1826 = vpop.permute.xlu0 %1825
      %1827 = vrot.lane.b32.xlu0 %v1413, 111
      %v1828 = vpop.permute.xlu0 %1827
      %1829 = vrot.lane.b32.xlu0 %v1410, 111
      %v1830 = vpop.permute.xlu0 %1829
      %1831 = vrot.lane.b32.xlu0 %v1414, 111
      %v1832 = vpop.permute.xlu0 %1831
      %1833 = vrot.lane.b32.xlu0 %v1411, 111
      %v1834 = vpop.permute.xlu0 %1833
      %1835 = vrot.lane.b32.xlu0 %v1415, 111
      %v1836 = vpop.permute.xlu0 %1835
      %1837 = vrot.lane.b32.xlu0 %v1412, 111
      %v1838 = vpop.permute.xlu0 %1837
      %1839 = vrot.lane.b32.xlu0 %v1416, 111
      %v1840 = vpop.permute.xlu0 %1839
      %v1841 = vsel %vm771, %v1834, %v1838
      %v1842 = vsel %vm771, %v1836, %v1840
      %v1843 = vsel %vm771, %v1830, %v1834
      %v1844 = vsel %vm771, %v1832, %v1836
      %v1845 = vsel %vm771, %v1826, %v1830
      %v1846 = vsel %vm771, %v1828, %v1832
      %v1847 = vsel %vm771, %v1838, %v1826
      %v1848 = vsel %vm771, %v1840, %v1828
      %v1849 = vmul.f32 %v1845, %v783
      %v1850 = vmul.f32 %v1843, %v787
      %v1851 = vmul.f32 %v1841, %v791
      %v1852 = vmul.f32 %v1847, %v795
      %v1853 = vmul.f32 %v1846, %v783
      %v1854 = vmul.f32 %v1844, %v787
      %v1855 = vmul.f32 %v1842, %v791
      %v1856 = vmul.f32 %v1848, %v795
      %1857 = vset.pattern.permute.xlu0 68
      %1858 = vperm.xlu0 %1857, %v198
      %v1859 = vpop.permute.xlu0 %1858
      %1861 = vset.pattern.permute.xlu0 68
      %1862 = vperm.xlu0 %1861, %v200
      %v1863 = vpop.permute.xlu0 %1862
      %v1865 = vmul.f32 %v1849, %v1859
      %v1866 = vmul.f32 %v1850, %v1859
      %v1867 = vmul.f32 %v1851, %v1859
      %v1868 = vmul.f32 %v1852, %v1859
      %v1869 = vmul.f32 %v1853, %v1863
      %v1870 = vmul.f32 %v1854, %v1863
      %v1871 = vmul.f32 %v1855, %v1863
      %v1872 = vmul.f32 %v1856, %v1863
      %v1873 = vadd.f32 %v1817, %v1865
      %v1874 = vadd.f32 %v1818, %v1866
      %v1875 = vadd.f32 %v1819, %v1867
      %v1876 = vadd.f32 %v1820, %v1868
      %v1877 = vadd.f32 %v1821, %v1869
      %v1878 = vadd.f32 %v1822, %v1870
      %v1879 = vadd.f32 %v1823, %v1871
      %v1880 = vadd.f32 %v1824, %v1872
      %1881 = vset.pattern.permute.xlu0 69
      %1882 = vperm.xlu0 %1881, %v198
      %v1883 = vpop.permute.xlu0 %1882
      %1885 = vset.pattern.permute.xlu0 69
      %1886 = vperm.xlu0 %1885, %v200
      %v1887 = vpop.permute.xlu0 %1886
      %v1889 = vadd.f32 %v1873, %v1883
      %v1890 = vadd.f32 %v1874, %v1883
      %v1891 = vadd.f32 %v1875, %v1883
      %v1892 = vadd.f32 %v1876, %v1883
      %v1893 = vadd.f32 %v1877, %v1887
      %v1894 = vadd.f32 %v1878, %v1887
      %v1895 = vadd.f32 %v1879, %v1887
      %v1896 = vadd.f32 %v1880, %v1887
      %1897 = vset.pattern.permute.xlu0 84
      %1898 = vperm.xlu0 %1897, %v198
      %v1899 = vpop.permute.xlu0 %1898
      %1901 = vset.pattern.permute.xlu0 84
      %1902 = vperm.xlu0 %1901, %v200
      %v1903 = vpop.permute.xlu0 %1902
      %1905 = vrot.lane.b32.xlu0 %v198, 56
      %v1906 = vpop.permute.xlu0 %1905
      %1907 = vrot.lane.b32.xlu0 %v200, 56
      %v1908 = vpop.permute.xlu0 %1907
      %v1909 = vsel %vm874, %v1906, 0
      %v1911 = vsel %vm874, %v1908, 0
      %v1914 = vsel %vm887, %v1893, 0
      %v1917 = vsel %vm887, %v1894, 0
      %v1920 = vsel %vm887, %v1895, 0
      %v1923 = vsel %vm887, %v1896, 0
      %1925 = vmatprep.subr.mxu0 %v1890
      %1926 = vmatpush1.msra.mxu0 %v1889
      %1927 = vmatprep.subr.mxu0 %v1917
      %1928 = vmatpush1.msra.mxu0 %v1914
      %1929 = vmatprep.subr.mxu0 0.0
      %1930 = vmatpush1.msra.mxu0 0.0
      %1931 = vmatprep.subr.mxu0 0.0
      %1932 = vmatpush1.msra.mxu0 0.0
      %1933 = vmatprep.subr.mxu0 0.0
      %1934 = vmatpush1.msra.mxu0 0.0
      %1935 = vmatprep.subr.mxu0 0.0
      %1936 = vmatpush1.msra.mxu0 0.0
      %1937 = vmatprep.subr.mxu0 0.0
      %1938 = vmatpush1.msra.mxu0 0.0
      %1939 = vmatprep.subr.mxu0 0.0
      %1940 = vmatpush1.msra.mxu0 0.0
      %1941 = vmatprep.subr.mxu0 0.0
      %1942 = vmatpush1.msra.mxu0 0.0
      %1943 = vmatprep.subr.mxu0 0.0
      %1944 = vmatpush1.msra.mxu0 0.0
      %1945 = vmatprep.subr.mxu0 0.0
      %1946 = vmatpush1.msra.mxu0 0.0
      %1947 = vmatprep.subr.mxu0 0.0
      %1948 = vmatpush1.msra.mxu0 0.0
      %1949 = vmatprep.subr.mxu0 0.0
      %1950 = vmatpush1.msra.mxu0 0.0
      %1951 = vmatprep.subr.mxu0 0.0
      %1952 = vmatpush1.msra.mxu0 0.0
      %1953 = vmatprep.subr.mxu0 0.0
      %1954 = vmatpush1.msra.mxu0 0.0
      %1955 = vmatprep.subr.mxu0 0.0
      %1956 = vmatpush1.msra.mxu0 0.0
      %1957 = vmatprep.subr.mxu0 0.0
      %1958 = vmatpush1.msra.mxu0 0.0
      %1959 = vmatprep.subr.mxu0 0.0
      %1960 = vmatpush1.msra.mxu0 0.0
      %1961 = vmatprep.subr.mxu0 0.0
      %1962 = vmatpush1.msra.mxu0 0.0
      %1963 = vmatprep.subr.mxu0 0.0
      %1964 = vmatpush1.msra.mxu0 0.0
      %1965 = vmatprep.subr.mxu0 0.0
      %1966 = vmatpush1.msra.mxu0 0.0
      %1967 = vmatprep.subr.mxu0 0.0
      %1968 = vmatpush1.msra.mxu0 0.0
      %1969 = vmatprep.subr.mxu0 0.0
      %1970 = vmatpush1.msra.mxu0 0.0
      %1971 = vmatprep.subr.mxu0 0.0
      %1972 = vmatpush1.msra.mxu0 0.0
      %1973 = vmatprep.subr.mxu0 0.0
      %1974 = vmatpush1.msra.mxu0 0.0
      %1975 = vmatprep.subr.mxu0 0.0
      %1976 = vmatpush1.msra.mxu0 0.0
      %1977 = vmatprep.subr.mxu0 0.0
      %1978 = vmatpush1.msra.mxu0 0.0
      %1979 = vmatprep.subr.mxu0 0.0
      %1980 = vmatpush1.msra.mxu0 0.0
      %1981 = vmatprep.subr.mxu0 0.0
      %1982 = vmatpush1.msra.mxu0 0.0
      %1983 = vmatprep.subr.mxu0 0.0
      %1984 = vmatpush1.msra.mxu0 0.0
      %1985 = vmatprep.subr.mxu0 0.0
      %1986 = vmatpush1.msra.mxu0 0.0
      %1987 = vmatprep.subr.mxu0 0.0
      %1988 = vmatpush1.msra.mxu0 0.0
      %1989 = vmatprep.mubr.f32.mxu0 0.0
      %1990 = vmatmul.mubr.f32.gmra.mrb[0].mxu0 %v1909
      %v1991 = vpop.f32.mrb[0].mxu0
      %v1992 = vadd.f32 %v1899, %v1991
      %v1993 = vpop.f32.mrb[0].mxu0
      %v1994 = vadd.f32 %v1899, %v1993
      %1995 = vmatprep.mubr.f32.mxu0 0.0
      %1996 = vmatmul.mubr.f32.gmra.mrb[0].mxu0 %v1911
      %v1997 = vpop.f32.mrb[0].mxu0
      %v1998 = vadd.f32 %v1903, %v1997
      %v1999 = vpop.f32.mrb[0].mxu0
      %v2000 = vadd.f32 %v1903, %v1999
      %2001 = vdwg.mxu0
      %2002 = vmatprep.subr.mxu0 %v1892
      %2003 = vmatpush1.msra.mxu0 %v1891
      %2004 = vmatprep.subr.mxu0 %v1923
      %2005 = vmatpush1.msra.mxu0 %v1920
      %2006 = vmatprep.subr.mxu0 0.0
      %2007 = vmatpush1.msra.mxu0 0.0
      %2008 = vmatprep.subr.mxu0 0.0
      %2009 = vmatpush1.msra.mxu0 0.0
      %2010 = vmatprep.subr.mxu0 0.0
      %2011 = vmatpush1.msra.mxu0 0.0
      %2012 = vmatprep.subr.mxu0 0.0
      %2013 = vmatpush1.msra.mxu0 0.0
      %2014 = vmatprep.subr.mxu0 0.0
      %2015 = vmatpush1.msra.mxu0 0.0
      %2016 = vmatprep.subr.mxu0 0.0
      %2017 = vmatpush1.msra.mxu0 0.0
      %2018 = vmatprep.subr.mxu0 0.0
      %2019 = vmatpush1.msra.mxu0 0.0
      %2020 = vmatprep.subr.mxu0 0.0
      %2021 = vmatpush1.msra.mxu0 0.0
      %2022 = vmatprep.subr.mxu0 0.0
      %2023 = vmatpush1.msra.mxu0 0.0
      %2024 = vmatprep.subr.mxu0 0.0
      %2025 = vmatpush1.msra.mxu0 0.0
      %2026 = vmatprep.subr.mxu0 0.0
      %2027 = vmatpush1.msra.mxu0 0.0
      %2028 = vmatprep.subr.mxu0 0.0
      %2029 = vmatpush1.msra.mxu0 0.0
      %2030 = vmatprep.subr.mxu0 0.0
      %2031 = vmatpush1.msra.mxu0 0.0
      %2032 = vmatprep.subr.mxu0 0.0
      %2033 = vmatpush1.msra.mxu0 0.0
      %2034 = vmatprep.subr.mxu0 0.0
      %2035 = vmatpush1.msra.mxu0 0.0
      %2036 = vmatprep.subr.mxu0 0.0
      %2037 = vmatpush1.msra.mxu0 0.0
      %2038 = vmatprep.subr.mxu0 0.0
      %2039 = vmatpush1.msra.mxu0 0.0
      %2040 = vmatprep.subr.mxu0 0.0
      %2041 = vmatpush1.msra.mxu0 0.0
      %2042 = vmatprep.subr.mxu0 0.0
      %2043 = vmatpush1.msra.mxu0 0.0
      %2044 = vmatprep.subr.mxu0 0.0
      %2045 = vmatpush1.msra.mxu0 0.0
      %2046 = vmatprep.subr.mxu0 0.0
      %2047 = vmatpush1.msra.mxu0 0.0
      %2048 = vmatprep.subr.mxu0 0.0
      %2049 = vmatpush1.msra.mxu0 0.0
      %2050 = vmatprep.subr.mxu0 0.0
      %2051 = vmatpush1.msra.mxu0 0.0
      %2052 = vmatprep.subr.mxu0 0.0
      %2053 = vmatpush1.msra.mxu0 0.0
      %2054 = vmatprep.subr.mxu0 0.0
      %2055 = vmatpush1.msra.mxu0 0.0
      %2056 = vmatprep.subr.mxu0 0.0
      %2057 = vmatpush1.msra.mxu0 0.0
      %2058 = vmatprep.subr.mxu0 0.0
      %2059 = vmatpush1.msra.mxu0 0.0
      %2060 = vmatprep.subr.mxu0 0.0
      %2061 = vmatpush1.msra.mxu0 0.0
      %2062 = vmatprep.subr.mxu0 0.0
      %2063 = vmatpush1.msra.mxu0 0.0
      %2064 = vmatprep.subr.mxu0 0.0
      %2065 = vmatpush1.msra.mxu0 0.0
      %2066 = vmatprep.mubr.f32.mxu0 0.0
      %2067 = vmatmul.mubr.f32.gmra.mrb[0].mxu0 %v1909
      %v2068 = vpop.f32.mrb[0].mxu0
      %v2069 = vadd.f32 %v1899, %v2068
      %v2070 = vpop.f32.mrb[0].mxu0
      %v2071 = vadd.f32 %v1899, %v2070
      %2072 = vmatprep.mubr.f32.mxu0 0.0
      %2073 = vmatmul.mubr.f32.gmra.mrb[0].mxu0 %v1911
      %v2074 = vpop.f32.mrb[0].mxu0
      %v2075 = vadd.f32 %v1903, %v2074
      %v2076 = vpop.f32.mrb[0].mxu0
      %v2077 = vadd.f32 %v1903, %v2076
      %2078 = vdwg.mxu0
      %v2079 = vmul.f32 %v1992, 0.5
      %v2080 = vmul.f32 %v1994, 0.5
      %v2081 = vmul.f32 %v2069, 0.5
      %v2082 = vmul.f32 %v2071, 0.5
      %v2083 = vmul.f32 %v1998, 0.5
      %v2084 = vmul.f32 %v2000, 0.5
      %v2085 = vmul.f32 %v2075, 0.5
      %v2086 = vmul.f32 %v2077, 0.5
      %v2087 = vmul.f32 %v1992, 0.70710677
      %v2088 = vmul.f32 %v1994, 0.70710677
      %v2089 = vmul.f32 %v2069, 0.70710677
      %v2090 = vmul.f32 %v2071, 0.70710677
      %v2091 = vmul.f32 %v1998, 0.70710677
      %v2092 = vmul.f32 %v2000, 0.70710677
      %v2093 = vmul.f32 %v2075, 0.70710677
      %v2094 = vmul.f32 %v2077, 0.70710677
      %v2095 = verf.f32.pop %v2087
      %v2096 = verf.f32.pop %v2088
      %v2097 = verf.f32.pop %v2089
      %v2098 = verf.f32.pop %v2090
      %v2099 = verf.f32.pop %v2091
      %v2100 = verf.f32.pop %v2092
      %v2101 = verf.f32.pop %v2093
      %v2102 = verf.f32.pop %v2094
      %v2103 = vadd.f32 %v2095, 1.0
      %v2104 = vadd.f32 %v2096, 1.0
      %v2105 = vadd.f32 %v2097, 1.0
      %v2106 = vadd.f32 %v2098, 1.0
      %v2107 = vadd.f32 %v2099, 1.0
      %v2108 = vadd.f32 %v2100, 1.0
      %v2109 = vadd.f32 %v2101, 1.0
      %v2110 = vadd.f32 %v2102, 1.0
      %v2111 = vmul.f32 %v2079, %v2103
      %v2112 = vmul.f32 %v2080, %v2104
      %v2113 = vmul.f32 %v2081, %v2105
      %v2114 = vmul.f32 %v2082, %v2106
      %v2115 = vmul.f32 %v2083, %v2107
      %v2116 = vmul.f32 %v2084, %v2108
      %v2117 = vmul.f32 %v2085, %v2109
      %v2118 = vmul.f32 %v2086, %v2110
      %2119 = vset.pattern.permute.xlu0 70
      %2120 = vperm.xlu0 %2119, %v198
      %v2121 = vpop.permute.xlu0 %2120
      %2123 = vset.pattern.permute.xlu0 70
      %2124 = vperm.xlu0 %2123, %v200
      %v2125 = vpop.permute.xlu0 %2124
      %2127 = vrot.lane.b32.xlu0 %v198, 43
      %v2128 = vpop.permute.xlu0 %2127
      %2129 = vrot.lane.b32.xlu0 %v200, 43
      %v2130 = vpop.permute.xlu0 %2129
      %v2131 = vsel %vm874, %v2128, 0
      %v2133 = vsel %vm874, %v2130, 0
      %v2136 = vsel %vm887, %v2115, 0
      %v2139 = vsel %vm887, %v2116, 0
      %v2142 = vsel %vm887, %v2117, 0
      %v2145 = vsel %vm887, %v2118, 0
      %2147 = vmatprep.subr.mxu0 %v2112
      %2148 = vmatpush1.msra.mxu0 %v2111
      %2149 = vmatprep.subr.mxu0 %v2139
      %2150 = vmatpush1.msra.mxu0 %v2136
      %2151 = vmatprep.subr.mxu0 0.0
      %2152 = vmatpush1.msra.mxu0 0.0
      %2153 = vmatprep.subr.mxu0 0.0
      %2154 = vmatpush1.msra.mxu0 0.0
      %2155 = vmatprep.subr.mxu0 0.0
      %2156 = vmatpush1.msra.mxu0 0.0
      %2157 = vmatprep.subr.mxu0 0.0
      %2158 = vmatpush1.msra.mxu0 0.0
      %2159 = vmatprep.subr.mxu0 0.0
      %2160 = vmatpush1.msra.mxu0 0.0
      %2161 = vmatprep.subr.mxu0 0.0
      %2162 = vmatpush1.msra.mxu0 0.0
      %2163 = vmatprep.subr.mxu0 0.0
      %2164 = vmatpush1.msra.mxu0 0.0
      %2165 = vmatprep.subr.mxu0 0.0
      %2166 = vmatpush1.msra.mxu0 0.0
      %2167 = vmatprep.subr.mxu0 0.0
      %2168 = vmatpush1.msra.mxu0 0.0
      %2169 = vmatprep.subr.mxu0 0.0
      %2170 = vmatpush1.msra.mxu0 0.0
      %2171 = vmatprep.subr.mxu0 0.0
      %2172 = vmatpush1.msra.mxu0 0.0
      %2173 = vmatprep.subr.mxu0 0.0
      %2174 = vmatpush1.msra.mxu0 0.0
      %2175 = vmatprep.subr.mxu0 0.0
      %2176 = vmatpush1.msra.mxu0 0.0
      %2177 = vmatprep.subr.mxu0 0.0
      %2178 = vmatpush1.msra.mxu0 0.0
      %2179 = vmatprep.subr.mxu0 0.0
      %2180 = vmatpush1.msra.mxu0 0.0
      %2181 = vmatprep.subr.mxu0 0.0
      %2182 = vmatpush1.msra.mxu0 0.0
      %2183 = vmatprep.subr.mxu0 0.0
      %2184 = vmatpush1.msra.mxu0 0.0
      %2185 = vmatprep.subr.mxu0 0.0
      %2186 = vmatpush1.msra.mxu0 0.0
      %2187 = vmatprep.subr.mxu0 0.0
      %2188 = vmatpush1.msra.mxu0 0.0
      %2189 = vmatprep.subr.mxu0 0.0
      %2190 = vmatpush1.msra.mxu0 0.0
      %2191 = vmatprep.subr.mxu0 0.0
      %2192 = vmatpush1.msra.mxu0 0.0
      %2193 = vmatprep.subr.mxu0 0.0
      %2194 = vmatpush1.msra.mxu0 0.0
      %2195 = vmatprep.subr.mxu0 0.0
      %2196 = vmatpush1.msra.mxu0 0.0
      %2197 = vmatprep.subr.mxu0 0.0
      %2198 = vmatpush1.msra.mxu0 0.0
      %2199 = vmatprep.subr.mxu0 0.0
      %2200 = vmatpush1.msra.mxu0 0.0
      %2201 = vmatprep.subr.mxu0 0.0
      %2202 = vmatpush1.msra.mxu0 0.0
      %2203 = vmatprep.subr.mxu0 0.0
      %2204 = vmatpush1.msra.mxu0 0.0
      %2205 = vmatprep.subr.mxu0 0.0
      %2206 = vmatpush1.msra.mxu0 0.0
      %2207 = vmatprep.subr.mxu0 0.0
      %2208 = vmatpush1.msra.mxu0 0.0
      %2209 = vmatprep.subr.mxu0 0.0
      %2210 = vmatpush1.msra.mxu0 0.0
      %2211 = vmatprep.mubr.f32.mxu0 0.0
      %2212 = vmatmul.mubr.f32.gmra.mrb[0].mxu0 %v2131
      %v2213 = vpop.f32.mrb[0].mxu0
      %v2214 = vadd.f32 %v2121, %v2213
      %v2215 = vpop.f32.mrb[0].mxu0
      %v2216 = vadd.f32 %v2121, %v2215
      %2217 = vmatprep.mubr.f32.mxu0 0.0
      %2218 = vmatmul.mubr.f32.gmra.mrb[0].mxu0 %v2133
      %v2219 = vpop.f32.mrb[0].mxu0
      %v2220 = vadd.f32 %v2125, %v2219
      %v2221 = vpop.f32.mrb[0].mxu0
      %v2222 = vadd.f32 %v2125, %v2221
      %2223 = vdwg.mxu0
      %2224 = vmatprep.subr.mxu0 %v2114
      %2225 = vmatpush1.msra.mxu0 %v2113
      %2226 = vmatprep.subr.mxu0 %v2145
      %2227 = vmatpush1.msra.mxu0 %v2142
      %2228 = vmatprep.subr.mxu0 0.0
      %2229 = vmatpush1.msra.mxu0 0.0
      %2230 = vmatprep.subr.mxu0 0.0
      %2231 = vmatpush1.msra.mxu0 0.0
      %2232 = vmatprep.subr.mxu0 0.0
      %2233 = vmatpush1.msra.mxu0 0.0
      %2234 = vmatprep.subr.mxu0 0.0
      %2235 = vmatpush1.msra.mxu0 0.0
      %2236 = vmatprep.subr.mxu0 0.0
      %2237 = vmatpush1.msra.mxu0 0.0
      %2238 = vmatprep.subr.mxu0 0.0
      %2239 = vmatpush1.msra.mxu0 0.0
      %2240 = vmatprep.subr.mxu0 0.0
      %2241 = vmatpush1.msra.mxu0 0.0
      %2242 = vmatprep.subr.mxu0 0.0
      %2243 = vmatpush1.msra.mxu0 0.0
      %2244 = vmatprep.subr.mxu0 0.0
      %2245 = vmatpush1.msra.mxu0 0.0
      %2246 = vmatprep.subr.mxu0 0.0
      %2247 = vmatpush1.msra.mxu0 0.0
      %2248 = vmatprep.subr.mxu0 0.0
      %2249 = vmatpush1.msra.mxu0 0.0
      %2250 = vmatprep.subr.mxu0 0.0
      %2251 = vmatpush1.msra.mxu0 0.0
      %2252 = vmatprep.subr.mxu0 0.0
      %2253 = vmatpush1.msra.mxu0 0.0
      %2254 = vmatprep.subr.mxu0 0.0
      %2255 = vmatpush1.msra.mxu0 0.0
      %2256 = vmatprep.subr.mxu0 0.0
      %2257 = vmatpush1.msra.mxu0 0.0
      %2258 = vmatprep.subr.mxu0 0.0
      %2259 = vmatpush1.msra.mxu0 0.0
      %2260 = vmatprep.subr.mxu0 0.0
      %2261 = vmatpush1.msra.mxu0 0.0
      %2262 = vmatprep.subr.mxu0 0.0
      %2263 = vmatpush1.msra.mxu0 0.0
      %2264 = vmatprep.subr.mxu0 0.0
      %2265 = vmatpush1.msra.mxu0 0.0
      %2266 = vmatprep.subr.mxu0 0.0
      %2267 = vmatpush1.msra.mxu0 0.0
      %2268 = vmatprep.subr.mxu0 0.0
      %2269 = vmatpush1.msra.mxu0 0.0
      %2270 = vmatprep.subr.mxu0 0.0
      %2271 = vmatpush1.msra.mxu0 0.0
      %2272 = vmatprep.subr.mxu0 0.0
      %2273 = vmatpush1.msra.mxu0 0.0
      %2274 = vmatprep.subr.mxu0 0.0
      %2275 = vmatpush1.msra.mxu0 0.0
      %2276 = vmatprep.subr.mxu0 0.0
      %2277 = vmatpush1.msra.mxu0 0.0
      %2278 = vmatprep.subr.mxu0 0.0
      %2279 = vmatpush1.msra.mxu0 0.0
      %2280 = vmatprep.subr.mxu0 0.0
      %2281 = vmatpush1.msra.mxu0 0.0
      %2282 = vmatprep.subr.mxu0 0.0
      %2283 = vmatpush1.msra.mxu0 0.0
      %2284 = vmatprep.subr.mxu0 0.0
      %2285 = vmatpush1.msra.mxu0 0.0
      %2286 = vmatprep.subr.mxu0 0.0
      %2287 = vmatpush1.msra.mxu0 0.0
      %2288 = vmatprep.mubr.f32.mxu0 0.0
      %2289 = vmatmul.mubr.f32.gmra.mrb[0].mxu0 %v2131
      %v2290 = vpop.f32.mrb[0].mxu0
      %v2291 = vadd.f32 %v2121, %v2290
      %v2292 = vpop.f32.mrb[0].mxu0
      %v2293 = vadd.f32 %v2121, %v2292
      %2294 = vmatprep.mubr.f32.mxu0 0.0
      %2295 = vmatmul.mubr.f32.gmra.mrb[0].mxu0 %v2133
      %v2296 = vpop.f32.mrb[0].mxu0
      %v2297 = vadd.f32 %v2125, %v2296
      %v2298 = vpop.f32.mrb[0].mxu0
      %v2299 = vadd.f32 %v2125, %v2298
      %2300 = vdwg.mxu0
      %2301 = vset.pattern.permute.xlu0 71
      %2302 = vperm.xlu0 %2301, %v198
      %v2303 = vpop.permute.xlu0 %2302
      %2305 = vset.pattern.permute.xlu0 71
      %2306 = vperm.xlu0 %2305, %v200
      %v2307 = vpop.permute.xlu0 %2306
      %v2309 = vmul.f32 %v2303, %v2214
      %v2310 = vmul.f32 %v2303, %v2216
      %v2311 = vmul.f32 %v2303, %v2291
      %v2312 = vmul.f32 %v2303, %v2293
      %v2313 = vmul.f32 %v2307, %v2220
      %v2314 = vmul.f32 %v2307, %v2222
      %v2315 = vmul.f32 %v2307, %v2297
      %v2316 = vmul.f32 %v2307, %v2299
      %v2317 = vadd.f32 %v1409, %v2309
      %v2318 = vadd.f32 %v1410, %v2310
      %v2319 = vadd.f32 %v1411, %v2311
      %v2320 = vadd.f32 %v1412, %v2312
      %v2321 = vadd.f32 %v1413, %v2313
      %v2322 = vadd.f32 %v1414, %v2314
      %v2323 = vadd.f32 %v1415, %v2315
      %v2324 = vadd.f32 %v1416, %v2316
      %2326 = vset.pattern.permute.xlu0 17
      %2327 = vperm.xlu0 %2326, %v199
      %v2328 = vpop.permute.xlu0 %2327
      %2331 = vset.pattern.permute.xlu0 17
      %2332 = vperm.xlu0 %2331, %v201
      %v2333 = vpop.permute.xlu0 %2332
      %2335 = vrot.lane.b32.xlu0 %v198, 31
      %v2336 = vpop.permute.xlu0 %2335
      %2337 = vrot.lane.b32.xlu0 %v200, 31
      %v2338 = vpop.permute.xlu0 %2337
      %v2339 = vsel %vm874, %v2336, 0
      %v2341 = vsel %vm874, %v2338, 0
      %v2344 = vsel %vm887, %v2321, 0
      %v2347 = vsel %vm887, %v2322, 0
      %v2350 = vsel %vm887, %v2323, 0
      %v2353 = vsel %vm887, %v2324, 0
      %2355 = vmatprep.subr.mxu0 %v2318
      %2356 = vmatpush1.msra.mxu0 %v2317
      %2357 = vmatprep.subr.mxu0 %v2347
      %2358 = vmatpush1.msra.mxu0 %v2344
      %2359 = vmatprep.subr.mxu0 0.0
      %2360 = vmatpush1.msra.mxu0 0.0
      %2361 = vmatprep.subr.mxu0 0.0
      %2362 = vmatpush1.msra.mxu0 0.0
      %2363 = vmatprep.subr.mxu0 0.0
      %2364 = vmatpush1.msra.mxu0 0.0
      %2365 = vmatprep.subr.mxu0 0.0
      %2366 = vmatpush1.msra.mxu0 0.0
      %2367 = vmatprep.subr.mxu0 0.0
      %2368 = vmatpush1.msra.mxu0 0.0
      %2369 = vmatprep.subr.mxu0 0.0
      %2370 = vmatpush1.msra.mxu0 0.0
      %2371 = vmatprep.subr.mxu0 0.0
      %2372 = vmatpush1.msra.mxu0 0.0
      %2373 = vmatprep.subr.mxu0 0.0
      %2374 = vmatpush1.msra.mxu0 0.0
      %2375 = vmatprep.subr.mxu0 0.0
      %2376 = vmatpush1.msra.mxu0 0.0
      %2377 = vmatprep.subr.mxu0 0.0
      %2378 = vmatpush1.msra.mxu0 0.0
      %2379 = vmatprep.subr.mxu0 0.0
      %2380 = vmatpush1.msra.mxu0 0.0
      %2381 = vmatprep.subr.mxu0 0.0
      %2382 = vmatpush1.msra.mxu0 0.0
      %2383 = vmatprep.subr.mxu0 0.0
      %2384 = vmatpush1.msra.mxu0 0.0
      %2385 = vmatprep.subr.mxu0 0.0
      %2386 = vmatpush1.msra.mxu0 0.0
      %2387 = vmatprep.subr.mxu0 0.0
      %2388 = vmatpush1.msra.mxu0 0.0
      %2389 = vmatprep.subr.mxu0 0.0
      %2390 = vmatpush1.msra.mxu0 0.0
      %2391 = vmatprep.subr.mxu0 0.0
      %2392 = vmatpush1.msra.mxu0 0.0
      %2393 = vmatprep.subr.mxu0 0.0
      %2394 = vmatpush1.msra.mxu0 0.0
      %2395 = vmatprep.subr.mxu0 0.0
      %2396 = vmatpush1.msra.mxu0 0.0
      %2397 = vmatprep.subr.mxu0 0.0
      %2398 = vmatpush1.msra.mxu0 0.0
      %2399 = vmatprep.subr.mxu0 0.0
      %2400 = vmatpush1.msra.mxu0 0.0
      %2401 = vmatprep.subr.mxu0 0.0
      %2402 = vmatpush1.msra.mxu0 0.0
      %2403 = vmatprep.subr.mxu0 0.0
      %2404 = vmatpush1.msra.mxu0 0.0
      %2405 = vmatprep.subr.mxu0 0.0
      %2406 = vmatpush1.msra.mxu0 0.0
      %2407 = vmatprep.subr.mxu0 0.0
      %2408 = vmatpush1.msra.mxu0 0.0
      %2409 = vmatprep.subr.mxu0 0.0
      %2410 = vmatpush1.msra.mxu0 0.0
      %2411 = vmatprep.subr.mxu0 0.0
      %2412 = vmatpush1.msra.mxu0 0.0
      %2413 = vmatprep.subr.mxu0 0.0
      %2414 = vmatpush1.msra.mxu0 0.0
      %2415 = vmatprep.subr.mxu0 0.0
      %2416 = vmatpush1.msra.mxu0 0.0
      %2417 = vmatprep.subr.mxu0 0.0
      %2418 = vmatpush1.msra.mxu0 0.0
      %2419 = vmatprep.mubr.f32.mxu0 0.0
      %2420 = vmatmul.mubr.f32.gmra.mrb[0].mxu0 %v2339
      %v2421 = vpop.f32.mrb[0].mxu0
      %v2422 = vadd.f32 %v2328, %v2421
      %v2423 = vpop.f32.mrb[0].mxu0
      %v2424 = vadd.f32 %v2328, %v2423
      %2425 = vmatprep.mubr.f32.mxu0 0.0
      %2426 = vmatmul.mubr.f32.gmra.mrb[0].mxu0 %v2341
      %v2427 = vpop.f32.mrb[0].mxu0
      %v2428 = vadd.f32 %v2333, %v2427
      %v2429 = vpop.f32.mrb[0].mxu0
      %v2430 = vadd.f32 %v2333, %v2429
      %2431 = vdwg.mxu0
      %2432 = vmatprep.subr.mxu0 %v2320
      %2433 = vmatpush1.msra.mxu0 %v2319
      %2434 = vmatprep.subr.mxu0 %v2353
      %2435 = vmatpush1.msra.mxu0 %v2350
      %2436 = vmatprep.subr.mxu0 0.0
      %2437 = vmatpush1.msra.mxu0 0.0
      %2438 = vmatprep.subr.mxu0 0.0
      %2439 = vmatpush1.msra.mxu0 0.0
      %2440 = vmatprep.subr.mxu0 0.0
      %2441 = vmatpush1.msra.mxu0 0.0
      %2442 = vmatprep.subr.mxu0 0.0
      %2443 = vmatpush1.msra.mxu0 0.0
      %2444 = vmatprep.subr.mxu0 0.0
      %2445 = vmatpush1.msra.mxu0 0.0
      %2446 = vmatprep.subr.mxu0 0.0
      %2447 = vmatpush1.msra.mxu0 0.0
      %2448 = vmatprep.subr.mxu0 0.0
      %2449 = vmatpush1.msra.mxu0 0.0
      %2450 = vmatprep.subr.mxu0 0.0
      %2451 = vmatpush1.msra.mxu0 0.0
      %2452 = vmatprep.subr.mxu0 0.0
      %2453 = vmatpush1.msra.mxu0 0.0
      %2454 = vmatprep.subr.mxu0 0.0
      %2455 = vmatpush1.msra.mxu0 0.0
      %2456 = vmatprep.subr.mxu0 0.0
      %2457 = vmatpush1.msra.mxu0 0.0
      %2458 = vmatprep.subr.mxu0 0.0
      %2459 = vmatpush1.msra.mxu0 0.0
      %2460 = vmatprep.subr.mxu0 0.0
      %2461 = vmatpush1.msra.mxu0 0.0
      %2462 = vmatprep.subr.mxu0 0.0
      %2463 = vmatpush1.msra.mxu0 0.0
      %2464 = vmatprep.subr.mxu0 0.0
      %2465 = vmatpush1.msra.mxu0 0.0
      %2466 = vmatprep.subr.mxu0 0.0
      %2467 = vmatpush1.msra.mxu0 0.0
      %2468 = vmatprep.subr.mxu0 0.0
      %2469 = vmatpush1.msra.mxu0 0.0
      %2470 = vmatprep.subr.mxu0 0.0
      %2471 = vmatpush1.msra.mxu0 0.0
      %2472 = vmatprep.subr.mxu0 0.0
      %2473 = vmatpush1.msra.mxu0 0.0
      %2474 = vmatprep.subr.mxu0 0.0
      %2475 = vmatpush1.msra.mxu0 0.0
      %2476 = vmatprep.subr.mxu0 0.0
      %2477 = vmatpush1.msra.mxu0 0.0
      %2478 = vmatprep.subr.mxu0 0.0
      %2479 = vmatpush1.msra.mxu0 0.0
      %2480 = vmatprep.subr.mxu0 0.0
      %2481 = vmatpush1.msra.mxu0 0.0
      %2482 = vmatprep.subr.mxu0 0.0
      %2483 = vmatpush1.msra.mxu0 0.0
      %2484 = vmatprep.subr.mxu0 0.0
      %2485 = vmatpush1.msra.mxu0 0.0
      %2486 = vmatprep.subr.mxu0 0.0
      %2487 = vmatpush1.msra.mxu0 0.0
      %2488 = vmatprep.subr.mxu0 0.0
      %2489 = vmatpush1.msra.mxu0 0.0
      %2490 = vmatprep.subr.mxu0 0.0
      %2491 = vmatpush1.msra.mxu0 0.0
      %2492 = vmatprep.subr.mxu0 0.0
      %2493 = vmatpush1.msra.mxu0 0.0
      %2494 = vmatprep.subr.mxu0 0.0
      %2495 = vmatpush1.msra.mxu0 0.0
      %2496 = vmatprep.mubr.f32.mxu0 0.0
      %2497 = vmatmul.mubr.f32.gmra.mrb[0].mxu0 %v2339
      %v2498 = vpop.f32.mrb[0].mxu0
      %v2499 = vadd.f32 %v2328, %v2498
      %v2500 = vpop.f32.mrb[0].mxu0
      %v2501 = vadd.f32 %v2328, %v2500
      %2502 = vmatprep.mubr.f32.mxu0 0.0
      %2503 = vmatmul.mubr.f32.gmra.mrb[0].mxu0 %v2341
      %v2504 = vpop.f32.mrb[0].mxu0
      %v2505 = vadd.f32 %v2333, %v2504
      %v2506 = vpop.f32.mrb[0].mxu0
      %v2507 = vadd.f32 %v2333, %v2506
      %2508 = vdwg.mxu0
      %2509 = vset.pattern.permute.xlu0 18
      %2510 = vperm.xlu0 %2509, %v199
      %v2511 = vpop.permute.xlu0 %2510
      %2513 = vset.pattern.permute.xlu0 18
      %2514 = vperm.xlu0 %2513, %v201
      %v2515 = vpop.permute.xlu0 %2514
      %2517 = vrot.lane.b32.xlu0 %v198, 19
      %v2518 = vpop.permute.xlu0 %2517
      %2519 = vrot.lane.b32.xlu0 %v200, 19
      %v2520 = vpop.permute.xlu0 %2519
      %v2521 = vsel %vm874, %v2518, 0
      %v2523 = vsel %vm874, %v2520, 0
      %2525 = vmatprep.subr.mxu0 %v2318
      %2526 = vmatpush1.msra.mxu0 %v2317
      %2527 = vmatprep.subr.mxu0 %v2347
      %2528 = vmatpush1.msra.mxu0 %v2344
      %2529 = vmatprep.subr.mxu0 0.0
      %2530 = vmatpush1.msra.mxu0 0.0
      %2531 = vmatprep.subr.mxu0 0.0
      %2532 = vmatpush1.msra.mxu0 0.0
      %2533 = vmatprep.subr.mxu0 0.0
      %2534 = vmatpush1.msra.mxu0 0.0
      %2535 = vmatprep.subr.mxu0 0.0
      %2536 = vmatpush1.msra.mxu0 0.0
      %2537 = vmatprep.subr.mxu0 0.0
      %2538 = vmatpush1.msra.mxu0 0.0
      %2539 = vmatprep.subr.mxu0 0.0
      %2540 = vmatpush1.msra.mxu0 0.0
      %2541 = vmatprep.subr.mxu0 0.0
      %2542 = vmatpush1.msra.mxu0 0.0
      %2543 = vmatprep.subr.mxu0 0.0
      %2544 = vmatpush1.msra.mxu0 0.0
      %2545 = vmatprep.subr.mxu0 0.0
      %2546 = vmatpush1.msra.mxu0 0.0
      %2547 = vmatprep.subr.mxu0 0.0
      %2548 = vmatpush1.msra.mxu0 0.0
      %2549 = vmatprep.subr.mxu0 0.0
      %2550 = vmatpush1.msra.mxu0 0.0
      %2551 = vmatprep.subr.mxu0 0.0
      %2552 = vmatpush1.msra.mxu0 0.0
      %2553 = vmatprep.subr.mxu0 0.0
      %2554 = vmatpush1.msra.mxu0 0.0
      %2555 = vmatprep.subr.mxu0 0.0
      %2556 = vmatpush1.msra.mxu0 0.0
      %2557 = vmatprep.subr.mxu0 0.0
      %2558 = vmatpush1.msra.mxu0 0.0
      %2559 = vmatprep.subr.mxu0 0.0
      %2560 = vmatpush1.msra.mxu0 0.0
      %2561 = vmatprep.subr.mxu0 0.0
      %2562 = vmatpush1.msra.mxu0 0.0
      %2563 = vmatprep.subr.mxu0 0.0
      %2564 = vmatpush1.msra.mxu0 0.0
      %2565 = vmatprep.subr.mxu0 0.0
      %2566 = vmatpush1.msra.mxu0 0.0
      %2567 = vmatprep.subr.mxu0 0.0
      %2568 = vmatpush1.msra.mxu0 0.0
      %2569 = vmatprep.subr.mxu0 0.0
      %2570 = vmatpush1.msra.mxu0 0.0
      %2571 = vmatprep.subr.mxu0 0.0
      %2572 = vmatpush1.msra.mxu0 0.0
      %2573 = vmatprep.subr.mxu0 0.0
      %2574 = vmatpush1.msra.mxu0 0.0
      %2575 = vmatprep.subr.mxu0 0.0
      %2576 = vmatpush1.msra.mxu0 0.0
      %2577 = vmatprep.subr.mxu0 0.0
      %2578 = vmatpush1.msra.mxu0 0.0
      %2579 = vmatprep.subr.mxu0 0.0
      %2580 = vmatpush1.msra.mxu0 0.0
      %2581 = vmatprep.subr.mxu0 0.0
      %2582 = vmatpush1.msra.mxu0 0.0
      %2583 = vmatprep.subr.mxu0 0.0
      %2584 = vmatpush1.msra.mxu0 0.0
      %2585 = vmatprep.subr.mxu0 0.0
      %2586 = vmatpush1.msra.mxu0 0.0
      %2587 = vmatprep.subr.mxu0 0.0
      %2588 = vmatpush1.msra.mxu0 0.0
      %2589 = vmatprep.mubr.f32.mxu0 0.0
      %2590 = vmatmul.mubr.f32.gmra.mrb[0].mxu0 %v2521
      %v2591 = vpop.f32.mrb[0].mxu0
      %v2592 = vadd.f32 %v2511, %v2591
      %v2593 = vpop.f32.mrb[0].mxu0
      %v2594 = vadd.f32 %v2511, %v2593
      %2595 = vmatprep.mubr.f32.mxu0 0.0
      %2596 = vmatmul.mubr.f32.gmra.mrb[0].mxu0 %v2523
      %v2597 = vpop.f32.mrb[0].mxu0
      %v2598 = vadd.f32 %v2515, %v2597
      %v2599 = vpop.f32.mrb[0].mxu0
      %v2600 = vadd.f32 %v2515, %v2599
      %2601 = vdwg.mxu0
      %2602 = vmatprep.subr.mxu0 %v2320
      %2603 = vmatpush1.msra.mxu0 %v2319
      %2604 = vmatprep.subr.mxu0 %v2353
      %2605 = vmatpush1.msra.mxu0 %v2350
      %2606 = vmatprep.subr.mxu0 0.0
      %2607 = vmatpush1.msra.mxu0 0.0
      %2608 = vmatprep.subr.mxu0 0.0
      %2609 = vmatpush1.msra.mxu0 0.0
      %2610 = vmatprep.subr.mxu0 0.0
      %2611 = vmatpush1.msra.mxu0 0.0
      %2612 = vmatprep.subr.mxu0 0.0
      %2613 = vmatpush1.msra.mxu0 0.0
      %2614 = vmatprep.subr.mxu0 0.0
      %2615 = vmatpush1.msra.mxu0 0.0
      %2616 = vmatprep.subr.mxu0 0.0
      %2617 = vmatpush1.msra.mxu0 0.0
      %2618 = vmatprep.subr.mxu0 0.0
      %2619 = vmatpush1.msra.mxu0 0.0
      %2620 = vmatprep.subr.mxu0 0.0
      %2621 = vmatpush1.msra.mxu0 0.0
      %2622 = vmatprep.subr.mxu0 0.0
      %2623 = vmatpush1.msra.mxu0 0.0
      %2624 = vmatprep.subr.mxu0 0.0
      %2625 = vmatpush1.msra.mxu0 0.0
      %2626 = vmatprep.subr.mxu0 0.0
      %2627 = vmatpush1.msra.mxu0 0.0
      %2628 = vmatprep.subr.mxu0 0.0
      %2629 = vmatpush1.msra.mxu0 0.0
      %2630 = vmatprep.subr.mxu0 0.0
      %2631 = vmatpush1.msra.mxu0 0.0
      %2632 = vmatprep.subr.mxu0 0.0
      %2633 = vmatpush1.msra.mxu0 0.0
      %2634 = vmatprep.subr.mxu0 0.0
      %2635 = vmatpush1.msra.mxu0 0.0
      %2636 = vmatprep.subr.mxu0 0.0
      %2637 = vmatpush1.msra.mxu0 0.0
      %2638 = vmatprep.subr.mxu0 0.0
      %2639 = vmatpush1.msra.mxu0 0.0
      %2640 = vmatprep.subr.mxu0 0.0
      %2641 = vmatpush1.msra.mxu0 0.0
      %2642 = vmatprep.subr.mxu0 0.0
      %2643 = vmatpush1.msra.mxu0 0.0
      %2644 = vmatprep.subr.mxu0 0.0
      %2645 = vmatpush1.msra.mxu0 0.0
      %2646 = vmatprep.subr.mxu0 0.0
      %2647 = vmatpush1.msra.mxu0 0.0
      %2648 = vmatprep.subr.mxu0 0.0
      %2649 = vmatpush1.msra.mxu0 0.0
      %2650 = vmatprep.subr.mxu0 0.0
      %2651 = vmatpush1.msra.mxu0 0.0
      %2652 = vmatprep.subr.mxu0 0.0
      %2653 = vmatpush1.msra.mxu0 0.0
      %2654 = vmatprep.subr.mxu0 0.0
      %2655 = vmatpush1.msra.mxu0 0.0
      %2656 = vmatprep.subr.mxu0 0.0
      %2657 = vmatpush1.msra.mxu0 0.0
      %2658 = vmatprep.subr.mxu0 0.0
      %2659 = vmatpush1.msra.mxu0 0.0
      %2660 = vmatprep.subr.mxu0 0.0
      %2661 = vmatpush1.msra.mxu0 0.0
      %2662 = vmatprep.subr.mxu0 0.0
      %2663 = vmatpush1.msra.mxu0 0.0
      %2664 = vmatprep.subr.mxu0 0.0
      %2665 = vmatpush1.msra.mxu0 0.0
      %2666 = vmatprep.mubr.f32.mxu0 0.0
      %2667 = vmatmul.mubr.f32.gmra.mrb[0].mxu0 %v2521
      %v2668 = vpop.f32.mrb[0].mxu0
      %v2669 = vadd.f32 %v2511, %v2668
      %v2670 = vpop.f32.mrb[0].mxu0
      %v2671 = vadd.f32 %v2511, %v2670
      %2672 = vmatprep.mubr.f32.mxu0 0.0
      %2673 = vmatmul.mubr.f32.gmra.mrb[0].mxu0 %v2523
      %v2674 = vpop.f32.mrb[0].mxu0
      %v2675 = vadd.f32 %v2515, %v2674
      %v2676 = vpop.f32.mrb[0].mxu0
      %v2677 = vadd.f32 %v2515, %v2676
      %2678 = vdwg.mxu0
      %v2679 = vmul.f32 %v2422, %v2422
      %v2680 = vmul.f32 %v2424, %v2424
      %v2681 = vmul.f32 %v2499, %v2499
      %v2682 = vmul.f32 %v2501, %v2501
      %v2683 = vmul.f32 %v2428, %v2428
      %v2684 = vmul.f32 %v2430, %v2430
      %v2685 = vmul.f32 %v2505, %v2505
      %v2686 = vmul.f32 %v2507, %v2507
      %2687 = vset.pattern.permute.xlu0 74
      %2688 = vperm.xlu0 %2687, %v199
      %v2689 = vpop.permute.xlu0 %2688
      %2691 = vset.pattern.permute.xlu0 74
      %2692 = vperm.xlu0 %2691, %v201
      %v2693 = vpop.permute.xlu0 %2692
      %v2695 = vmul.f32 %v2679, %v2689
      %v2696 = vmul.f32 %v2680, %v2689
      %v2697 = vmul.f32 %v2681, %v2689
      %v2698 = vmul.f32 %v2682, %v2689
      %v2699 = vmul.f32 %v2683, %v2693
      %v2700 = vmul.f32 %v2684, %v2693
      %v2701 = vmul.f32 %v2685, %v2693
      %v2702 = vmul.f32 %v2686, %v2693
      %v2703 = vsel %vm887, %v2699, 0.0
      %v2704 = vadd.f32 %v2695, %v2703
      %v2705 = vrot.slane %v2704, 4
      %v2706 = vadd.f32 %v2704, %v2705
      %v2707 = vrot.slane %v2706, 2
      %v2708 = vadd.f32 %v2706, %v2707
      %v2709 = vrot.slane %v2708, 1
      %v2710 = vadd.f32 %v2708, %v2709
      %v2711 = vsel %vm887, %v2700, 0.0
      %v2712 = vadd.f32 %v2696, %v2711
      %v2713 = vrot.slane %v2712, 4
      %v2714 = vadd.f32 %v2712, %v2713
      %v2715 = vrot.slane %v2714, 2
      %v2716 = vadd.f32 %v2714, %v2715
      %v2717 = vrot.slane %v2716, 1
      %v2718 = vadd.f32 %v2716, %v2717
      %v2719 = vsel %vm887, %v2701, 0.0
      %v2720 = vadd.f32 %v2697, %v2719
      %v2721 = vrot.slane %v2720, 4
      %v2722 = vadd.f32 %v2720, %v2721
      %v2723 = vrot.slane %v2722, 2
      %v2724 = vadd.f32 %v2722, %v2723
      %v2725 = vrot.slane %v2724, 1
      %v2726 = vadd.f32 %v2724, %v2725
      %v2727 = vsel %vm887, %v2702, 0.0
      %v2728 = vadd.f32 %v2698, %v2727
      %v2729 = vrot.slane %v2728, 4
      %v2730 = vadd.f32 %v2728, %v2729
      %v2731 = vrot.slane %v2730, 2
      %v2732 = vadd.f32 %v2730, %v2731
      %v2733 = vrot.slane %v2732, 1
      %v2734 = vadd.f32 %v2732, %v2733
      %2735 = vset.pattern.permute.xlu0 75
      %2736 = vperm.xlu0 %2735, %v199
      %v2737 = vpop.permute.xlu0 %2736
      %2739 = vset.pattern.permute.xlu0 75
      %2740 = vperm.xlu0 %2739, %v201
      %v2741 = vpop.permute.xlu0 %2740
      %v2743 = vmul.f32 %v2679, %v2737
      %v2744 = vmul.f32 %v2680, %v2737
      %v2745 = vmul.f32 %v2681, %v2737
      %v2746 = vmul.f32 %v2682, %v2737
      %v2747 = vmul.f32 %v2683, %v2741
      %v2748 = vmul.f32 %v2684, %v2741
      %v2749 = vmul.f32 %v2685, %v2741
      %v2750 = vmul.f32 %v2686, %v2741
      %v2751 = vsel %vm887, %v2747, 0.0
      %v2752 = vadd.f32 %v2743, %v2751
      %v2753 = vrot.slane %v2752, 4
      %v2754 = vadd.f32 %v2752, %v2753
      %v2755 = vrot.slane %v2754, 2
      %v2756 = vadd.f32 %v2754, %v2755
      %v2757 = vrot.slane %v2756, 1
      %v2758 = vadd.f32 %v2756, %v2757
      %v2759 = vsel %vm887, %v2748, 0.0
      %v2760 = vadd.f32 %v2744, %v2759
      %v2761 = vrot.slane %v2760, 4
      %v2762 = vadd.f32 %v2760, %v2761
      %v2763 = vrot.slane %v2762, 2
      %v2764 = vadd.f32 %v2762, %v2763
      %v2765 = vrot.slane %v2764, 1
      %v2766 = vadd.f32 %v2764, %v2765
      %v2767 = vsel %vm887, %v2749, 0.0
      %v2768 = vadd.f32 %v2745, %v2767
      %v2769 = vrot.slane %v2768, 4
      %v2770 = vadd.f32 %v2768, %v2769
      %v2771 = vrot.slane %v2770, 2
      %v2772 = vadd.f32 %v2770, %v2771
      %v2773 = vrot.slane %v2772, 1
      %v2774 = vadd.f32 %v2772, %v2773
      %v2775 = vsel %vm887, %v2750, 0.0
      %v2776 = vadd.f32 %v2746, %v2775
      %v2777 = vrot.slane %v2776, 4
      %v2778 = vadd.f32 %v2776, %v2777
      %v2779 = vrot.slane %v2778, 2
      %v2780 = vadd.f32 %v2778, %v2779
      %v2781 = vrot.slane %v2780, 1
      %v2782 = vadd.f32 %v2780, %v2781
      %v2783 = vmax.f32 %v2710, 1e-24
      %v2784 = vmax.f32 %v2718, 1e-24
      %v2785 = vmax.f32 %v2726, 1e-24
      %v2786 = vmax.f32 %v2734, 1e-24
      %v2787 = vrsqrt.pop %v2783
      %v2788 = vrsqrt.pop %v2784
      %v2789 = vrsqrt.pop %v2785
      %v2790 = vrsqrt.pop %v2786
      %v2791 = vmul.f32 %v2689, %v2787
      %v2792 = vmul.f32 %v2689, %v2788
      %v2793 = vmul.f32 %v2689, %v2789
      %v2794 = vmul.f32 %v2689, %v2790
      %v2795 = vmul.f32 %v2693, %v2787
      %v2796 = vmul.f32 %v2693, %v2788
      %v2797 = vmul.f32 %v2693, %v2789
      %v2798 = vmul.f32 %v2693, %v2790
      %v2799 = vmax.f32 %v2758, 1e-24
      %v2800 = vmax.f32 %v2766, 1e-24
      %v2801 = vmax.f32 %v2774, 1e-24
      %v2802 = vmax.f32 %v2782, 1e-24
      %v2803 = vrsqrt.pop %v2799
      %v2804 = vrsqrt.pop %v2800
      %v2805 = vrsqrt.pop %v2801
      %v2806 = vrsqrt.pop %v2802
      %v2807 = vmul.f32 %v2737, %v2803
      %v2808 = vmul.f32 %v2737, %v2804
      %v2809 = vmul.f32 %v2737, %v2805
      %v2810 = vmul.f32 %v2737, %v2806
      %v2811 = vmul.f32 %v2741, %v2803
      %v2812 = vmul.f32 %v2741, %v2804
      %v2813 = vmul.f32 %v2741, %v2805
      %v2814 = vmul.f32 %v2741, %v2806
      %v2815 = vadd.f32 %v2791, %v2807
      %v2816 = vadd.f32 %v2792, %v2808
      %v2817 = vadd.f32 %v2793, %v2809
      %v2818 = vadd.f32 %v2794, %v2810
      %v2819 = vadd.f32 %v2795, %v2811
      %v2820 = vadd.f32 %v2796, %v2812
      %v2821 = vadd.f32 %v2797, %v2813
      %v2822 = vadd.f32 %v2798, %v2814
      %v2823 = vmul.f32 %v2422, %v2815
      %v2824 = vmul.f32 %v2424, %v2816
      %v2825 = vmul.f32 %v2499, %v2817
      %v2826 = vmul.f32 %v2501, %v2818
      %v2827 = vmul.f32 %v2428, %v2819
      %v2828 = vmul.f32 %v2430, %v2820
      %v2829 = vmul.f32 %v2505, %v2821
      %v2830 = vmul.f32 %v2507, %v2822
      %v2831 = vmul.f32 %v2592, %v2592
      %v2832 = vmul.f32 %v2594, %v2594
      %v2833 = vmul.f32 %v2669, %v2669
      %v2834 = vmul.f32 %v2671, %v2671
      %v2835 = vmul.f32 %v2598, %v2598
      %v2836 = vmul.f32 %v2600, %v2600
      %v2837 = vmul.f32 %v2675, %v2675
      %v2838 = vmul.f32 %v2677, %v2677
      %v2839 = vmul.f32 %v2831, %v2689
      %v2840 = vmul.f32 %v2832, %v2689
      %v2841 = vmul.f32 %v2833, %v2689
      %v2842 = vmul.f32 %v2834, %v2689
      %v2843 = vmul.f32 %v2835, %v2693
      %v2844 = vmul.f32 %v2836, %v2693
      %v2845 = vmul.f32 %v2837, %v2693
      %v2846 = vmul.f32 %v2838, %v2693
      %v2847 = vsel %vm887, %v2843, 0.0
      %v2848 = vadd.f32 %v2839, %v2847
      %v2849 = vrot.slane %v2848, 4
      %v2850 = vadd.f32 %v2848, %v2849
      %v2851 = vrot.slane %v2850, 2
      %v2852 = vadd.f32 %v2850, %v2851
      %v2853 = vrot.slane %v2852, 1
      %v2854 = vadd.f32 %v2852, %v2853
      %v2855 = vsel %vm887, %v2844, 0.0
      %v2856 = vadd.f32 %v2840, %v2855
      %v2857 = vrot.slane %v2856, 4
      %v2858 = vadd.f32 %v2856, %v2857
      %v2859 = vrot.slane %v2858, 2
      %v2860 = vadd.f32 %v2858, %v2859
      %v2861 = vrot.slane %v2860, 1
      %v2862 = vadd.f32 %v2860, %v2861
      %v2863 = vsel %vm887, %v2845, 0.0
      %v2864 = vadd.f32 %v2841, %v2863
      %v2865 = vrot.slane %v2864, 4
      %v2866 = vadd.f32 %v2864, %v2865
      %v2867 = vrot.slane %v2866, 2
      %v2868 = vadd.f32 %v2866, %v2867
      %v2869 = vrot.slane %v2868, 1
      %v2870 = vadd.f32 %v2868, %v2869
      %v2871 = vsel %vm887, %v2846, 0.0
      %v2872 = vadd.f32 %v2842, %v2871
      %v2873 = vrot.slane %v2872, 4
      %v2874 = vadd.f32 %v2872, %v2873
      %v2875 = vrot.slane %v2874, 2
      %v2876 = vadd.f32 %v2874, %v2875
      %v2877 = vrot.slane %v2876, 1
      %v2878 = vadd.f32 %v2876, %v2877
      %v2879 = vmul.f32 %v2831, %v2737
      %v2880 = vmul.f32 %v2832, %v2737
      %v2881 = vmul.f32 %v2833, %v2737
      %v2882 = vmul.f32 %v2834, %v2737
      %v2883 = vmul.f32 %v2835, %v2741
      %v2884 = vmul.f32 %v2836, %v2741
      %v2885 = vmul.f32 %v2837, %v2741
      %v2886 = vmul.f32 %v2838, %v2741
      %v2887 = vsel %vm887, %v2883, 0.0
      %v2888 = vadd.f32 %v2879, %v2887
      %v2889 = vrot.slane %v2888, 4
      %v2890 = vadd.f32 %v2888, %v2889
      %v2891 = vrot.slane %v2890, 2
      %v2892 = vadd.f32 %v2890, %v2891
      %v2893 = vrot.slane %v2892, 1
      %v2894 = vadd.f32 %v2892, %v2893
      %v2895 = vsel %vm887, %v2884, 0.0
      %v2896 = vadd.f32 %v2880, %v2895
      %v2897 = vrot.slane %v2896, 4
      %v2898 = vadd.f32 %v2896, %v2897
      %v2899 = vrot.slane %v2898, 2
      %v2900 = vadd.f32 %v2898, %v2899
      %v2901 = vrot.slane %v2900, 1
      %v2902 = vadd.f32 %v2900, %v2901
      %v2903 = vsel %vm887, %v2885, 0.0
      %v2904 = vadd.f32 %v2881, %v2903
      %v2905 = vrot.slane %v2904, 4
      %v2906 = vadd.f32 %v2904, %v2905
      %v2907 = vrot.slane %v2906, 2
      %v2908 = vadd.f32 %v2906, %v2907
      %v2909 = vrot.slane %v2908, 1
      %v2910 = vadd.f32 %v2908, %v2909
      %v2911 = vsel %vm887, %v2886, 0.0
      %v2912 = vadd.f32 %v2882, %v2911
      %v2913 = vrot.slane %v2912, 4
      %v2914 = vadd.f32 %v2912, %v2913
      %v2915 = vrot.slane %v2914, 2
      %v2916 = vadd.f32 %v2914, %v2915
      %v2917 = vrot.slane %v2916, 1
      %v2918 = vadd.f32 %v2916, %v2917
      %v2919 = vmax.f32 %v2854, 1e-24
      %v2920 = vmax.f32 %v2862, 1e-24
      %v2921 = vmax.f32 %v2870, 1e-24
      %v2922 = vmax.f32 %v2878, 1e-24
      %v2923 = vrsqrt.pop %v2919
      %v2924 = vrsqrt.pop %v2920
      %v2925 = vrsqrt.pop %v2921
      %v2926 = vrsqrt.pop %v2922
      %v2927 = vmul.f32 %v2689, %v2923
      %v2928 = vmul.f32 %v2689, %v2924
      %v2929 = vmul.f32 %v2689, %v2925
      %v2930 = vmul.f32 %v2689, %v2926
      %v2931 = vmul.f32 %v2693, %v2923
      %v2932 = vmul.f32 %v2693, %v2924
      %v2933 = vmul.f32 %v2693, %v2925
      %v2934 = vmul.f32 %v2693, %v2926
      %v2935 = vmax.f32 %v2894, 1e-24
      %v2936 = vmax.f32 %v2902, 1e-24
      %v2937 = vmax.f32 %v2910, 1e-24
      %v2938 = vmax.f32 %v2918, 1e-24
      %v2939 = vrsqrt.pop %v2935
      %v2940 = vrsqrt.pop %v2936
      %v2941 = vrsqrt.pop %v2937
      %v2942 = vrsqrt.pop %v2938
      %v2943 = vmul.f32 %v2737, %v2939
      %v2944 = vmul.f32 %v2737, %v2940
      %v2945 = vmul.f32 %v2737, %v2941
      %v2946 = vmul.f32 %v2737, %v2942
      %v2947 = vmul.f32 %v2741, %v2939
      %v2948 = vmul.f32 %v2741, %v2940
      %v2949 = vmul.f32 %v2741, %v2941
      %v2950 = vmul.f32 %v2741, %v2942
      %v2951 = vadd.f32 %v2927, %v2943
      %v2952 = vadd.f32 %v2928, %v2944
      %v2953 = vadd.f32 %v2929, %v2945
      %v2954 = vadd.f32 %v2930, %v2946
      %v2955 = vadd.f32 %v2931, %v2947
      %v2956 = vadd.f32 %v2932, %v2948
      %v2957 = vadd.f32 %v2933, %v2949
      %v2958 = vadd.f32 %v2934, %v2950
      %v2959 = vmul.f32 %v2592, %v2951
      %v2960 = vmul.f32 %v2594, %v2952
      %v2961 = vmul.f32 %v2669, %v2953
      %v2962 = vmul.f32 %v2671, %v2954
      %v2963 = vmul.f32 %v2598, %v2955
      %v2964 = vmul.f32 %v2600, %v2956
      %v2965 = vmul.f32 %v2675, %v2957
      %v2966 = vmul.f32 %v2677, %v2958
      %2967 = vset.pattern.permute.xlu0 19
      %2968 = vperm.xlu0 %2967, %v199
      %v2969 = vpop.permute.xlu0 %2968
      %2971 = vset.pattern.permute.xlu0 19
      %2972 = vperm.xlu0 %2971, %v201
      %v2973 = vpop.permute.xlu0 %2972
      %v2975 = vmul.f32 %v2969, %v2823
      %v2976 = vmul.f32 %v2969, %v2824
      %v2977 = vmul.f32 %v2969, %v2825
      %v2978 = vmul.f32 %v2969, %v2826
      %v2979 = vmul.f32 %v2973, %v2827
      %v2980 = vmul.f32 %v2973, %v2828
      %v2981 = vmul.f32 %v2973, %v2829
      %v2982 = vmul.f32 %v2973, %v2830
      %v2983 = vmul.f32 %v2975, %v2689
      %v2984 = vmul.f32 %v2976, %v2689
      %v2985 = vmul.f32 %v2977, %v2689
      %v2986 = vmul.f32 %v2978, %v2689
      %v2987 = vmul.f32 %v2979, %v2693
      %v2988 = vmul.f32 %v2980, %v2693
      %v2989 = vmul.f32 %v2981, %v2693
      %v2990 = vmul.f32 %v2982, %v2693
      %v2991 = vsel %vm887, %v2987, 0.0
      %v2992 = vadd.f32 %v2983, %v2991
      %v2993 = vrot.slane %v2992, 4
      %v2994 = vadd.f32 %v2992, %v2993
      %v2995 = vrot.slane %v2994, 2
      %v2996 = vadd.f32 %v2994, %v2995
      %v2997 = vrot.slane %v2996, 1
      %v2998 = vadd.f32 %v2996, %v2997
      %v2999 = vsel %vm887, %v2988, 0.0
      %v3000 = vadd.f32 %v2984, %v2999
      %v3001 = vrot.slane %v3000, 4
      %v3002 = vadd.f32 %v3000, %v3001
      %v3003 = vrot.slane %v3002, 2
      %v3004 = vadd.f32 %v3002, %v3003
      %v3005 = vrot.slane %v3004, 1
      %v3006 = vadd.f32 %v3004, %v3005
      %v3007 = vsel %vm887, %v2989, 0.0
      %v3008 = vadd.f32 %v2985, %v3007
      %v3009 = vrot.slane %v3008, 4
      %v3010 = vadd.f32 %v3008, %v3009
      %v3011 = vrot.slane %v3010, 2
      %v3012 = vadd.f32 %v3010, %v3011
      %v3013 = vrot.slane %v3012, 1
      %v3014 = vadd.f32 %v3012, %v3013
      %v3015 = vsel %vm887, %v2990, 0.0
      %v3016 = vadd.f32 %v2986, %v3015
      %v3017 = vrot.slane %v3016, 4
      %v3018 = vadd.f32 %v3016, %v3017
      %v3019 = vrot.slane %v3018, 2
      %v3020 = vadd.f32 %v3018, %v3019
      %v3021 = vrot.slane %v3020, 1
      %v3022 = vadd.f32 %v3020, %v3021
      %v3023 = vmul.f32 %v2975, %v2737
      %v3024 = vmul.f32 %v2976, %v2737
      %v3025 = vmul.f32 %v2977, %v2737
      %v3026 = vmul.f32 %v2978, %v2737
      %v3027 = vmul.f32 %v2979, %v2741
      %v3028 = vmul.f32 %v2980, %v2741
      %v3029 = vmul.f32 %v2981, %v2741
      %v3030 = vmul.f32 %v2982, %v2741
      %v3031 = vsel %vm887, %v3027, 0.0
      %v3032 = vadd.f32 %v3023, %v3031
      %v3033 = vrot.slane %v3032, 4
      %v3034 = vadd.f32 %v3032, %v3033
      %v3035 = vrot.slane %v3034, 2
      %v3036 = vadd.f32 %v3034, %v3035
      %v3037 = vrot.slane %v3036, 1
      %v3038 = vadd.f32 %v3036, %v3037
      %v3039 = vsel %vm887, %v3028, 0.0
      %v3040 = vadd.f32 %v3024, %v3039
      %v3041 = vrot.slane %v3040, 4
      %v3042 = vadd.f32 %v3040, %v3041
      %v3043 = vrot.slane %v3042, 2
      %v3044 = vadd.f32 %v3042, %v3043
      %v3045 = vrot.slane %v3044, 1
      %v3046 = vadd.f32 %v3044, %v3045
      %v3047 = vsel %vm887, %v3029, 0.0
      %v3048 = vadd.f32 %v3025, %v3047
      %v3049 = vrot.slane %v3048, 4
      %v3050 = vadd.f32 %v3048, %v3049
      %v3051 = vrot.slane %v3050, 2
      %v3052 = vadd.f32 %v3050, %v3051
      %v3053 = vrot.slane %v3052, 1
      %v3054 = vadd.f32 %v3052, %v3053
      %v3055 = vsel %vm887, %v3030, 0.0
      %v3056 = vadd.f32 %v3026, %v3055
      %v3057 = vrot.slane %v3056, 4
      %v3058 = vadd.f32 %v3056, %v3057
      %v3059 = vrot.slane %v3058, 2
      %v3060 = vadd.f32 %v3058, %v3059
      %v3061 = vrot.slane %v3060, 1
      %v3062 = vadd.f32 %v3060, %v3061
      %v3063 = vmul.f32 %v2689, %v2998
      %v3064 = vmul.f32 %v2689, %v3006
      %v3065 = vmul.f32 %v2689, %v3014
      %v3066 = vmul.f32 %v2689, %v3022
      %v3067 = vmul.f32 %v2693, %v2998
      %v3068 = vmul.f32 %v2693, %v3006
      %v3069 = vmul.f32 %v2693, %v3014
      %v3070 = vmul.f32 %v2693, %v3022
      %v3071 = vmul.f32 %v2737, %v3038
      %v3072 = vmul.f32 %v2737, %v3046
      %v3073 = vmul.f32 %v2737, %v3054
      %v3074 = vmul.f32 %v2737, %v3062
      %v3075 = vmul.f32 %v2741, %v3038
      %v3076 = vmul.f32 %v2741, %v3046
      %v3077 = vmul.f32 %v2741, %v3054
      %v3078 = vmul.f32 %v2741, %v3062
      %v3079 = vadd.f32 %v3063, %v3071
      %v3080 = vadd.f32 %v3064, %v3072
      %v3081 = vadd.f32 %v3065, %v3073
      %v3082 = vadd.f32 %v3066, %v3074
      %v3083 = vadd.f32 %v3067, %v3075
      %v3084 = vadd.f32 %v3068, %v3076
      %v3085 = vadd.f32 %v3069, %v3077
      %v3086 = vadd.f32 %v3070, %v3078
      %3087 = vset.pattern.permute.xlu0 22
      %3088 = vperm.xlu0 %3087, %v199
      %v3089 = vpop.permute.xlu0 %3088
      %3091 = vset.pattern.permute.xlu0 22
      %3092 = vperm.xlu0 %3091, %v201
      %v3093 = vpop.permute.xlu0 %3092
      %v3095 = vmul.f32 %v3079, %v3089
      %v3096 = vmul.f32 %v3080, %v3089
      %v3097 = vmul.f32 %v3081, %v3089
      %v3098 = vmul.f32 %v3082, %v3089
      %v3099 = vmul.f32 %v3083, %v3093
      %v3100 = vmul.f32 %v3084, %v3093
      %v3101 = vmul.f32 %v3085, %v3093
      %v3102 = vmul.f32 %v3086, %v3093
      %v3103 = vmul.f32 %v3095, %v3095
      %v3104 = vmul.f32 %v3096, %v3096
      %v3105 = vmul.f32 %v3097, %v3097
      %v3106 = vmul.f32 %v3098, %v3098
      %v3107 = vmul.f32 %v3099, %v3099
      %v3108 = vmul.f32 %v3100, %v3100
      %v3109 = vmul.f32 %v3101, %v3101
      %v3110 = vmul.f32 %v3102, %v3102
      %v3111 = vlaneseq
      %v3112 = vshrl.u32 %v3111, 7
      %v3113 = vsub.s32 0, %v3112
      %v3114 = vrot.slane %v212, %v3113
      %v3115 = vlaneseq
      %v3116 = vshrl.u32 %v3115, 7
      %v3117 = vsub.s32 0, %v3116
      %v3118 = vrot.slane %v213, %v3117
      %v3119 = vlaneseq
      %v3120 = vshrl.u32 %v3119, 7
      %v3121 = vsub.s32 0, %v3120
      %v3122 = vrot.slane %v214, %v3121
      %v3123 = vlaneseq
      %v3124 = vshrl.u32 %v3123, 7
      %v3125 = vsub.s32 0, %v3124
      %v3126 = vrot.slane %v215, %v3125
      %v3127 = vmul.f32 %v3103, %v3114
      %v3128 = vmul.f32 %v3104, %v3118
      %v3129 = vmul.f32 %v3105, %v3122
      %v3130 = vmul.f32 %v3106, %v3126
      %v3131 = vmul.f32 %v3107, %v3114
      %v3132 = vmul.f32 %v3108, %v3118
      %v3133 = vmul.f32 %v3109, %v3122
      %v3134 = vmul.f32 %v3110, %v3126
      %v3135 = vadd.f32 %v3127, %v3128
      %v3136 = vadd.f32 %v3135, %v3129
      %v3137 = vadd.f32 %v3136, %v3130
      %3138 = vadd.xlane.f32.xlu0 %v3137
      %v3139 = vpop.xlane.xlu0 %3138
      %v3140 = vsel %vm887, %v3131, 0.0
      %v3141 = vsel %vm887, %v3132, 0.0
      %v3142 = vadd.f32 %v3140, %v3141
      %v3143 = vsel %vm887, %v3133, 0.0
      %v3144 = vadd.f32 %v3142, %v3143
      %v3145 = vsel %vm887, %v3134, 0.0
      %v3146 = vadd.f32 %v3144, %v3145
      %3147 = vadd.xlane.f32.xlu0 %v3146
      %v3148 = vpop.xlane.xlu0 %3147
      %v3149 = vmax.f32 %v3139, 1e-24
      %v3150 = vmax.f32 %v3148, 1e-24
      %v3151 = vrsqrt.pop %v3149
      %v3152 = vrsqrt.pop %v3150
      %v3153 = vmul.f32 %v3114, %v3151
      %v3154 = vmul.f32 %v3118, %v3151
      %v3155 = vmul.f32 %v3122, %v3151
      %v3156 = vmul.f32 %v3126, %v3151
      %v3157 = vmul.f32 %v3114, %v3152
      %v3158 = vmul.f32 %v3118, %v3152
      %v3159 = vmul.f32 %v3122, %v3152
      %v3160 = vmul.f32 %v3126, %v3152
      %v3161 = vadd.f32 %v3153, 0.0
      %v3162 = vadd.f32 %v3154, 0.0
      %v3163 = vadd.f32 %v3155, 0.0
      %v3164 = vadd.f32 %v3156, 0.0
      %v3165 = vadd.f32 %v3157, 0.0
      %v3166 = vadd.f32 %v3158, 0.0
      %v3167 = vadd.f32 %v3159, 0.0
      %v3168 = vadd.f32 %v3160, 0.0
      %v3169 = vlaneseq
      %v3170 = vshrl.u32 %v3169, 7
      %v3171 = vsub.s32 1, %v3170
      %v3172 = vrot.slane %v212, %v3171
      %v3173 = vlaneseq
      %v3174 = vshrl.u32 %v3173, 7
      %v3175 = vsub.s32 1, %v3174
      %v3176 = vrot.slane %v213, %v3175
      %v3177 = vlaneseq
      %v3178 = vshrl.u32 %v3177, 7
      %v3179 = vsub.s32 1, %v3178
      %v3180 = vrot.slane %v214, %v3179
      %v3181 = vlaneseq
      %v3182 = vshrl.u32 %v3181, 7
      %v3183 = vsub.s32 1, %v3182
      %v3184 = vrot.slane %v215, %v3183
      %v3185 = vmul.f32 %v3103, %v3172
      %v3186 = vmul.f32 %v3104, %v3176
      %v3187 = vmul.f32 %v3105, %v3180
      %v3188 = vmul.f32 %v3106, %v3184
      %v3189 = vmul.f32 %v3107, %v3172
      %v3190 = vmul.f32 %v3108, %v3176
      %v3191 = vmul.f32 %v3109, %v3180
      %v3192 = vmul.f32 %v3110, %v3184
      %v3193 = vadd.f32 %v3185, %v3186
      %v3194 = vadd.f32 %v3193, %v3187
      %v3195 = vadd.f32 %v3194, %v3188
      %3196 = vadd.xlane.f32.xlu0 %v3195
      %v3197 = vpop.xlane.xlu0 %3196
      %v3198 = vsel %vm887, %v3189, 0.0
      %v3199 = vsel %vm887, %v3190, 0.0
      %v3200 = vadd.f32 %v3198, %v3199
      %v3201 = vsel %vm887, %v3191, 0.0
      %v3202 = vadd.f32 %v3200, %v3201
      %v3203 = vsel %vm887, %v3192, 0.0
      %v3204 = vadd.f32 %v3202, %v3203
      %3205 = vadd.xlane.f32.xlu0 %v3204
      %v3206 = vpop.xlane.xlu0 %3205
      %v3207 = vmax.f32 %v3197, 1e-24
      %v3208 = vmax.f32 %v3206, 1e-24
      %v3209 = vrsqrt.pop %v3207
      %v3210 = vrsqrt.pop %v3208
      %v3211 = vmul.f32 %v3172, %v3209
      %v3212 = vmul.f32 %v3176, %v3209
      %v3213 = vmul.f32 %v3180, %v3209
      %v3214 = vmul.f32 %v3184, %v3209
      %v3215 = vmul.f32 %v3172, %v3210
      %v3216 = vmul.f32 %v3176, %v3210
      %v3217 = vmul.f32 %v3180, %v3210
      %v3218 = vmul.f32 %v3184, %v3210
      %v3219 = vadd.f32 %v3161, %v3211
      %v3220 = vadd.f32 %v3162, %v3212
      %v3221 = vadd.f32 %v3163, %v3213
      %v3222 = vadd.f32 %v3164, %v3214
      %v3223 = vadd.f32 %v3165, %v3215
      %v3224 = vadd.f32 %v3166, %v3216
      %v3225 = vadd.f32 %v3167, %v3217
      %v3226 = vadd.f32 %v3168, %v3218
      %v3227 = vmul.f32 %v3095, %v3219
      %v3228 = vmul.f32 %v3096, %v3220
      %v3229 = vmul.f32 %v3097, %v3221
      %v3230 = vmul.f32 %v3098, %v3222
      %v3231 = vmul.f32 %v3099, %v3223
      %v3232 = vmul.f32 %v3100, %v3224
      %v3233 = vmul.f32 %v3101, %v3225
      %v3234 = vmul.f32 %v3102, %v3226
      %v3235 = vmul.f32 %v3227, %v2823
      %v3236 = vmul.f32 %v3228, %v2824
      %v3237 = vmul.f32 %v3229, %v2825
      %v3238 = vmul.f32 %v3230, %v2826
      %v3239 = vmul.f32 %v3231, %v2827
      %v3240 = vmul.f32 %v3232, %v2828
      %v3241 = vmul.f32 %v3233, %v2829
      %v3242 = vmul.f32 %v3234, %v2830
      %v3243 = vmul.f32 %v3235, %v3114
      %v3244 = vmul.f32 %v3236, %v3118
      %v3245 = vmul.f32 %v3237, %v3122
      %v3246 = vmul.f32 %v3238, %v3126
      %v3247 = vmul.f32 %v3239, %v3114
      %v3248 = vmul.f32 %v3240, %v3118
      %v3249 = vmul.f32 %v3241, %v3122
      %v3250 = vmul.f32 %v3242, %v3126
      %v3251 = vadd.f32 %v3243, %v3244
      %v3252 = vadd.f32 %v3251, %v3245
      %v3253 = vadd.f32 %v3252, %v3246
      %3254 = vadd.xlane.f32.xlu0 %v3253
      %v3255 = vpop.xlane.xlu0 %3254
      %v3256 = vsel %vm887, %v3247, 0.0
      %v3257 = vsel %vm887, %v3248, 0.0
      %v3258 = vadd.f32 %v3256, %v3257
      %v3259 = vsel %vm887, %v3249, 0.0
      %v3260 = vadd.f32 %v3258, %v3259
      %v3261 = vsel %vm887, %v3250, 0.0
      %v3262 = vadd.f32 %v3260, %v3261
      %3263 = vadd.xlane.f32.xlu0 %v3262
      %v3264 = vpop.xlane.xlu0 %3263
      %v3265 = vmul.f32 %v3114, %v3255
      %v3266 = vmul.f32 %v3118, %v3255
      %v3267 = vmul.f32 %v3122, %v3255
      %v3268 = vmul.f32 %v3126, %v3255
      %v3269 = vmul.f32 %v3114, %v3264
      %v3270 = vmul.f32 %v3118, %v3264
      %v3271 = vmul.f32 %v3122, %v3264
      %v3272 = vmul.f32 %v3126, %v3264
      %v3273 = vadd.f32 %v3265, 0.0
      %v3274 = vadd.f32 %v3266, 0.0
      %v3275 = vadd.f32 %v3267, 0.0
      %v3276 = vadd.f32 %v3268, 0.0
      %v3277 = vadd.f32 %v3269, 0.0
      %v3278 = vadd.f32 %v3270, 0.0
      %v3279 = vadd.f32 %v3271, 0.0
      %v3280 = vadd.f32 %v3272, 0.0
      %v3281 = vmul.f32 %v3235, %v3172
      %v3282 = vmul.f32 %v3236, %v3176
      %v3283 = vmul.f32 %v3237, %v3180
      %v3284 = vmul.f32 %v3238, %v3184
      %v3285 = vmul.f32 %v3239, %v3172
      %v3286 = vmul.f32 %v3240, %v3176
      %v3287 = vmul.f32 %v3241, %v3180
      %v3288 = vmul.f32 %v3242, %v3184
      %v3289 = vadd.f32 %v3281, %v3282
      %v3290 = vadd.f32 %v3289, %v3283
      %v3291 = vadd.f32 %v3290, %v3284
      %3292 = vadd.xlane.f32.xlu0 %v3291
      %v3293 = vpop.xlane.xlu0 %3292
      %v3294 = vsel %vm887, %v3285, 0.0
      %v3295 = vsel %vm887, %v3286, 0.0
      %v3296 = vadd.f32 %v3294, %v3295
      %v3297 = vsel %vm887, %v3287, 0.0
      %v3298 = vadd.f32 %v3296, %v3297
      %v3299 = vsel %vm887, %v3288, 0.0
      %v3300 = vadd.f32 %v3298, %v3299
      %3301 = vadd.xlane.f32.xlu0 %v3300
      %v3302 = vpop.xlane.xlu0 %3301
      %v3303 = vmul.f32 %v3172, %v3293
      %v3304 = vmul.f32 %v3176, %v3293
      %v3305 = vmul.f32 %v3180, %v3293
      %v3306 = vmul.f32 %v3184, %v3293
      %v3307 = vmul.f32 %v3172, %v3302
      %v3308 = vmul.f32 %v3176, %v3302
      %v3309 = vmul.f32 %v3180, %v3302
      %v3310 = vmul.f32 %v3184, %v3302
      %v3311 = vadd.f32 %v3273, %v3303
      %v3312 = vadd.f32 %v3274, %v3304
      %v3313 = vadd.f32 %v3275, %v3305
      %v3314 = vadd.f32 %v3276, %v3306
      %v3315 = vadd.f32 %v3277, %v3307
      %v3316 = vadd.f32 %v3278, %v3308
      %v3317 = vadd.f32 %v3279, %v3309
      %v3318 = vadd.f32 %v3280, %v3310
      %v3319 = vmul.f32 %v3311, %v2959
      %v3320 = vmul.f32 %v3312, %v2960
      %v3321 = vmul.f32 %v3313, %v2961
      %v3322 = vmul.f32 %v3314, %v2962
      %v3323 = vmul.f32 %v3315, %v2963
      %v3324 = vmul.f32 %v3316, %v2964
      %v3325 = vmul.f32 %v3317, %v2965
      %v3326 = vmul.f32 %v3318, %v2966
      %3327 = vset.pattern.permute.xlu0 20
      %3328 = vperm.xlu0 %3327, %v199
      %v3329 = vpop.permute.xlu0 %3328
      %3331 = vset.pattern.permute.xlu0 20
      %3332 = vperm.xlu0 %3331, %v201
      %v3333 = vpop.permute.xlu0 %3332
      %3335 = vrot.lane.b32.xlu0 %v198, 7
      %v3336 = vpop.permute.xlu0 %3335
      %3337 = vrot.lane.b32.xlu0 %v199, 7
      %v3338 = vpop.permute.xlu0 %3337
      %3339 = vrot.lane.b32.xlu0 %v200, 7
      %v3340 = vpop.permute.xlu0 %3339
      %3341 = vrot.lane.b32.xlu0 %v201, 7
      %v3342 = vpop.permute.xlu0 %3341
      %vm3343 = vcmask 56320
      %v3344 = vsel %vm3343, %v3336, %v3338
      %v3345 = vsel %vm3343, %v3340, %v3342
      %v3346 = vsel %vm874, %v3344, 0
      %v3348 = vsel %vm874, %v3345, 0
      %v3351 = vsel %vm887, %v3323, 0
      %v3354 = vsel %vm887, %v3324, 0
      %v3357 = vsel %vm887, %v3325, 0
      %v3360 = vsel %vm887, %v3326, 0
      %3362 = vmatprep.subr.mxu0 %v3320
      %3363 = vmatpush1.msra.mxu0 %v3319
      %3364 = vmatprep.subr.mxu0 %v3354
      %3365 = vmatpush1.msra.mxu0 %v3351
      %3366 = vmatprep.subr.mxu0 0.0
      %3367 = vmatpush1.msra.mxu0 0.0
      %3368 = vmatprep.subr.mxu0 0.0
      %3369 = vmatpush1.msra.mxu0 0.0
      %3370 = vmatprep.subr.mxu0 0.0
      %3371 = vmatpush1.msra.mxu0 0.0
      %3372 = vmatprep.subr.mxu0 0.0
      %3373 = vmatpush1.msra.mxu0 0.0
      %3374 = vmatprep.subr.mxu0 0.0
      %3375 = vmatpush1.msra.mxu0 0.0
      %3376 = vmatprep.subr.mxu0 0.0
      %3377 = vmatpush1.msra.mxu0 0.0
      %3378 = vmatprep.subr.mxu0 0.0
      %3379 = vmatpush1.msra.mxu0 0.0
      %3380 = vmatprep.subr.mxu0 0.0
      %3381 = vmatpush1.msra.mxu0 0.0
      %3382 = vmatprep.subr.mxu0 0.0
      %3383 = vmatpush1.msra.mxu0 0.0
      %3384 = vmatprep.subr.mxu0 0.0
      %3385 = vmatpush1.msra.mxu0 0.0
      %3386 = vmatprep.subr.mxu0 0.0
      %3387 = vmatpush1.msra.mxu0 0.0
      %3388 = vmatprep.subr.mxu0 0.0
      %3389 = vmatpush1.msra.mxu0 0.0
      %3390 = vmatprep.subr.mxu0 0.0
      %3391 = vmatpush1.msra.mxu0 0.0
      %3392 = vmatprep.subr.mxu0 0.0
      %3393 = vmatpush1.msra.mxu0 0.0
      %3394 = vmatprep.subr.mxu0 0.0
      %3395 = vmatpush1.msra.mxu0 0.0
      %3396 = vmatprep.subr.mxu0 0.0
      %3397 = vmatpush1.msra.mxu0 0.0
      %3398 = vmatprep.subr.mxu0 0.0
      %3399 = vmatpush1.msra.mxu0 0.0
      %3400 = vmatprep.subr.mxu0 0.0
      %3401 = vmatpush1.msra.mxu0 0.0
      %3402 = vmatprep.subr.mxu0 0.0
      %3403 = vmatpush1.msra.mxu0 0.0
      %3404 = vmatprep.subr.mxu0 0.0
      %3405 = vmatpush1.msra.mxu0 0.0
      %3406 = vmatprep.subr.mxu0 0.0
      %3407 = vmatpush1.msra.mxu0 0.0
      %3408 = vmatprep.subr.mxu0 0.0
      %3409 = vmatpush1.msra.mxu0 0.0
      %3410 = vmatprep.subr.mxu0 0.0
      %3411 = vmatpush1.msra.mxu0 0.0
      %3412 = vmatprep.subr.mxu0 0.0
      %3413 = vmatpush1.msra.mxu0 0.0
      %3414 = vmatprep.subr.mxu0 0.0
      %3415 = vmatpush1.msra.mxu0 0.0
      %3416 = vmatprep.subr.mxu0 0.0
      %3417 = vmatpush1.msra.mxu0 0.0
      %3418 = vmatprep.subr.mxu0 0.0
      %3419 = vmatpush1.msra.mxu0 0.0
      %3420 = vmatprep.subr.mxu0 0.0
      %3421 = vmatpush1.msra.mxu0 0.0
      %3422 = vmatprep.subr.mxu0 0.0
      %3423 = vmatpush1.msra.mxu0 0.0
      %3424 = vmatprep.subr.mxu0 0.0
      %3425 = vmatpush1.msra.mxu0 0.0
      %3426 = vmatprep.mubr.f32.mxu0 0.0
      %3427 = vmatmul.mubr.f32.gmra.mrb[0].mxu0 %v3346
      %v3428 = vpop.f32.mrb[0].mxu0
      %v3429 = vadd.f32 %v3329, %v3428
      %v3430 = vpop.f32.mrb[0].mxu0
      %v3431 = vadd.f32 %v3329, %v3430
      %3432 = vmatprep.mubr.f32.mxu0 0.0
      %3433 = vmatmul.mubr.f32.gmra.mrb[0].mxu0 %v3348
      %v3434 = vpop.f32.mrb[0].mxu0
      %v3435 = vadd.f32 %v3333, %v3434
      %v3436 = vpop.f32.mrb[0].mxu0
      %v3437 = vadd.f32 %v3333, %v3436
      %3438 = vdwg.mxu0
      %3439 = vmatprep.subr.mxu0 %v3322
      %3440 = vmatpush1.msra.mxu0 %v3321
      %3441 = vmatprep.subr.mxu0 %v3360
      %3442 = vmatpush1.msra.mxu0 %v3357
      %3443 = vmatprep.subr.mxu0 0.0
      %3444 = vmatpush1.msra.mxu0 0.0
      %3445 = vmatprep.subr.mxu0 0.0
      %3446 = vmatpush1.msra.mxu0 0.0
      %3447 = vmatprep.subr.mxu0 0.0
      %3448 = vmatpush1.msra.mxu0 0.0
      %3449 = vmatprep.subr.mxu0 0.0
      %3450 = vmatpush1.msra.mxu0 0.0
      %3451 = vmatprep.subr.mxu0 0.0
      %3452 = vmatpush1.msra.mxu0 0.0
      %3453 = vmatprep.subr.mxu0 0.0
      %3454 = vmatpush1.msra.mxu0 0.0
      %3455 = vmatprep.subr.mxu0 0.0
      %3456 = vmatpush1.msra.mxu0 0.0
      %3457 = vmatprep.subr.mxu0 0.0
      %3458 = vmatpush1.msra.mxu0 0.0
      %3459 = vmatprep.subr.mxu0 0.0
      %3460 = vmatpush1.msra.mxu0 0.0
      %3461 = vmatprep.subr.mxu0 0.0
      %3462 = vmatpush1.msra.mxu0 0.0
      %3463 = vmatprep.subr.mxu0 0.0
      %3464 = vmatpush1.msra.mxu0 0.0
      %3465 = vmatprep.subr.mxu0 0.0
      %3466 = vmatpush1.msra.mxu0 0.0
      %3467 = vmatprep.subr.mxu0 0.0
      %3468 = vmatpush1.msra.mxu0 0.0
      %3469 = vmatprep.subr.mxu0 0.0
      %3470 = vmatpush1.msra.mxu0 0.0
      %3471 = vmatprep.subr.mxu0 0.0
      %3472 = vmatpush1.msra.mxu0 0.0
      %3473 = vmatprep.subr.mxu0 0.0
      %3474 = vmatpush1.msra.mxu0 0.0
      %3475 = vmatprep.subr.mxu0 0.0
      %3476 = vmatpush1.msra.mxu0 0.0
      %3477 = vmatprep.subr.mxu0 0.0
      %3478 = vmatpush1.msra.mxu0 0.0
      %3479 = vmatprep.subr.mxu0 0.0
      %3480 = vmatpush1.msra.mxu0 0.0
      %3481 = vmatprep.subr.mxu0 0.0
      %3482 = vmatpush1.msra.mxu0 0.0
      %3483 = vmatprep.subr.mxu0 0.0
      %3484 = vmatpush1.msra.mxu0 0.0
      %3485 = vmatprep.subr.mxu0 0.0
      %3486 = vmatpush1.msra.mxu0 0.0
      %3487 = vmatprep.subr.mxu0 0.0
      %3488 = vmatpush1.msra.mxu0 0.0
      %3489 = vmatprep.subr.mxu0 0.0
      %3490 = vmatpush1.msra.mxu0 0.0
      %3491 = vmatprep.subr.mxu0 0.0
      %3492 = vmatpush1.msra.mxu0 0.0
      %3493 = vmatprep.subr.mxu0 0.0
      %3494 = vmatpush1.msra.mxu0 0.0
      %3495 = vmatprep.subr.mxu0 0.0
      %3496 = vmatpush1.msra.mxu0 0.0
      %3497 = vmatprep.subr.mxu0 0.0
      %3498 = vmatpush1.msra.mxu0 0.0
      %3499 = vmatprep.subr.mxu0 0.0
      %3500 = vmatpush1.msra.mxu0 0.0
      %3501 = vmatprep.subr.mxu0 0.0
      %3502 = vmatpush1.msra.mxu0 0.0
      %3503 = vmatprep.mubr.f32.mxu0 0.0
      %3504 = vmatmul.mubr.f32.gmra.mrb[0].mxu0 %v3346
      %v3505 = vpop.f32.mrb[0].mxu0
      %v3506 = vadd.f32 %v3329, %v3505
      %v3507 = vpop.f32.mrb[0].mxu0
      %v3508 = vadd.f32 %v3329, %v3507
      %3509 = vmatprep.mubr.f32.mxu0 0.0
      %3510 = vmatmul.mubr.f32.gmra.mrb[0].mxu0 %v3348
      %v3511 = vpop.f32.mrb[0].mxu0
      %v3512 = vadd.f32 %v3333, %v3511
      %v3513 = vpop.f32.mrb[0].mxu0
      %v3514 = vadd.f32 %v3333, %v3513
      %3515 = vdwg.mxu0
      %v3516 = vadd.f32 %v3429, %v2823
      %v3517 = vadd.f32 %v3431, %v2824
      %v3518 = vadd.f32 %v3506, %v2825
      %v3519 = vadd.f32 %v3508, %v2826
      %v3520 = vadd.f32 %v3435, %v2827
      %v3521 = vadd.f32 %v3437, %v2828
      %v3522 = vadd.f32 %v3512, %v2829
      %v3523 = vadd.f32 %v3514, %v2830
      %3524 = vset.pattern.permute.xlu0 21
      %3525 = vperm.xlu0 %3524, %v199
      %v3526 = vpop.permute.xlu0 %3525
      %3528 = vset.pattern.permute.xlu0 21
      %3529 = vperm.xlu0 %3528, %v201
      %v3530 = vpop.permute.xlu0 %3529
      %3532 = vrot.lane.b32.xlu0 %v199, 123
      %v3533 = vpop.permute.xlu0 %3532
      %3534 = vrot.lane.b32.xlu0 %v201, 123
      %v3535 = vpop.permute.xlu0 %3534
      %v3536 = vsel %vm874, %v3533, 0
      %v3538 = vsel %vm874, %v3535, 0
      %v3541 = vsel %vm887, %v3520, 0
      %v3544 = vsel %vm887, %v3521, 0
      %v3547 = vsel %vm887, %v3522, 0
      %v3550 = vsel %vm887, %v3523, 0
      %3552 = vmatprep.subr.mxu0 %v3517
      %3553 = vmatpush1.msra.mxu0 %v3516
      %3554 = vmatprep.subr.mxu0 %v3544
      %3555 = vmatpush1.msra.mxu0 %v3541
      %3556 = vmatprep.subr.mxu0 0.0
      %3557 = vmatpush1.msra.mxu0 0.0
      %3558 = vmatprep.subr.mxu0 0.0
      %3559 = vmatpush1.msra.mxu0 0.0
      %3560 = vmatprep.subr.mxu0 0.0
      %3561 = vmatpush1.msra.mxu0 0.0
      %3562 = vmatprep.subr.mxu0 0.0
      %3563 = vmatpush1.msra.mxu0 0.0
      %3564 = vmatprep.subr.mxu0 0.0
      %3565 = vmatpush1.msra.mxu0 0.0
      %3566 = vmatprep.subr.mxu0 0.0
      %3567 = vmatpush1.msra.mxu0 0.0
      %3568 = vmatprep.subr.mxu0 0.0
      %3569 = vmatpush1.msra.mxu0 0.0
      %3570 = vmatprep.subr.mxu0 0.0
      %3571 = vmatpush1.msra.mxu0 0.0
      %3572 = vmatprep.subr.mxu0 0.0
      %3573 = vmatpush1.msra.mxu0 0.0
      %3574 = vmatprep.subr.mxu0 0.0
      %3575 = vmatpush1.msra.mxu0 0.0
      %3576 = vmatprep.subr.mxu0 0.0
      %3577 = vmatpush1.msra.mxu0 0.0
      %3578 = vmatprep.subr.mxu0 0.0
      %3579 = vmatpush1.msra.mxu0 0.0
      %3580 = vmatprep.subr.mxu0 0.0
      %3581 = vmatpush1.msra.mxu0 0.0
      %3582 = vmatprep.subr.mxu0 0.0
      %3583 = vmatpush1.msra.mxu0 0.0
      %3584 = vmatprep.subr.mxu0 0.0
      %3585 = vmatpush1.msra.mxu0 0.0
      %3586 = vmatprep.subr.mxu0 0.0
      %3587 = vmatpush1.msra.mxu0 0.0
      %3588 = vmatprep.subr.mxu0 0.0
      %3589 = vmatpush1.msra.mxu0 0.0
      %3590 = vmatprep.subr.mxu0 0.0
      %3591 = vmatpush1.msra.mxu0 0.0
      %3592 = vmatprep.subr.mxu0 0.0
      %3593 = vmatpush1.msra.mxu0 0.0
      %3594 = vmatprep.subr.mxu0 0.0
      %3595 = vmatpush1.msra.mxu0 0.0
      %3596 = vmatprep.subr.mxu0 0.0
      %3597 = vmatpush1.msra.mxu0 0.0
      %3598 = vmatprep.subr.mxu0 0.0
      %3599 = vmatpush1.msra.mxu0 0.0
      %3600 = vmatprep.subr.mxu0 0.0
      %3601 = vmatpush1.msra.mxu0 0.0
      %3602 = vmatprep.subr.mxu0 0.0
      %3603 = vmatpush1.msra.mxu0 0.0
      %3604 = vmatprep.subr.mxu0 0.0
      %3605 = vmatpush1.msra.mxu0 0.0
      %3606 = vmatprep.subr.mxu0 0.0
      %3607 = vmatpush1.msra.mxu0 0.0
      %3608 = vmatprep.subr.mxu0 0.0
      %3609 = vmatpush1.msra.mxu0 0.0
      %3610 = vmatprep.subr.mxu0 0.0
      %3611 = vmatpush1.msra.mxu0 0.0
      %3612 = vmatprep.subr.mxu0 0.0
      %3613 = vmatpush1.msra.mxu0 0.0
      %3614 = vmatprep.subr.mxu0 0.0
      %3615 = vmatpush1.msra.mxu0 0.0
      %3616 = vmatprep.mubr.f32.mxu0 0.0
      %3617 = vmatmul.mubr.f32.gmra.mrb[0].mxu0 %v3536
      %v3618 = vpop.f32.mrb[0].mxu0
      %v3619 = vadd.f32 %v3526, %v3618
      %v3620 = vpop.f32.mrb[0].mxu0
      %v3621 = vadd.f32 %v3526, %v3620
      %3622 = vmatprep.mubr.f32.mxu0 0.0
      %3623 = vmatmul.mubr.f32.gmra.mrb[0].mxu0 %v3538
      %v3624 = vpop.f32.mrb[0].mxu0
      %v3625 = vadd.f32 %v3530, %v3624
      %v3626 = vpop.f32.mrb[0].mxu0
      %v3627 = vadd.f32 %v3530, %v3626
      %3628 = vdwg.mxu0
      %3629 = vmatprep.subr.mxu0 %v3519
      %3630 = vmatpush1.msra.mxu0 %v3518
      %3631 = vmatprep.subr.mxu0 %v3550
      %3632 = vmatpush1.msra.mxu0 %v3547
      %3633 = vmatprep.subr.mxu0 0.0
      %3634 = vmatpush1.msra.mxu0 0.0
      %3635 = vmatprep.subr.mxu0 0.0
      %3636 = vmatpush1.msra.mxu0 0.0
      %3637 = vmatprep.subr.mxu0 0.0
      %3638 = vmatpush1.msra.mxu0 0.0
      %3639 = vmatprep.subr.mxu0 0.0
      %3640 = vmatpush1.msra.mxu0 0.0
      %3641 = vmatprep.subr.mxu0 0.0
      %3642 = vmatpush1.msra.mxu0 0.0
      %3643 = vmatprep.subr.mxu0 0.0
      %3644 = vmatpush1.msra.mxu0 0.0
      %3645 = vmatprep.subr.mxu0 0.0
      %3646 = vmatpush1.msra.mxu0 0.0
      %3647 = vmatprep.subr.mxu0 0.0
      %3648 = vmatpush1.msra.mxu0 0.0
      %3649 = vmatprep.subr.mxu0 0.0
      %3650 = vmatpush1.msra.mxu0 0.0
      %3651 = vmatprep.subr.mxu0 0.0
      %3652 = vmatpush1.msra.mxu0 0.0
      %3653 = vmatprep.subr.mxu0 0.0
      %3654 = vmatpush1.msra.mxu0 0.0
      %3655 = vmatprep.subr.mxu0 0.0
      %3656 = vmatpush1.msra.mxu0 0.0
      %3657 = vmatprep.subr.mxu0 0.0
      %3658 = vmatpush1.msra.mxu0 0.0
      %3659 = vmatprep.subr.mxu0 0.0
      %3660 = vmatpush1.msra.mxu0 0.0
      %3661 = vmatprep.subr.mxu0 0.0
      %3662 = vmatpush1.msra.mxu0 0.0
      %3663 = vmatprep.subr.mxu0 0.0
      %3664 = vmatpush1.msra.mxu0 0.0
      %3665 = vmatprep.subr.mxu0 0.0
      %3666 = vmatpush1.msra.mxu0 0.0
      %3667 = vmatprep.subr.mxu0 0.0
      %3668 = vmatpush1.msra.mxu0 0.0
      %3669 = vmatprep.subr.mxu0 0.0
      %3670 = vmatpush1.msra.mxu0 0.0
      %3671 = vmatprep.subr.mxu0 0.0
      %3672 = vmatpush1.msra.mxu0 0.0
      %3673 = vmatprep.subr.mxu0 0.0
      %3674 = vmatpush1.msra.mxu0 0.0
      %3675 = vmatprep.subr.mxu0 0.0
      %3676 = vmatpush1.msra.mxu0 0.0
      %3677 = vmatprep.subr.mxu0 0.0
      %3678 = vmatpush1.msra.mxu0 0.0
      %3679 = vmatprep.subr.mxu0 0.0
      %3680 = vmatpush1.msra.mxu0 0.0
      %3681 = vmatprep.subr.mxu0 0.0
      %3682 = vmatpush1.msra.mxu0 0.0
      %3683 = vmatprep.subr.mxu0 0.0
      %3684 = vmatpush1.msra.mxu0 0.0
      %3685 = vmatprep.subr.mxu0 0.0
      %3686 = vmatpush1.msra.mxu0 0.0
      %3687 = vmatprep.subr.mxu0 0.0
      %3688 = vmatpush1.msra.mxu0 0.0
      %3689 = vmatprep.subr.mxu0 0.0
      %3690 = vmatpush1.msra.mxu0 0.0
      %3691 = vmatprep.subr.mxu0 0.0
      %3692 = vmatpush1.msra.mxu0 0.0
      %3693 = vmatprep.mubr.f32.mxu0 0.0
      %3694 = vmatmul.mubr.f32.gmra.mrb[0].mxu0 %v3536
      %v3695 = vpop.f32.mrb[0].mxu0
      %v3696 = vadd.f32 %v3526, %v3695
      %v3697 = vpop.f32.mrb[0].mxu0
      %v3698 = vadd.f32 %v3526, %v3697
      %3699 = vmatprep.mubr.f32.mxu0 0.0
      %3700 = vmatmul.mubr.f32.gmra.mrb[0].mxu0 %v3538
      %v3701 = vpop.f32.mrb[0].mxu0
      %v3702 = vadd.f32 %v3530, %v3701
      %v3703 = vpop.f32.mrb[0].mxu0
      %v3704 = vadd.f32 %v3530, %v3703
      %3705 = vdwg.mxu0
      %3706 = vset.pattern.permute.xlu0 72
      %3707 = vperm.xlu0 %3706, %v199
      %v3708 = vpop.permute.xlu0 %3707
      %3710 = vset.pattern.permute.xlu0 72
      %3711 = vperm.xlu0 %3710, %v201
      %v3712 = vpop.permute.xlu0 %3711
      %v3714 = vmul.f32 %v3708, %v3619
      %v3715 = vmul.f32 %v3708, %v3621
      %v3716 = vmul.f32 %v3708, %v3696
      %v3717 = vmul.f32 %v3708, %v3698
      %v3718 = vmul.f32 %v3712, %v3625
      %v3719 = vmul.f32 %v3712, %v3627
      %v3720 = vmul.f32 %v3712, %v3702
      %v3721 = vmul.f32 %v3712, %v3704
      %v3722 = vadd.f32 %v2317, %v3714
      %v3723 = vadd.f32 %v2318, %v3715
      %v3724 = vadd.f32 %v2319, %v3716
      %v3725 = vadd.f32 %v2320, %v3717
      %v3726 = vadd.f32 %v2321, %v3718
      %v3727 = vadd.f32 %v2322, %v3719
      %v3728 = vadd.f32 %v2323, %v3720
      %v3729 = vadd.f32 %v2324, %v3721
      %3730 = vset.pattern.permute.xlu0 25
      %3731 = vperm.xlu0 %3730, %v202
      %v3732 = vpop.permute.xlu0 %3731
      %3734 = vset.pattern.permute.xlu0 25
      %3735 = vperm.xlu0 %3734, %v203
      %v3736 = vpop.permute.xlu0 %3735
      %3738 = vset.pattern.permute.xlu0 25
      %3739 = vperm.xlu0 %3738, %v204
      %v3740 = vpop.permute.xlu0 %3739
      %3742 = vset.pattern.permute.xlu0 25
      %3743 = vperm.xlu0 %3742, %v205
      %v3744 = vpop.permute.xlu0 %3743
      %3746 = vset.pattern.permute.xlu0 25
      %3747 = vperm.xlu0 %3746, %v206
      %v3748 = vpop.permute.xlu0 %3747
      %3750 = vset.pattern.permute.xlu0 25
      %3751 = vperm.xlu0 %3750, %v207
      %v3752 = vpop.permute.xlu0 %3751
      %3754 = vrot.lane.b32.xlu0 %v202, 115
      %v3755 = vpop.permute.xlu0 %3754
      %3756 = vrot.lane.b32.xlu0 %v203, 115
      %v3757 = vpop.permute.xlu0 %3756
      %3758 = vrot.lane.b32.xlu0 %v204, 115
      %v3759 = vpop.permute.xlu0 %3758
      %3760 = vrot.lane.b32.xlu0 %v205, 115
      %v3761 = vpop.permute.xlu0 %3760
      %3762 = vrot.lane.b32.xlu0 %v206, 115
      %v3763 = vpop.permute.xlu0 %3762
      %3764 = vrot.lane.b32.xlu0 %v207, 115
      %v3765 = vpop.permute.xlu0 %3764
      %v3766 = vsel %vm874, %v3755, 0
      %v3768 = vsel %vm874, %v3757, 0
      %v3770 = vsel %vm874, %v3759, 0
      %v3772 = vsel %vm874, %v3761, 0
      %v3774 = vsel %vm874, %v3763, 0
      %v3776 = vsel %vm874, %v3765, 0
      %v3779 = vsel %vm887, %v3726, 0
      %v3782 = vsel %vm887, %v3727, 0
      %v3785 = vsel %vm887, %v3728, 0
      %v3788 = vsel %vm887, %v3729, 0
      %3790 = vmatprep.subr.mxu0 %v3723
      %3791 = vmatpush1.msra.mxu0 %v3722
      %3792 = vmatprep.subr.mxu0 %v3782
      %3793 = vmatpush1.msra.mxu0 %v3779
      %3794 = vmatprep.subr.mxu0 0.0
      %3795 = vmatpush1.msra.mxu0 0.0
      %3796 = vmatprep.subr.mxu0 0.0
      %3797 = vmatpush1.msra.mxu0 0.0
      %3798 = vmatprep.subr.mxu0 0.0
      %3799 = vmatpush1.msra.mxu0 0.0
      %3800 = vmatprep.subr.mxu0 0.0
      %3801 = vmatpush1.msra.mxu0 0.0
      %3802 = vmatprep.subr.mxu0 0.0
      %3803 = vmatpush1.msra.mxu0 0.0
      %3804 = vmatprep.subr.mxu0 0.0
      %3805 = vmatpush1.msra.mxu0 0.0
      %3806 = vmatprep.subr.mxu0 0.0
      %3807 = vmatpush1.msra.mxu0 0.0
      %3808 = vmatprep.subr.mxu0 0.0
      %3809 = vmatpush1.msra.mxu0 0.0
      %3810 = vmatprep.subr.mxu0 0.0
      %3811 = vmatpush1.msra.mxu0 0.0
      %3812 = vmatprep.subr.mxu0 0.0
      %3813 = vmatpush1.msra.mxu0 0.0
      %3814 = vmatprep.subr.mxu0 0.0
      %3815 = vmatpush1.msra.mxu0 0.0
      %3816 = vmatprep.subr.mxu0 0.0
      %3817 = vmatpush1.msra.mxu0 0.0
      %3818 = vmatprep.subr.mxu0 0.0
      %3819 = vmatpush1.msra.mxu0 0.0
      %3820 = vmatprep.subr.mxu0 0.0
      %3821 = vmatpush1.msra.mxu0 0.0
      %3822 = vmatprep.subr.mxu0 0.0
      %3823 = vmatpush1.msra.mxu0 0.0
      %3824 = vmatprep.subr.mxu0 0.0
      %3825 = vmatpush1.msra.mxu0 0.0
      %3826 = vmatprep.subr.mxu0 0.0
      %3827 = vmatpush1.msra.mxu0 0.0
      %3828 = vmatprep.subr.mxu0 0.0
      %3829 = vmatpush1.msra.mxu0 0.0
      %3830 = vmatprep.subr.mxu0 0.0
      %3831 = vmatpush1.msra.mxu0 0.0
      %3832 = vmatprep.subr.mxu0 0.0
      %3833 = vmatpush1.msra.mxu0 0.0
      %3834 = vmatprep.subr.mxu0 0.0
      %3835 = vmatpush1.msra.mxu0 0.0
      %3836 = vmatprep.subr.mxu0 0.0
      %3837 = vmatpush1.msra.mxu0 0.0
      %3838 = vmatprep.subr.mxu0 0.0
      %3839 = vmatpush1.msra.mxu0 0.0
      %3840 = vmatprep.subr.mxu0 0.0
      %3841 = vmatpush1.msra.mxu0 0.0
      %3842 = vmatprep.subr.mxu0 0.0
      %3843 = vmatpush1.msra.mxu0 0.0
      %3844 = vmatprep.subr.mxu0 0.0
      %3845 = vmatpush1.msra.mxu0 0.0
      %3846 = vmatprep.subr.mxu0 0.0
      %3847 = vmatpush1.msra.mxu0 0.0
      %3848 = vmatprep.subr.mxu0 0.0
      %3849 = vmatpush1.msra.mxu0 0.0
      %3850 = vmatprep.subr.mxu0 0.0
      %3851 = vmatpush1.msra.mxu0 0.0
      %3852 = vmatprep.subr.mxu0 0.0
      %3853 = vmatpush1.msra.mxu0 0.0
      %3854 = vmatprep.mubr.f32.mxu0 0.0
      %3855 = vmatmul.mubr.f32.gmra.mrb[0].mxu0 %v3766
      %v3856 = vpop.f32.mrb[0].mxu0
      %v3857 = vadd.f32 %v3732, %v3856
      %v3858 = vpop.f32.mrb[0].mxu0
      %v3859 = vadd.f32 %v3732, %v3858
      %3860 = vmatprep.mubr.f32.mxu0 0.0
      %3861 = vmatmul.mubr.f32.gmra.mrb[0].mxu0 %v3768
      %v3862 = vpop.f32.mrb[0].mxu0
      %v3863 = vadd.f32 %v3736, %v3862
      %v3864 = vpop.f32.mrb[0].mxu0
      %v3865 = vadd.f32 %v3736, %v3864
      %3866 = vmatprep.mubr.f32.mxu0 0.0
      %3867 = vmatmul.mubr.f32.gmra.mrb[0].mxu0 %v3770
      %v3868 = vpop.f32.mrb[0].mxu0
      %v3869 = vadd.f32 %v3740, %v3868
      %v3870 = vpop.f32.mrb[0].mxu0
      %v3871 = vadd.f32 %v3740, %v3870
      %3872 = vmatprep.mubr.f32.mxu0 0.0
      %3873 = vmatmul.mubr.f32.gmra.mrb[0].mxu0 %v3772
      %v3874 = vpop.f32.mrb[0].mxu0
      %v3875 = vadd.f32 %v3744, %v3874
      %v3876 = vpop.f32.mrb[0].mxu0
      %v3877 = vadd.f32 %v3744, %v3876
      %3878 = vmatprep.mubr.f32.mxu0 0.0
      %3879 = vmatmul.mubr.f32.gmra.mrb[0].mxu0 %v3774
      %v3880 = vpop.f32.mrb[0].mxu0
      %v3881 = vadd.f32 %v3748, %v3880
      %v3882 = vpop.f32.mrb[0].mxu0
      %v3883 = vadd.f32 %v3748, %v3882
      %3884 = vmatprep.mubr.f32.mxu0 0.0
      %3885 = vmatmul.mubr.f32.gmra.mrb[0].mxu0 %v3776
      %v3886 = vpop.f32.mrb[0].mxu0
      %v3887 = vadd.f32 %v3752, %v3886
      %v3888 = vpop.f32.mrb[0].mxu0
      %v3889 = vadd.f32 %v3752, %v3888
      %3890 = vdwg.mxu0
      %3891 = vmatprep.subr.mxu0 %v3725
      %3892 = vmatpush1.msra.mxu0 %v3724
      %3893 = vmatprep.subr.mxu0 %v3788
      %3894 = vmatpush1.msra.mxu0 %v3785
      %3895 = vmatprep.subr.mxu0 0.0
      %3896 = vmatpush1.msra.mxu0 0.0
      %3897 = vmatprep.subr.mxu0 0.0
      %3898 = vmatpush1.msra.mxu0 0.0
      %3899 = vmatprep.subr.mxu0 0.0
      %3900 = vmatpush1.msra.mxu0 0.0
      %3901 = vmatprep.subr.mxu0 0.0
      %3902 = vmatpush1.msra.mxu0 0.0
      %3903 = vmatprep.subr.mxu0 0.0
      %3904 = vmatpush1.msra.mxu0 0.0
      %3905 = vmatprep.subr.mxu0 0.0
      %3906 = vmatpush1.msra.mxu0 0.0
      %3907 = vmatprep.subr.mxu0 0.0
      %3908 = vmatpush1.msra.mxu0 0.0
      %3909 = vmatprep.subr.mxu0 0.0
      %3910 = vmatpush1.msra.mxu0 0.0
      %3911 = vmatprep.subr.mxu0 0.0
      %3912 = vmatpush1.msra.mxu0 0.0
      %3913 = vmatprep.subr.mxu0 0.0
      %3914 = vmatpush1.msra.mxu0 0.0
      %3915 = vmatprep.subr.mxu0 0.0
      %3916 = vmatpush1.msra.mxu0 0.0
      %3917 = vmatprep.subr.mxu0 0.0
      %3918 = vmatpush1.msra.mxu0 0.0
      %3919 = vmatprep.subr.mxu0 0.0
      %3920 = vmatpush1.msra.mxu0 0.0
      %3921 = vmatprep.subr.mxu0 0.0
      %3922 = vmatpush1.msra.mxu0 0.0
      %3923 = vmatprep.subr.mxu0 0.0
      %3924 = vmatpush1.msra.mxu0 0.0
      %3925 = vmatprep.subr.mxu0 0.0
      %3926 = vmatpush1.msra.mxu0 0.0
      %3927 = vmatprep.subr.mxu0 0.0
      %3928 = vmatpush1.msra.mxu0 0.0
      %3929 = vmatprep.subr.mxu0 0.0
      %3930 = vmatpush1.msra.mxu0 0.0
      %3931 = vmatprep.subr.mxu0 0.0
      %3932 = vmatpush1.msra.mxu0 0.0
      %3933 = vmatprep.subr.mxu0 0.0
      %3934 = vmatpush1.msra.mxu0 0.0
      %3935 = vmatprep.subr.mxu0 0.0
      %3936 = vmatpush1.msra.mxu0 0.0
      %3937 = vmatprep.subr.mxu0 0.0
      %3938 = vmatpush1.msra.mxu0 0.0
      %3939 = vmatprep.subr.mxu0 0.0
      %3940 = vmatpush1.msra.mxu0 0.0
      %3941 = vmatprep.subr.mxu0 0.0
      %3942 = vmatpush1.msra.mxu0 0.0
      %3943 = vmatprep.subr.mxu0 0.0
      %3944 = vmatpush1.msra.mxu0 0.0
      %3945 = vmatprep.subr.mxu0 0.0
      %3946 = vmatpush1.msra.mxu0 0.0
      %3947 = vmatprep.subr.mxu0 0.0
      %3948 = vmatpush1.msra.mxu0 0.0
      %3949 = vmatprep.subr.mxu0 0.0
      %3950 = vmatpush1.msra.mxu0 0.0
      %3951 = vmatprep.subr.mxu0 0.0
      %3952 = vmatpush1.msra.mxu0 0.0
      %3953 = vmatprep.subr.mxu0 0.0
      %3954 = vmatpush1.msra.mxu0 0.0
      %3955 = vmatprep.mubr.f32.mxu0 0.0
      %3956 = vmatmul.mubr.f32.gmra.mrb[0].mxu0 %v3766
      %v3957 = vpop.f32.mrb[0].mxu0
      %v3958 = vadd.f32 %v3732, %v3957
      %v3959 = vpop.f32.mrb[0].mxu0
      %v3960 = vadd.f32 %v3732, %v3959
      %3961 = vmatprep.mubr.f32.mxu0 0.0
      %3962 = vmatmul.mubr.f32.gmra.mrb[0].mxu0 %v3768
      %v3963 = vpop.f32.mrb[0].mxu0
      %v3964 = vadd.f32 %v3736, %v3963
      %v3965 = vpop.f32.mrb[0].mxu0
      %v3966 = vadd.f32 %v3736, %v3965
      %3967 = vmatprep.mubr.f32.mxu0 0.0
      %3968 = vmatmul.mubr.f32.gmra.mrb[0].mxu0 %v3770
      %v3969 = vpop.f32.mrb[0].mxu0
      %v3970 = vadd.f32 %v3740, %v3969
      %v3971 = vpop.f32.mrb[0].mxu0
      %v3972 = vadd.f32 %v3740, %v3971
      %3973 = vmatprep.mubr.f32.mxu0 0.0
      %3974 = vmatmul.mubr.f32.gmra.mrb[0].mxu0 %v3772
      %v3975 = vpop.f32.mrb[0].mxu0
      %v3976 = vadd.f32 %v3744, %v3975
      %v3977 = vpop.f32.mrb[0].mxu0
      %v3978 = vadd.f32 %v3744, %v3977
      %3979 = vmatprep.mubr.f32.mxu0 0.0
      %3980 = vmatmul.mubr.f32.gmra.mrb[0].mxu0 %v3774
      %v3981 = vpop.f32.mrb[0].mxu0
      %v3982 = vadd.f32 %v3748, %v3981
      %v3983 = vpop.f32.mrb[0].mxu0
      %v3984 = vadd.f32 %v3748, %v3983
      %3985 = vmatprep.mubr.f32.mxu0 0.0
      %3986 = vmatmul.mubr.f32.gmra.mrb[0].mxu0 %v3776
      %v3987 = vpop.f32.mrb[0].mxu0
      %v3988 = vadd.f32 %v3752, %v3987
      %v3989 = vpop.f32.mrb[0].mxu0
      %v3990 = vadd.f32 %v3752, %v3989
      %3991 = vdwg.mxu0
      %v3992 = vmul.f32 %v3857, 0.5
      %v3993 = vmul.f32 %v3859, 0.5
      %v3994 = vmul.f32 %v3958, 0.5
      %v3995 = vmul.f32 %v3960, 0.5
      %v3996 = vmul.f32 %v3863, 0.5
      %v3997 = vmul.f32 %v3865, 0.5
      %v3998 = vmul.f32 %v3964, 0.5
      %v3999 = vmul.f32 %v3966, 0.5
      %v4000 = vmul.f32 %v3869, 0.5
      %v4001 = vmul.f32 %v3871, 0.5
      %v4002 = vmul.f32 %v3970, 0.5
      %v4003 = vmul.f32 %v3972, 0.5
      %v4004 = vmul.f32 %v3875, 0.5
      %v4005 = vmul.f32 %v3877, 0.5
      %v4006 = vmul.f32 %v3976, 0.5
      %v4007 = vmul.f32 %v3978, 0.5
      %v4008 = vmul.f32 %v3881, 0.5
      %v4009 = vmul.f32 %v3883, 0.5
      %v4010 = vmul.f32 %v3982, 0.5
      %v4011 = vmul.f32 %v3984, 0.5
      %v4012 = vmul.f32 %v3887, 0.5
      %v4013 = vmul.f32 %v3889, 0.5
      %v4014 = vmul.f32 %v3988, 0.5
      %v4015 = vmul.f32 %v3990, 0.5
      %v4016 = vmul.f32 %v3857, 0.70710677
      %v4017 = vmul.f32 %v3859, 0.70710677
      %v4018 = vmul.f32 %v3958, 0.70710677
      %v4019 = vmul.f32 %v3960, 0.70710677
      %v4020 = vmul.f32 %v3863, 0.70710677
      %v4021 = vmul.f32 %v3865, 0.70710677
      %v4022 = vmul.f32 %v3964, 0.70710677
      %v4023 = vmul.f32 %v3966, 0.70710677
      %v4024 = vmul.f32 %v3869, 0.70710677
      %v4025 = vmul.f32 %v3871, 0.70710677
      %v4026 = vmul.f32 %v3970, 0.70710677
      %v4027 = vmul.f32 %v3972, 0.70710677
      %v4028 = vmul.f32 %v3875, 0.70710677
      %v4029 = vmul.f32 %v3877, 0.70710677
      %v4030 = vmul.f32 %v3976, 0.70710677
      %v4031 = vmul.f32 %v3978, 0.70710677
      %v4032 = vmul.f32 %v3881, 0.70710677
      %v4033 = vmul.f32 %v3883, 0.70710677
      %v4034 = vmul.f32 %v3982, 0.70710677
      %v4035 = vmul.f32 %v3984, 0.70710677
      %v4036 = vmul.f32 %v3887, 0.70710677
      %v4037 = vmul.f32 %v3889, 0.70710677
      %v4038 = vmul.f32 %v3988, 0.70710677
      %v4039 = vmul.f32 %v3990, 0.70710677
      %v4040 = verf.f32.pop %v4016
      %v4041 = verf.f32.pop %v4017
      %v4042 = verf.f32.pop %v4018
      %v4043 = verf.f32.pop %v4019
      %v4044 = verf.f32.pop %v4020
      %v4045 = verf.f32.pop %v4021
      %v4046 = verf.f32.pop %v4022
      %v4047 = verf.f32.pop %v4023
      %v4048 = verf.f32.pop %v4024
      %v4049 = verf.f32.pop %v4025
      %v4050 = verf.f32.pop %v4026
      %v4051 = verf.f32.pop %v4027
      %v4052 = verf.f32.pop %v4028
      %v4053 = verf.f32.pop %v4029
      %v4054 = verf.f32.pop %v4030
      %v4055 = verf.f32.pop %v4031
      %v4056 = verf.f32.pop %v4032
      %v4057 = verf.f32.pop %v4033
      %v4058 = verf.f32.pop %v4034
      %v4059 = verf.f32.pop %v4035
      %v4060 = verf.f32.pop %v4036
      %v4061 = verf.f32.pop %v4037
      %v4062 = verf.f32.pop %v4038
      %v4063 = verf.f32.pop %v4039
      %v4064 = vadd.f32 %v4040, 1.0
      %v4065 = vadd.f32 %v4041, 1.0
      %v4066 = vadd.f32 %v4042, 1.0
      %v4067 = vadd.f32 %v4043, 1.0
      %v4068 = vadd.f32 %v4044, 1.0
      %v4069 = vadd.f32 %v4045, 1.0
      %v4070 = vadd.f32 %v4046, 1.0
      %v4071 = vadd.f32 %v4047, 1.0
      %v4072 = vadd.f32 %v4048, 1.0
      %v4073 = vadd.f32 %v4049, 1.0
      %v4074 = vadd.f32 %v4050, 1.0
      %v4075 = vadd.f32 %v4051, 1.0
      %v4076 = vadd.f32 %v4052, 1.0
      %v4077 = vadd.f32 %v4053, 1.0
      %v4078 = vadd.f32 %v4054, 1.0
      %v4079 = vadd.f32 %v4055, 1.0
      %v4080 = vadd.f32 %v4056, 1.0
      %v4081 = vadd.f32 %v4057, 1.0
      %v4082 = vadd.f32 %v4058, 1.0
      %v4083 = vadd.f32 %v4059, 1.0
      %v4084 = vadd.f32 %v4060, 1.0
      %v4085 = vadd.f32 %v4061, 1.0
      %v4086 = vadd.f32 %v4062, 1.0
      %v4087 = vadd.f32 %v4063, 1.0
      %v4088 = vmul.f32 %v3992, %v4064
      %v4089 = vmul.f32 %v3993, %v4065
      %v4090 = vmul.f32 %v3994, %v4066
      %v4091 = vmul.f32 %v3995, %v4067
      %v4092 = vmul.f32 %v3996, %v4068
      %v4093 = vmul.f32 %v3997, %v4069
      %v4094 = vmul.f32 %v3998, %v4070
      %v4095 = vmul.f32 %v3999, %v4071
      %v4096 = vmul.f32 %v4000, %v4072
      %v4097 = vmul.f32 %v4001, %v4073
      %v4098 = vmul.f32 %v4002, %v4074
      %v4099 = vmul.f32 %v4003, %v4075
      %v4100 = vmul.f32 %v4004, %v4076
      %v4101 = vmul.f32 %v4005, %v4077
      %v4102 = vmul.f32 %v4006, %v4078
      %v4103 = vmul.f32 %v4007, %v4079
      %v4104 = vmul.f32 %v4008, %v4080
      %v4105 = vmul.f32 %v4009, %v4081
      %v4106 = vmul.f32 %v4010, %v4082
      %v4107 = vmul.f32 %v4011, %v4083
      %v4108 = vmul.f32 %v4012, %v4084
      %v4109 = vmul.f32 %v4013, %v4085
      %v4110 = vmul.f32 %v4014, %v4086
      %v4111 = vmul.f32 %v4015, %v4087
      %4112 = vset.pattern.permute.xlu0 71
      %4113 = vperm.xlu0 %4112, %v199
      %v4114 = vpop.permute.xlu0 %4113
      %4116 = vset.pattern.permute.xlu0 71
      %4117 = vperm.xlu0 %4116, %v201
      %v4118 = vpop.permute.xlu0 %4117
      %4120 = vrot.lane.b32.xlu0 %v199, 105
      %v4121 = vpop.permute.xlu0 %4120
      %4122 = vrot.lane.b32.xlu0 %v201, 105
      %v4123 = vpop.permute.xlu0 %4122
      %v4124 = vsel %vm1234, %v4121, 0
      %v4126 = vsel %vm1234, %v4123, 0
      %4128 = vmatprep.subr.mxu0 %v4089
      %4129 = vmatpush1.msra.mxu0 %v4088
      %4130 = vmatprep.subr.mxu0 %v4093
      %4131 = vmatpush1.msra.mxu0 %v4092
      %4132 = vmatprep.subr.mxu0 %v4097
      %4133 = vmatpush1.msra.mxu0 %v4096
      %4134 = vmatprep.subr.mxu0 %v4101
      %4135 = vmatpush1.msra.mxu0 %v4100
      %4136 = vmatprep.subr.mxu0 %v4105
      %4137 = vmatpush1.msra.mxu0 %v4104
      %4138 = vmatprep.subr.mxu0 %v4109
      %4139 = vmatpush1.msra.mxu0 %v4108
      %4140 = vmatprep.subr.mxu0 0.0
      %4141 = vmatpush1.msra.mxu0 0.0
      %4142 = vmatprep.subr.mxu0 0.0
      %4143 = vmatpush1.msra.mxu0 0.0
      %4144 = vmatprep.subr.mxu0 0.0
      %4145 = vmatpush1.msra.mxu0 0.0
      %4146 = vmatprep.subr.mxu0 0.0
      %4147 = vmatpush1.msra.mxu0 0.0
      %4148 = vmatprep.subr.mxu0 0.0
      %4149 = vmatpush1.msra.mxu0 0.0
      %4150 = vmatprep.subr.mxu0 0.0
      %4151 = vmatpush1.msra.mxu0 0.0
      %4152 = vmatprep.subr.mxu0 0.0
      %4153 = vmatpush1.msra.mxu0 0.0
      %4154 = vmatprep.subr.mxu0 0.0
      %4155 = vmatpush1.msra.mxu0 0.0
      %4156 = vmatprep.subr.mxu0 0.0
      %4157 = vmatpush1.msra.mxu0 0.0
      %4158 = vmatprep.subr.mxu0 0.0
      %4159 = vmatpush1.msra.mxu0 0.0
      %4160 = vmatprep.subr.mxu0 0.0
      %4161 = vmatpush1.msra.mxu0 0.0
      %4162 = vmatprep.subr.mxu0 0.0
      %4163 = vmatpush1.msra.mxu0 0.0
      %4164 = vmatprep.subr.mxu0 0.0
      %4165 = vmatpush1.msra.mxu0 0.0
      %4166 = vmatprep.subr.mxu0 0.0
      %4167 = vmatpush1.msra.mxu0 0.0
      %4168 = vmatprep.subr.mxu0 0.0
      %4169 = vmatpush1.msra.mxu0 0.0
      %4170 = vmatprep.subr.mxu0 0.0
      %4171 = vmatpush1.msra.mxu0 0.0
      %4172 = vmatprep.subr.mxu0 0.0
      %4173 = vmatpush1.msra.mxu0 0.0
      %4174 = vmatprep.subr.mxu0 0.0
      %4175 = vmatpush1.msra.mxu0 0.0
      %4176 = vmatprep.subr.mxu0 0.0
      %4177 = vmatpush1.msra.mxu0 0.0
      %4178 = vmatprep.subr.mxu0 0.0
      %4179 = vmatpush1.msra.mxu0 0.0
      %4180 = vmatprep.subr.mxu0 0.0
      %4181 = vmatpush1.msra.mxu0 0.0
      %4182 = vmatprep.subr.mxu0 0.0
      %4183 = vmatpush1.msra.mxu0 0.0
      %4184 = vmatprep.subr.mxu0 0.0
      %4185 = vmatpush1.msra.mxu0 0.0
      %4186 = vmatprep.subr.mxu0 0.0
      %4187 = vmatpush1.msra.mxu0 0.0
      %4188 = vmatprep.subr.mxu0 0.0
      %4189 = vmatpush1.msra.mxu0 0.0
      %4190 = vmatprep.subr.mxu0 0.0
      %4191 = vmatpush1.msra.mxu0 0.0
      %4192 = vmatprep.mubr.f32.mxu0 0.0
      %4193 = vmatmul.mubr.f32.gmra.mrb[0].mxu0 %v4124
      %v4194 = vpop.f32.mrb[0].mxu0
      %v4195 = vadd.f32 %v4114, %v4194
      %v4196 = vpop.f32.mrb[0].mxu0
      %v4197 = vadd.f32 %v4114, %v4196
      %4198 = vmatprep.mubr.f32.mxu0 0.0
      %4199 = vmatmul.mubr.f32.gmra.mrb[0].mxu0 %v4126
      %v4200 = vpop.f32.mrb[0].mxu0
      %v4201 = vadd.f32 %v4118, %v4200
      %v4202 = vpop.f32.mrb[0].mxu0
      %v4203 = vadd.f32 %v4118, %v4202
      %4204 = vdwg.mxu0
      %4205 = vmatprep.subr.mxu0 %v4091
      %4206 = vmatpush1.msra.mxu0 %v4090
      %4207 = vmatprep.subr.mxu0 %v4095
      %4208 = vmatpush1.msra.mxu0 %v4094
      %4209 = vmatprep.subr.mxu0 %v4099
      %4210 = vmatpush1.msra.mxu0 %v4098
      %4211 = vmatprep.subr.mxu0 %v4103
      %4212 = vmatpush1.msra.mxu0 %v4102
      %4213 = vmatprep.subr.mxu0 %v4107
      %4214 = vmatpush1.msra.mxu0 %v4106
      %4215 = vmatprep.subr.mxu0 %v4111
      %4216 = vmatpush1.msra.mxu0 %v4110
      %4217 = vmatprep.subr.mxu0 0.0
      %4218 = vmatpush1.msra.mxu0 0.0
      %4219 = vmatprep.subr.mxu0 0.0
      %4220 = vmatpush1.msra.mxu0 0.0
      %4221 = vmatprep.subr.mxu0 0.0
      %4222 = vmatpush1.msra.mxu0 0.0
      %4223 = vmatprep.subr.mxu0 0.0
      %4224 = vmatpush1.msra.mxu0 0.0
      %4225 = vmatprep.subr.mxu0 0.0
      %4226 = vmatpush1.msra.mxu0 0.0
      %4227 = vmatprep.subr.mxu0 0.0
      %4228 = vmatpush1.msra.mxu0 0.0
      %4229 = vmatprep.subr.mxu0 0.0
      %4230 = vmatpush1.msra.mxu0 0.0
      %4231 = vmatprep.subr.mxu0 0.0
      %4232 = vmatpush1.msra.mxu0 0.0
      %4233 = vmatprep.subr.mxu0 0.0
      %4234 = vmatpush1.msra.mxu0 0.0
      %4235 = vmatprep.subr.mxu0 0.0
      %4236 = vmatpush1.msra.mxu0 0.0
      %4237 = vmatprep.subr.mxu0 0.0
      %4238 = vmatpush1.msra.mxu0 0.0
      %4239 = vmatprep.subr.mxu0 0.0
      %4240 = vmatpush1.msra.mxu0 0.0
      %4241 = vmatprep.subr.mxu0 0.0
      %4242 = vmatpush1.msra.mxu0 0.0
      %4243 = vmatprep.subr.mxu0 0.0
      %4244 = vmatpush1.msra.mxu0 0.0
      %4245 = vmatprep.subr.mxu0 0.0
      %4246 = vmatpush1.msra.mxu0 0.0
      %4247 = vmatprep.subr.mxu0 0.0
      %4248 = vmatpush1.msra.mxu0 0.0
      %4249 = vmatprep.subr.mxu0 0.0
      %4250 = vmatpush1.msra.mxu0 0.0
      %4251 = vmatprep.subr.mxu0 0.0
      %4252 = vmatpush1.msra.mxu0 0.0
      %4253 = vmatprep.subr.mxu0 0.0
      %4254 = vmatpush1.msra.mxu0 0.0
      %4255 = vmatprep.subr.mxu0 0.0
      %4256 = vmatpush1.msra.mxu0 0.0
      %4257 = vmatprep.subr.mxu0 0.0
      %4258 = vmatpush1.msra.mxu0 0.0
      %4259 = vmatprep.subr.mxu0 0.0
      %4260 = vmatpush1.msra.mxu0 0.0
      %4261 = vmatprep.subr.mxu0 0.0
      %4262 = vmatpush1.msra.mxu0 0.0
      %4263 = vmatprep.subr.mxu0 0.0
      %4264 = vmatpush1.msra.mxu0 0.0
      %4265 = vmatprep.subr.mxu0 0.0
      %4266 = vmatpush1.msra.mxu0 0.0
      %4267 = vmatprep.subr.mxu0 0.0
      %4268 = vmatpush1.msra.mxu0 0.0
      %4269 = vmatprep.mubr.f32.mxu0 0.0
      %4270 = vmatmul.mubr.f32.gmra.mrb[0].mxu0 %v4124
      %v4271 = vpop.f32.mrb[0].mxu0
      %v4272 = vadd.f32 %v4114, %v4271
      %v4273 = vpop.f32.mrb[0].mxu0
      %v4274 = vadd.f32 %v4114, %v4273
      %4275 = vmatprep.mubr.f32.mxu0 0.0
      %4276 = vmatmul.mubr.f32.gmra.mrb[0].mxu0 %v4126
      %v4277 = vpop.f32.mrb[0].mxu0
      %v4278 = vadd.f32 %v4118, %v4277
      %v4279 = vpop.f32.mrb[0].mxu0
      %v4280 = vadd.f32 %v4118, %v4279
      %4281 = vdwg.mxu0
      %4282 = vset.pattern.permute.xlu0 73
      %4283 = vperm.xlu0 %4282, %v199
      %v4284 = vpop.permute.xlu0 %4283
      %4286 = vset.pattern.permute.xlu0 73
      %4287 = vperm.xlu0 %4286, %v201
      %v4288 = vpop.permute.xlu0 %4287
      %v4290 = vmul.f32 %v4284, %v4195
      %v4291 = vmul.f32 %v4284, %v4197
      %v4292 = vmul.f32 %v4284, %v4272
      %v4293 = vmul.f32 %v4284, %v4274
      %v4294 = vmul.f32 %v4288, %v4201
      %v4295 = vmul.f32 %v4288, %v4203
      %v4296 = vmul.f32 %v4288, %v4278
      %v4297 = vmul.f32 %v4288, %v4280
      %v4298 = vadd.f32 %v3722, %v4290
      %v4299 = vadd.f32 %v3723, %v4291
      %v4300 = vadd.f32 %v3724, %v4292
      %v4301 = vadd.f32 %v3725, %v4293
      %v4302 = vadd.f32 %v3726, %v4294
      %v4303 = vadd.f32 %v3727, %v4295
      %v4304 = vadd.f32 %v3728, %v4296
      %v4305 = vadd.f32 %v3729, %v4297
      %4306 = vst [vmem:[%s197] sm:$0xff] %v4298
      %4307 = vst [vmem:[%s197 + $0x8] sm:$0xff] %v4299
      %4308 = vst [vmem:[%s197 + $0x10] sm:$0xff] %v4300
      %4309 = vst [vmem:[%s197 + $0x18] sm:$0xff] %v4301
      %4310 = vst [vmem:[%s197 + $0x20] sm:$0xf] %v4302
      %4311 = vst [vmem:[%s197 + $0x28] sm:$0xf] %v4303
      %4312 = vst [vmem:[%s197 + $0x30] sm:$0xf] %v4304
      %4313 = vst [vmem:[%s197 + $0x38] sm:$0xf] %v4305
      %p4314 = scmp.lt.s32.totalorder %s15, 1
      %s4315 = scalar_select %p4314, %s15, 1
      %s4316 = smul.addr %s4315, 8
      %s4317 = smul.addr %s4316, 8
      %s4318 = scalar_lea.vmem %s4, %s4317
      // Predicated region
      $region37: #{short_attention_forward.1} parent=35 // pred_check
        %p4319 = pneg %p122
      $region38: #{short_attention_forward.1} parent=35 // pred_check_branch
        %4321 = sbr.rel (%p4319) target = $region40
      $region39: #{short_attention_forward.1} parent=35 // pred_region
        _
      $region40: #{short_attention_forward.1} parent=35 // pred_fallthru
        _
    $region36: #{short_attention_forward.1} parent=5 // pred_fallthru
      _
    %p4322 = scmp.le.s32.totalorder 2, %s10
    // Predicated region
    $region41: #{short_attention_forward.1} parent=5 // pred_check
      %p4323 = pneg %p4322
    $region42: #{short_attention_forward.1} parent=5 // pred_check_branch
      %4325 = sbr.rel (%p4323) target = $region44
    $region43: #{short_attention_forward.1} parent=5 // pred_region
      %s4326 = ssub.s32 %s10, 2
      // Predicated region
      $region45: #{short_attention_forward.1} parent=43 // pred_check
        %p4327 = pneg %p128
      $region46: #{short_attention_forward.1} parent=43 // pred_check_branch
        %4329 = sbr.rel (%p4327) target = $region48
      $region47: #{short_attention_forward.1} parent=43 // pred_region
        %p4330 = scmp.lt.s32.totalorder %s16, 1
        %s4331 = scalar_select %p4330, %s16, 1
        %s4332 = smul.addr %s4331, 8
        %s4333 = smul.addr %s4332, 8
        %s4334 = scalar_lea.vmem %s4, %s4333
      $region48: #{short_attention_forward.1} parent=43 // pred_fallthru
        _
    $region44: #{short_attention_forward.1} parent=5 // pred_fallthru
      _
  $region6: #{short_attention_forward.1} parent=0 // loop_footer
    %s14 = sadd.s32 1, %s10
  $region7: #{short_attention_forward.1} parent=0 // loop_footer_branch
    %9 = sbr.rel target = $region3
  $region8: #{short_attention_forward.1} parent=0 // loop_exit
    _

</llo_original>
